<compile_context>
chip_gen: v7x
topology: tpu7x:2x2x1
jax: 0.10.0
libtpu: 0.0.40
codegen_flags: <defaults>
</compile_context>

<pallas_src>
import functools

import jax
import jax.numpy as jnp
from jax.experimental import pallas as pl
from jax.experimental.pallas import tpu as pltpu


# ---------------------------------------------------------------------------
# Fused CharRNN kernel (all layers + FC in one invocation, no grid).
# PyTorch gate order: i, f, g, o ;  c' = f*c + i*g ; h' = o*tanh(c').
# ---------------------------------------------------------------------------
def _char_rnn_fused_kernel(*refs, n_layers, seq_len, batch, hidden):
    T, B, H = seq_len, batch, hidden
    n_in = 1 + 3 * n_layers + 4

    x_ref = refs[0]                                  # (T*B, V)   time-major rows t*B+b
    layer_refs = refs[1:1 + 3 * n_layers]            # per layer: wih_t, whh_t, b
    wfc_ref, bfc_ref, h0_ref, c0_ref = refs[1 + 3 * n_layers:n_in]
    out_ref, hn_ref, cn_ref = refs[n_in:n_in + 3]    # (B*T, Vp), (L,B,H), (L,B,H)
    pre_scr, y_prev_scr, y_last_scr = refs[n_in + 3:]
    #   pre_scr    : (T*B, 4H) hoisted input-projection gates (time-major)
    #   y_prev_scr : (T*B, H)  previous layer's outputs (time-major, feeds next layer)
    #   y_last_scr : (B*T, H)  last layer's outputs in batch-major order for the FC

    unroll = T <= 32

    for layer in range(n_layers):
        wih_ref = layer_refs[3 * layer + 0]          # (Din, 4H)
        whh_ref = layer_refs[3 * layer + 1]          # (H, 4H)
        b_ref = layer_refs[3 * layer + 2]            # (1, 4H)  == b_ih + b_hh
        is_last = (layer == n_layers - 1)

        x_flat = x_ref[...] if layer == 0 else y_prev_scr[...]

        # ---- Hoisted input projection + bias: one MXU-friendly matmul over
        #      all T*B rows (bias broadcast done once, outside the time loop).
        pre_scr[...] = (
            jnp.dot(x_flat, wih_ref[...], preferred_element_type=jnp.float32)
            + b_ref[...])

        whh = whh_ref[...]                           # resident; loaded once per layer

        def step(t, carry, *, _last=is_last):
            h, c = carry                             # (B, H) each, live in vregs
            row = pl.multiple_of(t * B, B)
            gates = (pre_scr[pl.ds(row, B), :]
                     + jnp.dot(h, whh, preferred_element_type=jnp.float32))
            # NOTE: with H=32 the i/f/g/o slices cut inside a 128-lane vreg;
            # acceptable at this size (elementwise path is not the bottleneck).
            i_g = jax.nn.sigmoid(gates[:, 0 * H:1 * H])
            f_g = jax.nn.sigmoid(gates[:, 1 * H:2 * H])
            g_g = jnp.tanh(gates[:, 2 * H:3 * H])
            o_g = jax.nn.sigmoid(gates[:, 3 * H:4 * H])
            c_new = f_g * c + i_g * g_g
            h_new = o_g * jnp.tanh(c_new)
            if _last:
                # Emit rows in batch-major order (b*T + t) so the FC output
                # matches PyTorch's out.contiguous().view(-1, n_hidden).
                for b in range(B):
                    y_last_scr[pl.ds(b * T + t, 1), :] = h_new[b:b + 1, :]
            else:
                y_prev_scr[pl.ds(row, B), :] = h_new
            return h_new, c_new

        h_fin, c_fin = jax.lax.fori_loop(
            0, T, step, (h0_ref[layer], c0_ref[layer]), unroll=unroll)

        # Final states written once per layer (not every timestep).
        hn_ref[layer] = h_fin
        cn_ref[layer] = c_fin

    # ---- Fused FC: (B*T, H) @ (H, Vp) + b, lane-dense (Vp multiple of 128).
    out_ref[...] = (
        jnp.dot(y_last_scr[...], wfc_ref[...], preferred_element_type=jnp.float32)
        + bfc_ref[...])


def _round_up(n, m):
    return ((n + m - 1) // m) * m


# ---------------------------------------------------------------------------
# CharRNN forward
# ---------------------------------------------------------------------------
def char_rnn_forward(params, x, hidden):
    """x: (B, T, V) float32 (batch_first).  hidden = (h0, c0), each (L, B, H).
    Returns (out (B*T, V), (h_n, c_n))."""
    h0, c0 = hidden
    B, T, V = x.shape
    L, _, H = h0.shape
    Vp = _round_up(V, 128)

    # Time-major flat input rows (t*B + b). Only tiny wrapper-side data
    # movement; LSTM activations and FC output stay inside the kernel.
    x2d = jnp.transpose(x, (1, 0, 2)).reshape(T * B, V)

    # Pad FC to a lane-dense (multiple-of-128) output width.
    wfc = jnp.pad(params["fc"]["w_t"], ((0, 0), (0, Vp - V)))
    bfc = jnp.pad(params["fc"]["b"], ((0, 0), (0, Vp - V)))

    lstm_args = []
    for p in params["lstm"]:
        lstm_args += [p["wih_t"], p["whh_t"], p["b"]]

    kernel = functools.partial(_char_rnn_fused_kernel, n_layers=L,
                               seq_len=T, batch=B, hidden=H)

    out_p, h_n, c_n = pl.pallas_call(
        kernel,
        out_shape=(jax.ShapeDtypeStruct((B * T, Vp), jnp.float32),
                   jax.ShapeDtypeStruct((L, B, H), jnp.float32),
                   jax.ShapeDtypeStruct((L, B, H), jnp.float32)),
        scratch_shapes=[pltpu.VMEM((T * B, 4 * H), jnp.float32),
                        pltpu.VMEM((T * B, H), jnp.float32),
                        pltpu.VMEM((B * T, H), jnp.float32)],
    )(x2d, *lstm_args, wfc, bfc, h0, c0)

    # TODO(synk): inter-layer & output Dropout are identity here (eval mode);
    # training-mode stochastic masking not implemented.
    return out_p[:, :V], (h_n, c_n)


# ---------------------------------------------------------------------------
# Pure-JAX reference (mirrors the PyTorch forward) for correctness checking.
# ---------------------------------------------------------------------------
def _reference_forward(params, x, hidden):
    h0, c0 = hidden
    B, T, _ = x.shape
    L = h0.shape[0]
    H = h0.shape[-1]
    hi = jax.lax.Precision.HIGHEST
    inp = x
    h_n, c_n = [], []
    for layer in range(L):
        p = params["lstm"][layer]
        h, c = h0[layer], c0[layer]
        ys = []
        for t in range(T):
            gates = (jnp.dot(inp[:, t, :], p["wih_t"], precision=hi)
                     + jnp.dot(h, p["whh_t"], precision=hi) + p["b"])
            i_g = jax.nn.sigmoid(gates[:, 0 * H:1 * H])
            f_g = jax.nn.sigmoid(gates[:, 1 * H:2 * H])
            g_g = jnp.tanh(gates[:, 2 * H:3 * H])
            o_g = jax.nn.sigmoid(gates[:, 3 * H:4 * H])
            c = f_g * c + i_g * g_g
            h = o_g * jnp.tanh(c)
            ys.append(h)
        inp = jnp.stack(ys, axis=1)          # (B, T, H)
        h_n.append(h)
        c_n.append(c)
    flat = inp.reshape(-1, H)                # batch-major rows b*T + t
    logits = jnp.dot(flat, params["fc"]["w_t"], precision=hi) + params["fc"]["b"]
    return logits, (jnp.stack(h_n, axis=0), jnp.stack(c_n, axis=0))


# ---------------------------------------------------------------------------
# Deterministic parameter init (PyTorch shapes; uniform(-1/sqrt(H), 1/sqrt(H)))
# ---------------------------------------------------------------------------
def init_params(key, vocab, n_hidden, n_layers):
    k = 1.0 / jnp.sqrt(jnp.float32(n_hidden))
    lstm_params = []
    for layer in range(n_layers):
        din = vocab if layer == 0 else n_hidden
        key, k1, k2, k3, k4 = jax.random.split(key, 5)
        w_ih = jax.random.uniform(k1, (4 * n_hidden, din), jnp.float32, -k, k)
        w_hh = jax.random.uniform(k2, (4 * n_hidden, n_hidden), jnp.float32, -k, k)
        b_ih = jax.random.uniform(k3, (4 * n_hidden,), jnp.float32, -k, k)
        b_hh = jax.random.uniform(k4, (4 * n_hidden,), jnp.float32, -k, k)
        lstm_params.append({
            "wih_t": w_ih.T,                          # (din, 4H)
            "whh_t": w_hh.T,                          # (H, 4H)
            "b": (b_ih + b_hh).reshape(1, -1),        # (1, 4H)
        })
    key, k5, k6 = jax.random.split(key, 3)
    kf = 1.0 / jnp.sqrt(jnp.float32(n_hidden))
    w_fc = jax.random.uniform(k5, (vocab, n_hidden), jnp.float32, -kf, kf)
    b_fc = jax.random.uniform(k6, (vocab,), jnp.float32, -kf, kf)
    fc_params = {"w_t": w_fc.T, "b": b_fc.reshape(1, -1)}
    return {"lstm": lstm_params, "fc": fc_params}


if __name__ == "__main__":
    VOCAB = 16      # len(tokens)
    HIDDEN = 32     # n_hidden
    LAYERS = 2      # n_layers
    BATCH = 2
    SEQ = 8

    root = jax.random.PRNGKey(0)
    kp, kx = jax.random.split(root)
    params = init_params(kp, VOCAB, HIDDEN, LAYERS)

    # One-hot encoded characters, batch_first (B, T, V).
    ids = jax.random.randint(kx, (BATCH, SEQ), 0, VOCAB)
    x = jax.nn.one_hot(ids, VOCAB, dtype=jnp.float32)

    # init_hidden(batch_size): zeros of shape (n_layers, B, n_hidden)
    h0 = jnp.zeros((LAYERS, BATCH, HIDDEN), jnp.float32)
    c0 = jnp.zeros((LAYERS, BATCH, HIDDEN), jnp.float32)

    out, (h_n, c_n) = jax.jit(char_rnn_forward)(params, x, (h0, c0))
    jax.block_until_ready((out, h_n, c_n))

    assert out.shape == (BATCH * SEQ, VOCAB)
    assert h_n.shape == (LAYERS, BATCH, HIDDEN)
    assert c_n.shape == (LAYERS, BATCH, HIDDEN)

    # Correctness vs. pure-JAX reference of the same module.
    ref_out, (ref_h, ref_c) = jax.jit(_reference_forward)(params, x, (h0, c0))
    assert bool(jnp.allclose(out, ref_out, rtol=1e-2, atol=1e-2))
    assert bool(jnp.allclose(h_n, ref_h, rtol=1e-2, atol=1e-2))
    assert bool(jnp.allclose(c_n, ref_c, rtol=1e-2, atol=1e-2))

    print("KERNEL_OK")
</pallas_src>

<mosaic_0001>
module attributes {stable_mosaic.version = 11 : i64} {
  func.func @_char_rnn_fused_kernel(%arg0: memref<16x16xf32, #tpu.memory_space<vmem>>, %arg1: memref<16x128xf32, #tpu.memory_space<vmem>>, %arg2: memref<32x128xf32, #tpu.memory_space<vmem>>, %arg3: memref<1x128xf32, #tpu.memory_space<vmem>>, %arg4: memref<32x128xf32, #tpu.memory_space<vmem>>, %arg5: memref<32x128xf32, #tpu.memory_space<vmem>>, %arg6: memref<1x128xf32, #tpu.memory_space<vmem>>, %arg7: memref<32x128xf32, #tpu.memory_space<vmem>>, %arg8: memref<1x128xf32, #tpu.memory_space<vmem>>, %arg9: memref<2x2x32xf32, #tpu.memory_space<vmem>>, %arg10: memref<2x2x32xf32, #tpu.memory_space<vmem>>, %arg11: memref<16x128xf32, #tpu.memory_space<vmem>>, %arg12: memref<2x2x32xf32, #tpu.memory_space<vmem>>, %arg13: memref<2x2x32xf32, #tpu.memory_space<vmem>>, %arg14: memref<16x128xf32, #tpu.memory_space<vmem>>, %arg15: memref<16x32xf32, #tpu.memory_space<vmem>>, %arg16: memref<16x32xf32, #tpu.memory_space<vmem>>) attributes {dimension_semantics = [], scalar_prefetch = 0 : i64, scratch_operands = 3 : i64, tpu.core_type = #tpu.core_type<tc>} {
    %c0 = arith.constant 0 : index
    %c0_0 = arith.constant 0 : index
    %0 = vector.load %arg0[%c0, %c0_0] : memref<16x16xf32, #tpu.memory_space<vmem>>, vector<16x16xf32>
    %c0_1 = arith.constant 0 : index
    %c0_2 = arith.constant 0 : index
    %1 = vector.load %arg1[%c0_1, %c0_2] : memref<16x128xf32, #tpu.memory_space<vmem>>, vector<16x128xf32>
    %cst = arith.constant dense<0.000000e+00> : vector<16x128xf32>
    %2 = tpu.matmul %0, %1, %cst {dimension_numbers = #tpu.dot_dimension_numbers<[1], [0], [0], [1], [0, 0, 1, 1], [], []>} : vector<16x16xf32>, vector<16x128xf32>, vector<16x128xf32> -> vector<16x128xf32>
    %c0_3 = arith.constant 0 : index
    %c0_4 = arith.constant 0 : index
    %3 = vector.load %arg3[%c0_3, %c0_4] : memref<1x128xf32, #tpu.memory_space<vmem>>, vector<1x128xf32>
    %4 = vector.broadcast %3 : vector<1x128xf32> to vector<16x128xf32>
    %5 = arith.addf %2, %4 : vector<16x128xf32>
    %c0_5 = arith.constant 0 : index
    %c0_6 = arith.constant 0 : index
    %6 = vector.load %arg14[%c0_5, %c0_6] : memref<16x128xf32, #tpu.memory_space<vmem>>, vector<16x128xf32>
    tpu.vector_store %arg14[%c0_5, %c0_6], %5 {strides = array<i32>} : memref<16x128xf32, #tpu.memory_space<vmem>>, vector<16x128xf32>,
    %c0_7 = arith.constant 0 : index
    %c0_8 = arith.constant 0 : index
    %7 = vector.load %arg2[%c0_7, %c0_8] : memref<32x128xf32, #tpu.memory_space<vmem>>, vector<32x128xf32>
    %c0_9 = arith.constant 0 : index
    %c0_10 = arith.constant 0 : index
    %c0_11 = arith.constant 0 : index
    %8 = vector.load %arg9[%c0_9, %c0_10, %c0_11] : memref<2x2x32xf32, #tpu.memory_space<vmem>>, vector<1x2x32xf32>
    %9 = vector.shape_cast %8 : vector<1x2x32xf32> to vector<2x32xf32>
    %c0_12 = arith.constant 0 : index
    %c0_13 = arith.constant 0 : index
    %c0_14 = arith.constant 0 : index
    %10 = vector.load %arg10[%c0_12, %c0_13, %c0_14] : memref<2x2x32xf32, #tpu.memory_space<vmem>>, vector<1x2x32xf32>
    %11 = vector.shape_cast %10 : vector<1x2x32xf32> to vector<2x32xf32>
    %c0_i32 = arith.constant 0 : i32
    %c2_i32 = arith.constant 2 : i32
    %12 = arith.muli %c0_i32, %c2_i32 : i32
    %13 = tpu.assume_multiple %12, 2 : i32
    %14 = arith.index_cast %13 : i32 to index
    %c0_15 = arith.constant 0 : index
    %15 = vector.load %arg14[%14, %c0_15] : memref<16x128xf32, #tpu.memory_space<vmem>>, vector<2x128xf32>
    %cst_16 = arith.constant dense<0.000000e+00> : vector<2x128xf32>
    %16 = tpu.matmul %9, %7, %cst_16 {dimension_numbers = #tpu.dot_dimension_numbers<[1], [0], [0], [1], [0, 0, 1, 1], [], []>} : vector<2x32xf32>, vector<32x128xf32>, vector<2x128xf32> -> vector<2x128xf32>
    %17 = arith.addf %15, %16 : vector<2x128xf32>
    %18 = vector.extract_strided_slice %17 {offsets = [0, 0], sizes = [2, 32], strides = [1, 1]} : vector<2x128xf32> to vector<2x32xf32>
    %19 = arith.negf %18 : vector<2x32xf32>
    %20 = math.exp %19 : vector<2x32xf32>
    %cst_17 = arith.constant 1.000000e+00 : f32
    %21 = vector.broadcast %cst_17 : f32 to vector<2x32xf32>
    %22 = arith.addf %21, %20 : vector<2x32xf32>
    %23 = arith.divf %21, %22 : vector<2x32xf32>
    %24 = vector.extract_strided_slice %17 {offsets = [0, 32], sizes = [2, 32], strides = [1, 1]} : vector<2x128xf32> to vector<2x32xf32>
    %25 = arith.negf %24 : vector<2x32xf32>
    %26 = math.exp %25 : vector<2x32xf32>
    %cst_18 = arith.constant 1.000000e+00 : f32
    %27 = vector.broadcast %cst_18 : f32 to vector<2x32xf32>
    %28 = arith.addf %27, %26 : vector<2x32xf32>
    %29 = arith.divf %27, %28 : vector<2x32xf32>
    %30 = vector.extract_strided_slice %17 {offsets = [0, 64], sizes = [2, 32], strides = [1, 1]} : vector<2x128xf32> to vector<2x32xf32>
    %31 = math.tanh %30 : vector<2x32xf32>
    %32 = vector.extract_strided_slice %17 {offsets = [0, 96], sizes = [2, 32], strides = [1, 1]} : vector<2x128xf32> to vector<2x32xf32>
    %33 = arith.negf %32 : vector<2x32xf32>
    %34 = math.exp %33 : vector<2x32xf32>
    %cst_19 = arith.constant 1.000000e+00 : f32
    %35 = vector.broadcast %cst_19 : f32 to vector<2x32xf32>
    %36 = arith.addf %35, %34 : vector<2x32xf32>
    %37 = arith.divf %35, %36 : vector<2x32xf32>
    %38 = arith.mulf %29, %11 : vector<2x32xf32>
    %39 = arith.mulf %23, %31 : vector<2x32xf32>
    %40 = arith.addf %38, %39 : vector<2x32xf32>
    %41 = math.tanh %40 : vector<2x32xf32>
    %42 = arith.mulf %37, %41 : vector<2x32xf32>
    %43 = arith.index_cast %13 : i32 to index
    %c0_20 = arith.constant 0 : index
    %44 = vector.load %arg15[%43, %c0_20] : memref<16x32xf32, #tpu.memory_space<vmem>>, vector<2x32xf32>
    tpu.vector_store %arg15[%43, %c0_20], %42 {strides = array<i32>} : memref<16x32xf32, #tpu.memory_space<vmem>>, vector<2x32xf32>,
    %c1_i32 = arith.constant 1 : i32
    %c2_i32_21 = arith.constant 2 : i32
    %45 = arith.muli %c1_i32, %c2_i32_21 : i32
    %46 = tpu.assume_multiple %45, 2 : i32
    %47 = arith.index_cast %46 : i32 to index
    %c0_22 = arith.constant 0 : index
    %48 = vector.load %arg14[%47, %c0_22] : memref<16x128xf32, #tpu.memory_space<vmem>>, vector<2x128xf32>
    %cst_23 = arith.constant dense<0.000000e+00> : vector<2x128xf32>
    %49 = tpu.matmul %42, %7, %cst_23 {dimension_numbers = #tpu.dot_dimension_numbers<[1], [0], [0], [1], [0, 0, 1, 1], [], []>} : vector<2x32xf32>, vector<32x128xf32>, vector<2x128xf32> -> vector<2x128xf32>
    %50 = arith.addf %48, %49 : vector<2x128xf32>
    %51 = vector.extract_strided_slice %50 {offsets = [0, 0], sizes = [2, 32], strides = [1, 1]} : vector<2x128xf32> to vector<2x32xf32>
    %52 = arith.negf %51 : vector<2x32xf32>
    %53 = math.exp %52 : vector<2x32xf32>
    %cst_24 = arith.constant 1.000000e+00 : f32
    %54 = vector.broadcast %cst_24 : f32 to vector<2x32xf32>
    %55 = arith.addf %54, %53 : vector<2x32xf32>
    %56 = arith.divf %54, %55 : vector<2x32xf32>
    %57 = vector.extract_strided_slice %50 {offsets = [0, 32], sizes = [2, 32], strides = [1, 1]} : vector<2x128xf32> to vector<2x32xf32>
    %58 = arith.negf %57 : vector<2x32xf32>
    %59 = math.exp %58 : vector<2x32xf32>
    %cst_25 = arith.constant 1.000000e+00 : f32
    %60 = vector.broadcast %cst_25 : f32 to vector<2x32xf32>
    %61 = arith.addf %60, %59 : vector<2x32xf32>
    %62 = arith.divf %60, %61 : vector<2x32xf32>
    %63 = vector.extract_strided_slice %50 {offsets = [0, 64], sizes = [2, 32], strides = [1, 1]} : vector<2x128xf32> to vector<2x32xf32>
    %64 = math.tanh %63 : vector<2x32xf32>
    %65 = vector.extract_strided_slice %50 {offsets = [0, 96], sizes = [2, 32], strides = [1, 1]} : vector<2x128xf32> to vector<2x32xf32>
    %66 = arith.negf %65 : vector<2x32xf32>
    %67 = math.exp %66 : vector<2x32xf32>
    %cst_26 = arith.constant 1.000000e+00 : f32
    %68 = vector.broadcast %cst_26 : f32 to vector<2x32xf32>
    %69 = arith.addf %68, %67 : vector<2x32xf32>
    %70 = arith.divf %68, %69 : vector<2x32xf32>
    %71 = arith.mulf %62, %40 : vector<2x32xf32>
    %72 = arith.mulf %56, %64 : vector<2x32xf32>
    %73 = arith.addf %71, %72 : vector<2x32xf32>
    %74 = math.tanh %73 : vector<2x32xf32>
    %75 = arith.mulf %70, %74 : vector<2x32xf32>
    %76 = arith.index_cast %46 : i32 to index
    %c0_27 = arith.constant 0 : index
    %77 = vector.load %arg15[%76, %c0_27] : memref<16x32xf32, #tpu.memory_space<vmem>>, vector<2x32xf32>
    tpu.vector_store %arg15[%76, %c0_27], %75 {strides = array<i32>} : memref<16x32xf32, #tpu.memory_space<vmem>>, vector<2x32xf32>,
    %c2_i32_28 = arith.constant 2 : i32
    %c2_i32_29 = arith.constant 2 : i32
    %78 = arith.muli %c2_i32_28, %c2_i32_29 : i32
    %79 = tpu.assume_multiple %78, 2 : i32
    %80 = arith.index_cast %79 : i32 to index
    %c0_30 = arith.constant 0 : index
    %81 = vector.load %arg14[%80, %c0_30] : memref<16x128xf32, #tpu.memory_space<vmem>>, vector<2x128xf32>
    %cst_31 = arith.constant dense<0.000000e+00> : vector<2x128xf32>
    %82 = tpu.matmul %75, %7, %cst_31 {dimension_numbers = #tpu.dot_dimension_numbers<[1], [0], [0], [1], [0, 0, 1, 1], [], []>} : vector<2x32xf32>, vector<32x128xf32>, vector<2x128xf32> -> vector<2x128xf32>
    %83 = arith.addf %81, %82 : vector<2x128xf32>
    %84 = vector.extract_strided_slice %83 {offsets = [0, 0], sizes = [2, 32], strides = [1, 1]} : vector<2x128xf32> to vector<2x32xf32>
    %85 = arith.negf %84 : vector<2x32xf32>
    %86 = math.exp %85 : vector<2x32xf32>
    %cst_32 = arith.constant 1.000000e+00 : f32
    %87 = vector.broadcast %cst_32 : f32 to vector<2x32xf32>
    %88 = arith.addf %87, %86 : vector<2x32xf32>
    %89 = arith.divf %87, %88 : vector<2x32xf32>
    %90 = vector.extract_strided_slice %83 {offsets = [0, 32], sizes = [2, 32], strides = [1, 1]} : vector<2x128xf32> to vector<2x32xf32>
    %91 = arith.negf %90 : vector<2x32xf32>
    %92 = math.exp %91 : vector<2x32xf32>
    %cst_33 = arith.constant 1.000000e+00 : f32
    %93 = vector.broadcast %cst_33 : f32 to vector<2x32xf32>
    %94 = arith.addf %93, %92 : vector<2x32xf32>
    %95 = arith.divf %93, %94 : vector<2x32xf32>
    %96 = vector.extract_strided_slice %83 {offsets = [0, 64], sizes = [2, 32], strides = [1, 1]} : vector<2x128xf32> to vector<2x32xf32>
    %97 = math.tanh %96 : vector<2x32xf32>
    %98 = vector.extract_strided_slice %83 {offsets = [0, 96], sizes = [2, 32], strides = [1, 1]} : vector<2x128xf32> to vector<2x32xf32>
    %99 = arith.negf %98 : vector<2x32xf32>
    %100 = math.exp %99 : vector<2x32xf32>
    %cst_34 = arith.constant 1.000000e+00 : f32
    %101 = vector.broadcast %cst_34 : f32 to vector<2x32xf32>
    %102 = arith.addf %101, %100 : vector<2x32xf32>
    %103 = arith.divf %101, %102 : vector<2x32xf32>
    %104 = arith.mulf %95, %73 : vector<2x32xf32>
    %105 = arith.mulf %89, %97 : vector<2x32xf32>
    %106 = arith.addf %104, %105 : vector<2x32xf32>
    %107 = math.tanh %106 : vector<2x32xf32>
    %108 = arith.mulf %103, %107 : vector<2x32xf32>
    %109 = arith.index_cast %79 : i32 to index
    %c0_35 = arith.constant 0 : index
    %110 = vector.load %arg15[%109, %c0_35] : memref<16x32xf32, #tpu.memory_space<vmem>>, vector<2x32xf32>
    tpu.vector_store %arg15[%109, %c0_35], %108 {strides = array<i32>} : memref<16x32xf32, #tpu.memory_space<vmem>>, vector<2x32xf32>,
    %c3_i32 = arith.constant 3 : i32
    %c2_i32_36 = arith.constant 2 : i32
    %111 = arith.muli %c3_i32, %c2_i32_36 : i32
    %112 = tpu.assume_multiple %111, 2 : i32
    %113 = arith.index_cast %112 : i32 to index
    %c0_37 = arith.constant 0 : index
    %114 = vector.load %arg14[%113, %c0_37] : memref<16x128xf32, #tpu.memory_space<vmem>>, vector<2x128xf32>
    %cst_38 = arith.constant dense<0.000000e+00> : vector<2x128xf32>
    %115 = tpu.matmul %108, %7, %cst_38 {dimension_numbers = #tpu.dot_dimension_numbers<[1], [0], [0], [1], [0, 0, 1, 1], [], []>} : vector<2x32xf32>, vector<32x128xf32>, vector<2x128xf32> -> vector<2x128xf32>
    %116 = arith.addf %114, %115 : vector<2x128xf32>
    %117 = vector.extract_strided_slice %116 {offsets = [0, 0], sizes = [2, 32], strides = [1, 1]} : vector<2x128xf32> to vector<2x32xf32>
    %118 = arith.negf %117 : vector<2x32xf32>
    %119 = math.exp %118 : vector<2x32xf32>
    %cst_39 = arith.constant 1.000000e+00 : f32
    %120 = vector.broadcast %cst_39 : f32 to vector<2x32xf32>
    %121 = arith.addf %120, %119 : vector<2x32xf32>
    %122 = arith.divf %120, %121 : vector<2x32xf32>
    %123 = vector.extract_strided_slice %116 {offsets = [0, 32], sizes = [2, 32], strides = [1, 1]} : vector<2x128xf32> to vector<2x32xf32>
    %124 = arith.negf %123 : vector<2x32xf32>
    %125 = math.exp %124 : vector<2x32xf32>
    %cst_40 = arith.constant 1.000000e+00 : f32
    %126 = vector.broadcast %cst_40 : f32 to vector<2x32xf32>
    %127 = arith.addf %126, %125 : vector<2x32xf32>
    %128 = arith.divf %126, %127 : vector<2x32xf32>
    %129 = vector.extract_strided_slice %116 {offsets = [0, 64], sizes = [2, 32], strides = [1, 1]} : vector<2x128xf32> to vector<2x32xf32>
    %130 = math.tanh %129 : vector<2x32xf32>
    %131 = vector.extract_strided_slice %116 {offsets = [0, 96], sizes = [2, 32], strides = [1, 1]} : vector<2x128xf32> to vector<2x32xf32>
    %132 = arith.negf %131 : vector<2x32xf32>
    %133 = math.exp %132 : vector<2x32xf32>
    %cst_41 = arith.constant 1.000000e+00 : f32
    %134 = vector.broadcast %cst_41 : f32 to vector<2x32xf32>
    %135 = arith.addf %134, %133 : vector<2x32xf32>
    %136 = arith.divf %134, %135 : vector<2x32xf32>
    %137 = arith.mulf %128, %106 : vector<2x32xf32>
    %138 = arith.mulf %122, %130 : vector<2x32xf32>
    %139 = arith.addf %137, %138 : vector<2x32xf32>
    %140 = math.tanh %139 : vector<2x32xf32>
    %141 = arith.mulf %136, %140 : vector<2x32xf32>
    %142 = arith.index_cast %112 : i32 to index
    %c0_42 = arith.constant 0 : index
    %143 = vector.load %arg15[%142, %c0_42] : memref<16x32xf32, #tpu.memory_space<vmem>>, vector<2x32xf32>
    tpu.vector_store %arg15[%142, %c0_42], %141 {strides = array<i32>} : memref<16x32xf32, #tpu.memory_space<vmem>>, vector<2x32xf32>,
    %c4_i32 = arith.constant 4 : i32
    %c2_i32_43 = arith.constant 2 : i32
    %144 = arith.muli %c4_i32, %c2_i32_43 : i32
    %145 = tpu.assume_multiple %144, 2 : i32
    %146 = arith.index_cast %145 : i32 to index
    %c0_44 = arith.constant 0 : index
    %147 = vector.load %arg14[%146, %c0_44] : memref<16x128xf32, #tpu.memory_space<vmem>>, vector<2x128xf32>
    %cst_45 = arith.constant dense<0.000000e+00> : vector<2x128xf32>
    %148 = tpu.matmul %141, %7, %cst_45 {dimension_numbers = #tpu.dot_dimension_numbers<[1], [0], [0], [1], [0, 0, 1, 1], [], []>} : vector<2x32xf32>, vector<32x128xf32>, vector<2x128xf32> -> vector<2x128xf32>
    %149 = arith.addf %147, %148 : vector<2x128xf32>
    %150 = vector.extract_strided_slice %149 {offsets = [0, 0], sizes = [2, 32], strides = [1, 1]} : vector<2x128xf32> to vector<2x32xf32>
    %151 = arith.negf %150 : vector<2x32xf32>
    %152 = math.exp %151 : vector<2x32xf32>
    %cst_46 = arith.constant 1.000000e+00 : f32
    %153 = vector.broadcast %cst_46 : f32 to vector<2x32xf32>
    %154 = arith.addf %153, %152 : vector<2x32xf32>
    %155 = arith.divf %153, %154 : vector<2x32xf32>
    %156 = vector.extract_strided_slice %149 {offsets = [0, 32], sizes = [2, 32], strides = [1, 1]} : vector<2x128xf32> to vector<2x32xf32>
    %157 = arith.negf %156 : vector<2x32xf32>
    %158 = math.exp %157 : vector<2x32xf32>
    %cst_47 = arith.constant 1.000000e+00 : f32
    %159 = vector.broadcast %cst_47 : f32 to vector<2x32xf32>
    %160 = arith.addf %159, %158 : vector<2x32xf32>
    %161 = arith.divf %159, %160 : vector<2x32xf32>
    %162 = vector.extract_strided_slice %149 {offsets = [0, 64], sizes = [2, 32], strides = [1, 1]} : vector<2x128xf32> to vector<2x32xf32>
    %163 = math.tanh %162 : vector<2x32xf32>
    %164 = vector.extract_strided_slice %149 {offsets = [0, 96], sizes = [2, 32], strides = [1, 1]} : vector<2x128xf32> to vector<2x32xf32>
    %165 = arith.negf %164 : vector<2x32xf32>
    %166 = math.exp %165 : vector<2x32xf32>
    %cst_48 = arith.constant 1.000000e+00 : f32
    %167 = vector.broadcast %cst_48 : f32 to vector<2x32xf32>
    %168 = arith.addf %167, %166 : vector<2x32xf32>
    %169 = arith.divf %167, %168 : vector<2x32xf32>
    %170 = arith.mulf %161, %139 : vector<2x32xf32>
    %171 = arith.mulf %155, %163 : vector<2x32xf32>
    %172 = arith.addf %170, %171 : vector<2x32xf32>
    %173 = math.tanh %172 : vector<2x32xf32>
    %174 = arith.mulf %169, %173 : vector<2x32xf32>
    %175 = arith.index_cast %145 : i32 to index
    %c0_49 = arith.constant 0 : index
    %176 = vector.load %arg15[%175, %c0_49] : memref<16x32xf32, #tpu.memory_space<vmem>>, vector<2x32xf32>
    tpu.vector_store %arg15[%175, %c0_49], %174 {strides = array<i32>} : memref<16x32xf32, #tpu.memory_space<vmem>>, vector<2x32xf32>,
    %c5_i32 = arith.constant 5 : i32
    %c2_i32_50 = arith.constant 2 : i32
    %177 = arith.muli %c5_i32, %c2_i32_50 : i32
    %178 = tpu.assume_multiple %177, 2 : i32
    %179 = arith.index_cast %178 : i32 to index
    %c0_51 = arith.constant 0 : index
    %180 = vector.load %arg14[%179, %c0_51] : memref<16x128xf32, #tpu.memory_space<vmem>>, vector<2x128xf32>
    %cst_52 = arith.constant dense<0.000000e+00> : vector<2x128xf32>
    %181 = tpu.matmul %174, %7, %cst_52 {dimension_numbers = #tpu.dot_dimension_numbers<[1], [0], [0], [1], [0, 0, 1, 1], [], []>} : vector<2x32xf32>, vector<32x128xf32>, vector<2x128xf32> -> vector<2x128xf32>
    %182 = arith.addf %180, %181 : vector<2x128xf32>
    %183 = vector.extract_strided_slice %182 {offsets = [0, 0], sizes = [2, 32], strides = [1, 1]} : vector<2x128xf32> to vector<2x32xf32>
    %184 = arith.negf %183 : vector<2x32xf32>
    %185 = math.exp %184 : vector<2x32xf32>
    %cst_53 = arith.constant 1.000000e+00 : f32
    %186 = vector.broadcast %cst_53 : f32 to vector<2x32xf32>
    %187 = arith.addf %186, %185 : vector<2x32xf32>
    %188 = arith.divf %186, %187 : vector<2x32xf32>
    %189 = vector.extract_strided_slice %182 {offsets = [0, 32], sizes = [2, 32], strides = [1, 1]} : vector<2x128xf32> to vector<2x32xf32>
    %190 = arith.negf %189 : vector<2x32xf32>
    %191 = math.exp %190 : vector<2x32xf32>
    %cst_54 = arith.constant 1.000000e+00 : f32
    %192 = vector.broadcast %cst_54 : f32 to vector<2x32xf32>
    %193 = arith.addf %192, %191 : vector<2x32xf32>
    %194 = arith.divf %192, %193 : vector<2x32xf32>
    %195 = vector.extract_strided_slice %182 {offsets = [0, 64], sizes = [2, 32], strides = [1, 1]} : vector<2x128xf32> to vector<2x32xf32>
    %196 = math.tanh %195 : vector<2x32xf32>
    %197 = vector.extract_strided_slice %182 {offsets = [0, 96], sizes = [2, 32], strides = [1, 1]} : vector<2x128xf32> to vector<2x32xf32>
    %198 = arith.negf %197 : vector<2x32xf32>
    %199 = math.exp %198 : vector<2x32xf32>
    %cst_55 = arith.constant 1.000000e+00 : f32
    %200 = vector.broadcast %cst_55 : f32 to vector<2x32xf32>
    %201 = arith.addf %200, %199 : vector<2x32xf32>
    %202 = arith.divf %200, %201 : vector<2x32xf32>
    %203 = arith.mulf %194, %172 : vector<2x32xf32>
    %204 = arith.mulf %188, %196 : vector<2x32xf32>
    %205 = arith.addf %203, %204 : vector<2x32xf32>
    %206 = math.tanh %205 : vector<2x32xf32>
    %207 = arith.mulf %202, %206 : vector<2x32xf32>
    %208 = arith.index_cast %178 : i32 to index
    %c0_56 = arith.constant 0 : index
    %209 = vector.load %arg15[%208, %c0_56] : memref<16x32xf32, #tpu.memory_space<vmem>>, vector<2x32xf32>
    tpu.vector_store %arg15[%208, %c0_56], %207 {strides = array<i32>} : memref<16x32xf32, #tpu.memory_space<vmem>>, vector<2x32xf32>,
    %c6_i32 = arith.constant 6 : i32
    %c2_i32_57 = arith.constant 2 : i32
    %210 = arith.muli %c6_i32, %c2_i32_57 : i32
    %211 = tpu.assume_multiple %210, 2 : i32
    %212 = arith.index_cast %211 : i32 to index
    %c0_58 = arith.constant 0 : index
    %213 = vector.load %arg14[%212, %c0_58] : memref<16x128xf32, #tpu.memory_space<vmem>>, vector<2x128xf32>
    %cst_59 = arith.constant dense<0.000000e+00> : vector<2x128xf32>
    %214 = tpu.matmul %207, %7, %cst_59 {dimension_numbers = #tpu.dot_dimension_numbers<[1], [0], [0], [1], [0, 0, 1, 1], [], []>} : vector<2x32xf32>, vector<32x128xf32>, vector<2x128xf32> -> vector<2x128xf32>
    %215 = arith.addf %213, %214 : vector<2x128xf32>
    %216 = vector.extract_strided_slice %215 {offsets = [0, 0], sizes = [2, 32], strides = [1, 1]} : vector<2x128xf32> to vector<2x32xf32>
    %217 = arith.negf %216 : vector<2x32xf32>
    %218 = math.exp %217 : vector<2x32xf32>
    %cst_60 = arith.constant 1.000000e+00 : f32
    %219 = vector.broadcast %cst_60 : f32 to vector<2x32xf32>
    %220 = arith.addf %219, %218 : vector<2x32xf32>
    %221 = arith.divf %219, %220 : vector<2x32xf32>
    %222 = vector.extract_strided_slice %215 {offsets = [0, 32], sizes = [2, 32], strides = [1, 1]} : vector<2x128xf32> to vector<2x32xf32>
    %223 = arith.negf %222 : vector<2x32xf32>
    %224 = math.exp %223 : vector<2x32xf32>
    %cst_61 = arith.constant 1.000000e+00 : f32
    %225 = vector.broadcast %cst_61 : f32 to vector<2x32xf32>
    %226 = arith.addf %225, %224 : vector<2x32xf32>
    %227 = arith.divf %225, %226 : vector<2x32xf32>
    %228 = vector.extract_strided_slice %215 {offsets = [0, 64], sizes = [2, 32], strides = [1, 1]} : vector<2x128xf32> to vector<2x32xf32>
    %229 = math.tanh %228 : vector<2x32xf32>
    %230 = vector.extract_strided_slice %215 {offsets = [0, 96], sizes = [2, 32], strides = [1, 1]} : vector<2x128xf32> to vector<2x32xf32>
    %231 = arith.negf %230 : vector<2x32xf32>
    %232 = math.exp %231 : vector<2x32xf32>
    %cst_62 = arith.constant 1.000000e+00 : f32
    %233 = vector.broadcast %cst_62 : f32 to vector<2x32xf32>
    %234 = arith.addf %233, %232 : vector<2x32xf32>
    %235 = arith.divf %233, %234 : vector<2x32xf32>
    %236 = arith.mulf %227, %205 : vector<2x32xf32>
    %237 = arith.mulf %221, %229 : vector<2x32xf32>
    %238 = arith.addf %236, %237 : vector<2x32xf32>
    %239 = math.tanh %238 : vector<2x32xf32>
    %240 = arith.mulf %235, %239 : vector<2x32xf32>
    %241 = arith.index_cast %211 : i32 to index
    %c0_63 = arith.constant 0 : index
    %242 = vector.load %arg15[%241, %c0_63] : memref<16x32xf32, #tpu.memory_space<vmem>>, vector<2x32xf32>
    tpu.vector_store %arg15[%241, %c0_63], %240 {strides = array<i32>} : memref<16x32xf32, #tpu.memory_space<vmem>>, vector<2x32xf32>,
    %c7_i32 = arith.constant 7 : i32
    %c2_i32_64 = arith.constant 2 : i32
    %243 = arith.muli %c7_i32, %c2_i32_64 : i32
    %244 = tpu.assume_multiple %243, 2 : i32
    %245 = arith.index_cast %244 : i32 to index
    %c0_65 = arith.constant 0 : index
    %246 = vector.load %arg14[%245, %c0_65] : memref<16x128xf32, #tpu.memory_space<vmem>>, vector<2x128xf32>
    %cst_66 = arith.constant dense<0.000000e+00> : vector<2x128xf32>
    %247 = tpu.matmul %240, %7, %cst_66 {dimension_numbers = #tpu.dot_dimension_numbers<[1], [0], [0], [1], [0, 0, 1, 1], [], []>} : vector<2x32xf32>, vector<32x128xf32>, vector<2x128xf32> -> vector<2x128xf32>
    %248 = arith.addf %246, %247 : vector<2x128xf32>
    %249 = vector.extract_strided_slice %248 {offsets = [0, 0], sizes = [2, 32], strides = [1, 1]} : vector<2x128xf32> to vector<2x32xf32>
    %250 = arith.negf %249 : vector<2x32xf32>
    %251 = math.exp %250 : vector<2x32xf32>
    %cst_67 = arith.constant 1.000000e+00 : f32
    %252 = vector.broadcast %cst_67 : f32 to vector<2x32xf32>
    %253 = arith.addf %252, %251 : vector<2x32xf32>
    %254 = arith.divf %252, %253 : vector<2x32xf32>
    %255 = vector.extract_strided_slice %248 {offsets = [0, 32], sizes = [2, 32], strides = [1, 1]} : vector<2x128xf32> to vector<2x32xf32>
    %256 = arith.negf %255 : vector<2x32xf32>
    %257 = math.exp %256 : vector<2x32xf32>
    %cst_68 = arith.constant 1.000000e+00 : f32
    %258 = vector.broadcast %cst_68 : f32 to vector<2x32xf32>
    %259 = arith.addf %258, %257 : vector<2x32xf32>
    %260 = arith.divf %258, %259 : vector<2x32xf32>
    %261 = vector.extract_strided_slice %248 {offsets = [0, 64], sizes = [2, 32], strides = [1, 1]} : vector<2x128xf32> to vector<2x32xf32>
    %262 = math.tanh %261 : vector<2x32xf32>
    %263 = vector.extract_strided_slice %248 {offsets = [0, 96], sizes = [2, 32], strides = [1, 1]} : vector<2x128xf32> to vector<2x32xf32>
    %264 = arith.negf %263 : vector<2x32xf32>
    %265 = math.exp %264 : vector<2x32xf32>
    %cst_69 = arith.constant 1.000000e+00 : f32
    %266 = vector.broadcast %cst_69 : f32 to vector<2x32xf32>
    %267 = arith.addf %266, %265 : vector<2x32xf32>
    %268 = arith.divf %266, %267 : vector<2x32xf32>
    %269 = arith.mulf %260, %238 : vector<2x32xf32>
    %270 = arith.mulf %254, %262 : vector<2x32xf32>
    %271 = arith.addf %269, %270 : vector<2x32xf32>
    %272 = math.tanh %271 : vector<2x32xf32>
    %273 = arith.mulf %268, %272 : vector<2x32xf32>
    %274 = arith.index_cast %244 : i32 to index
    %c0_70 = arith.constant 0 : index
    %275 = vector.load %arg15[%274, %c0_70] : memref<16x32xf32, #tpu.memory_space<vmem>>, vector<2x32xf32>
    tpu.vector_store %arg15[%274, %c0_70], %273 {strides = array<i32>} : memref<16x32xf32, #tpu.memory_space<vmem>>, vector<2x32xf32>,
    %c8_i32 = arith.constant 8 : i32
    %c0_71 = arith.constant 0 : index
    %c0_72 = arith.constant 0 : index
    %c0_73 = arith.constant 0 : index
    %276 = vector.load %arg12[%c0_71, %c0_72, %c0_73] : memref<2x2x32xf32, #tpu.memory_space<vmem>>, vector<1x2x32xf32>
    %277 = vector.shape_cast %276 : vector<1x2x32xf32> to vector<2x32xf32>
    %278 = vector.shape_cast %273 : vector<2x32xf32> to vector<1x2x32xf32>
    tpu.vector_store %arg12[%c0_71, %c0_72, %c0_73], %278 {strides = array<i32>} : memref<2x2x32xf32, #tpu.memory_space<vmem>>, vector<1x2x32xf32>,
    %c0_74 = arith.constant 0 : index
    %c0_75 = arith.constant 0 : index
    %c0_76 = arith.constant 0 : index
    %279 = vector.load %arg13[%c0_74, %c0_75, %c0_76] : memref<2x2x32xf32, #tpu.memory_space<vmem>>, vector<1x2x32xf32>
    %280 = vector.shape_cast %279 : vector<1x2x32xf32> to vector<2x32xf32>
    %281 = vector.shape_cast %271 : vector<2x32xf32> to vector<1x2x32xf32>
    tpu.vector_store %arg13[%c0_74, %c0_75, %c0_76], %281 {strides = array<i32>} : memref<2x2x32xf32, #tpu.memory_space<vmem>>, vector<1x2x32xf32>,
    %c0_77 = arith.constant 0 : index
    %c0_78 = arith.constant 0 : index
    %282 = vector.load %arg15[%c0_77, %c0_78] : memref<16x32xf32, #tpu.memory_space<vmem>>, vector<16x32xf32>
    %c0_79 = arith.constant 0 : index
    %c0_80 = arith.constant 0 : index
    %283 = vector.load %arg4[%c0_79, %c0_80] : memref<32x128xf32, #tpu.memory_space<vmem>>, vector<32x128xf32>
    %cst_81 = arith.constant dense<0.000000e+00> : vector<16x128xf32>
    %284 = tpu.matmul %282, %283, %cst_81 {dimension_numbers = #tpu.dot_dimension_numbers<[1], [0], [0], [1], [0, 0, 1, 1], [], []>} : vector<16x32xf32>, vector<32x128xf32>, vector<16x128xf32> -> vector<16x128xf32>
    %c0_82 = arith.constant 0 : index
    %c0_83 = arith.constant 0 : index
    %285 = vector.load %arg6[%c0_82, %c0_83] : memref<1x128xf32, #tpu.memory_space<vmem>>, vector<1x128xf32>
    %286 = vector.broadcast %285 : vector<1x128xf32> to vector<16x128xf32>
    %287 = arith.addf %284, %286 : vector<16x128xf32>
    %c0_84 = arith.constant 0 : index
    %c0_85 = arith.constant 0 : index
    %288 = vector.load %arg14[%c0_84, %c0_85] : memref<16x128xf32, #tpu.memory_space<vmem>>, vector<16x128xf32>
    tpu.vector_store %arg14[%c0_84, %c0_85], %287 {strides = array<i32>} : memref<16x128xf32, #tpu.memory_space<vmem>>, vector<16x128xf32>,
    %c0_86 = arith.constant 0 : index
    %c0_87 = arith.constant 0 : index
    %289 = vector.load %arg5[%c0_86, %c0_87] : memref<32x128xf32, #tpu.memory_space<vmem>>, vector<32x128xf32>
    %c1 = arith.constant 1 : index
    %c0_88 = arith.constant 0 : index
    %c0_89 = arith.constant 0 : index
    %290 = vector.load %arg9[%c1, %c0_88, %c0_89] : memref<2x2x32xf32, #tpu.memory_space<vmem>>, vector<1x2x32xf32>
    %291 = vector.shape_cast %290 : vector<1x2x32xf32> to vector<2x32xf32>
    %c1_90 = arith.constant 1 : index
    %c0_91 = arith.constant 0 : index
    %c0_92 = arith.constant 0 : index
    %292 = vector.load %arg10[%c1_90, %c0_91, %c0_92] : memref<2x2x32xf32, #tpu.memory_space<vmem>>, vector<1x2x32xf32>
    %293 = vector.shape_cast %292 : vector<1x2x32xf32> to vector<2x32xf32>
    %c0_i32_93 = arith.constant 0 : i32
    %c2_i32_94 = arith.constant 2 : i32
    %294 = arith.muli %c0_i32_93, %c2_i32_94 : i32
    %295 = tpu.assume_multiple %294, 2 : i32
    %296 = arith.index_cast %295 : i32 to index
    %c0_95 = arith.constant 0 : index
    %297 = vector.load %arg14[%296, %c0_95] : memref<16x128xf32, #tpu.memory_space<vmem>>, vector<2x128xf32>
    %cst_96 = arith.constant dense<0.000000e+00> : vector<2x128xf32>
    %298 = tpu.matmul %291, %289, %cst_96 {dimension_numbers = #tpu.dot_dimension_numbers<[1], [0], [0], [1], [0, 0, 1, 1], [], []>} : vector<2x32xf32>, vector<32x128xf32>, vector<2x128xf32> -> vector<2x128xf32>
    %299 = arith.addf %297, %298 : vector<2x128xf32>
    %300 = vector.extract_strided_slice %299 {offsets = [0, 0], sizes = [2, 32], strides = [1, 1]} : vector<2x128xf32> to vector<2x32xf32>
    %301 = arith.negf %300 : vector<2x32xf32>
    %302 = math.exp %301 : vector<2x32xf32>
    %cst_97 = arith.constant 1.000000e+00 : f32
    %303 = vector.broadcast %cst_97 : f32 to vector<2x32xf32>
    %304 = arith.addf %303, %302 : vector<2x32xf32>
    %305 = arith.divf %303, %304 : vector<2x32xf32>
    %306 = vector.extract_strided_slice %299 {offsets = [0, 32], sizes = [2, 32], strides = [1, 1]} : vector<2x128xf32> to vector<2x32xf32>
    %307 = arith.negf %306 : vector<2x32xf32>
    %308 = math.exp %307 : vector<2x32xf32>
    %cst_98 = arith.constant 1.000000e+00 : f32
    %309 = vector.broadcast %cst_98 : f32 to vector<2x32xf32>
    %310 = arith.addf %309, %308 : vector<2x32xf32>
    %311 = arith.divf %309, %310 : vector<2x32xf32>
    %312 = vector.extract_strided_slice %299 {offsets = [0, 64], sizes = [2, 32], strides = [1, 1]} : vector<2x128xf32> to vector<2x32xf32>
    %313 = math.tanh %312 : vector<2x32xf32>
    %314 = vector.extract_strided_slice %299 {offsets = [0, 96], sizes = [2, 32], strides = [1, 1]} : vector<2x128xf32> to vector<2x32xf32>
    %315 = arith.negf %314 : vector<2x32xf32>
    %316 = math.exp %315 : vector<2x32xf32>
    %cst_99 = arith.constant 1.000000e+00 : f32
    %317 = vector.broadcast %cst_99 : f32 to vector<2x32xf32>
    %318 = arith.addf %317, %316 : vector<2x32xf32>
    %319 = arith.divf %317, %318 : vector<2x32xf32>
    %320 = arith.mulf %311, %293 : vector<2x32xf32>
    %321 = arith.mulf %305, %313 : vector<2x32xf32>
    %322 = arith.addf %320, %321 : vector<2x32xf32>
    %323 = math.tanh %322 : vector<2x32xf32>
    %324 = arith.mulf %319, %323 : vector<2x32xf32>
    %325 = vector.extract_strided_slice %324 {offsets = [0, 0], sizes = [1, 32], strides = [1, 1]} : vector<2x32xf32> to vector<1x32xf32>
    %c0_i32_100 = arith.constant 0 : i32
    %326 = arith.addi %c0_i32_100, %c0_i32_93 : i32
    %327 = arith.index_cast %326 : i32 to index
    %c0_101 = arith.constant 0 : index
    %328 = vector.load %arg16[%327, %c0_101] : memref<16x32xf32, #tpu.memory_space<vmem>>, vector<1x32xf32>
    tpu.vector_store %arg16[%327, %c0_101], %325 {strides = array<i32>} : memref<16x32xf32, #tpu.memory_space<vmem>>, vector<1x32xf32>,
    %329 = vector.extract_strided_slice %324 {offsets = [1, 0], sizes = [1, 32], strides = [1, 1]} : vector<2x32xf32> to vector<1x32xf32>
    %c8_i32_102 = arith.constant 8 : i32
    %330 = arith.addi %c8_i32_102, %c0_i32_93 : i32
    %331 = arith.index_cast %330 : i32 to index
    %c0_103 = arith.constant 0 : index
    %332 = vector.load %arg16[%331, %c0_103] : memref<16x32xf32, #tpu.memory_space<vmem>>, vector<1x32xf32>
    tpu.vector_store %arg16[%331, %c0_103], %329 {strides = array<i32>} : memref<16x32xf32, #tpu.memory_space<vmem>>, vector<1x32xf32>,
    %c1_i32_104 = arith.constant 1 : i32
    %c2_i32_105 = arith.constant 2 : i32
    %333 = arith.muli %c1_i32_104, %c2_i32_105 : i32
    %334 = tpu.assume_multiple %333, 2 : i32
    %335 = arith.index_cast %334 : i32 to index
    %c0_106 = arith.constant 0 : index
    %336 = vector.load %arg14[%335, %c0_106] : memref<16x128xf32, #tpu.memory_space<vmem>>, vector<2x128xf32>
    %cst_107 = arith.constant dense<0.000000e+00> : vector<2x128xf32>
    %337 = tpu.matmul %324, %289, %cst_107 {dimension_numbers = #tpu.dot_dimension_numbers<[1], [0], [0], [1], [0, 0, 1, 1], [], []>} : vector<2x32xf32>, vector<32x128xf32>, vector<2x128xf32> -> vector<2x128xf32>
    %338 = arith.addf %336, %337 : vector<2x128xf32>
    %339 = vector.extract_strided_slice %338 {offsets = [0, 0], sizes = [2, 32], strides = [1, 1]} : vector<2x128xf32> to vector<2x32xf32>
    %340 = arith.negf %339 : vector<2x32xf32>
    %341 = math.exp %340 : vector<2x32xf32>
    %cst_108 = arith.constant 1.000000e+00 : f32
    %342 = vector.broadcast %cst_108 : f32 to vector<2x32xf32>
    %343 = arith.addf %342, %341 : vector<2x32xf32>
    %344 = arith.divf %342, %343 : vector<2x32xf32>
    %345 = vector.extract_strided_slice %338 {offsets = [0, 32], sizes = [2, 32], strides = [1, 1]} : vector<2x128xf32> to vector<2x32xf32>
    %346 = arith.negf %345 : vector<2x32xf32>
    %347 = math.exp %346 : vector<2x32xf32>
    %cst_109 = arith.constant 1.000000e+00 : f32
    %348 = vector.broadcast %cst_109 : f32 to vector<2x32xf32>
    %349 = arith.addf %348, %347 : vector<2x32xf32>
    %350 = arith.divf %348, %349 : vector<2x32xf32>
    %351 = vector.extract_strided_slice %338 {offsets = [0, 64], sizes = [2, 32], strides = [1, 1]} : vector<2x128xf32> to vector<2x32xf32>
    %352 = math.tanh %351 : vector<2x32xf32>
    %353 = vector.extract_strided_slice %338 {offsets = [0, 96], sizes = [2, 32], strides = [1, 1]} : vector<2x128xf32> to vector<2x32xf32>
    %354 = arith.negf %353 : vector<2x32xf32>
    %355 = math.exp %354 : vector<2x32xf32>
    %cst_110 = arith.constant 1.000000e+00 : f32
    %356 = vector.broadcast %cst_110 : f32 to vector<2x32xf32>
    %357 = arith.addf %356, %355 : vector<2x32xf32>
    %358 = arith.divf %356, %357 : vector<2x32xf32>
    %359 = arith.mulf %350, %322 : vector<2x32xf32>
    %360 = arith.mulf %344, %352 : vector<2x32xf32>
    %361 = arith.addf %359, %360 : vector<2x32xf32>
    %362 = math.tanh %361 : vector<2x32xf32>
    %363 = arith.mulf %358, %362 : vector<2x32xf32>
    %364 = vector.extract_strided_slice %363 {offsets = [0, 0], sizes = [1, 32], strides = [1, 1]} : vector<2x32xf32> to vector<1x32xf32>
    %c0_i32_111 = arith.constant 0 : i32
    %365 = arith.addi %c0_i32_111, %c1_i32_104 : i32
    %366 = arith.index_cast %365 : i32 to index
    %c0_112 = arith.constant 0 : index
    %367 = vector.load %arg16[%366, %c0_112] : memref<16x32xf32, #tpu.memory_space<vmem>>, vector<1x32xf32>
    tpu.vector_store %arg16[%366, %c0_112], %364 {strides = array<i32>} : memref<16x32xf32, #tpu.memory_space<vmem>>, vector<1x32xf32>,
    %368 = vector.extract_strided_slice %363 {offsets = [1, 0], sizes = [1, 32], strides = [1, 1]} : vector<2x32xf32> to vector<1x32xf32>
    %c8_i32_113 = arith.constant 8 : i32
    %369 = arith.addi %c8_i32_113, %c1_i32_104 : i32
    %370 = arith.index_cast %369 : i32 to index
    %c0_114 = arith.constant 0 : index
    %371 = vector.load %arg16[%370, %c0_114] : memref<16x32xf32, #tpu.memory_space<vmem>>, vector<1x32xf32>
    tpu.vector_store %arg16[%370, %c0_114], %368 {strides = array<i32>} : memref<16x32xf32, #tpu.memory_space<vmem>>, vector<1x32xf32>,
    %c2_i32_115 = arith.constant 2 : i32
    %c2_i32_116 = arith.constant 2 : i32
    %372 = arith.muli %c2_i32_115, %c2_i32_116 : i32
    %373 = tpu.assume_multiple %372, 2 : i32
    %374 = arith.index_cast %373 : i32 to index
    %c0_117 = arith.constant 0 : index
    %375 = vector.load %arg14[%374, %c0_117] : memref<16x128xf32, #tpu.memory_space<vmem>>, vector<2x128xf32>
    %cst_118 = arith.constant dense<0.000000e+00> : vector<2x128xf32>
    %376 = tpu.matmul %363, %289, %cst_118 {dimension_numbers = #tpu.dot_dimension_numbers<[1], [0], [0], [1], [0, 0, 1, 1], [], []>} : vector<2x32xf32>, vector<32x128xf32>, vector<2x128xf32> -> vector<2x128xf32>
    %377 = arith.addf %375, %376 : vector<2x128xf32>
    %378 = vector.extract_strided_slice %377 {offsets = [0, 0], sizes = [2, 32], strides = [1, 1]} : vector<2x128xf32> to vector<2x32xf32>
    %379 = arith.negf %378 : vector<2x32xf32>
    %380 = math.exp %379 : vector<2x32xf32>
    %cst_119 = arith.constant 1.000000e+00 : f32
    %381 = vector.broadcast %cst_119 : f32 to vector<2x32xf32>
    %382 = arith.addf %381, %380 : vector<2x32xf32>
    %383 = arith.divf %381, %382 : vector<2x32xf32>
    %384 = vector.extract_strided_slice %377 {offsets = [0, 32], sizes = [2, 32], strides = [1, 1]} : vector<2x128xf32> to vector<2x32xf32>
    %385 = arith.negf %384 : vector<2x32xf32>
    %386 = math.exp %385 : vector<2x32xf32>
    %cst_120 = arith.constant 1.000000e+00 : f32
    %387 = vector.broadcast %cst_120 : f32 to vector<2x32xf32>
    %388 = arith.addf %387, %386 : vector<2x32xf32>
    %389 = arith.divf %387, %388 : vector<2x32xf32>
    %390 = vector.extract_strided_slice %377 {offsets = [0, 64], sizes = [2, 32], strides = [1, 1]} : vector<2x128xf32> to vector<2x32xf32>
    %391 = math.tanh %390 : vector<2x32xf32>
    %392 = vector.extract_strided_slice %377 {offsets = [0, 96], sizes = [2, 32], strides = [1, 1]} : vector<2x128xf32> to vector<2x32xf32>
    %393 = arith.negf %392 : vector<2x32xf32>
    %394 = math.exp %393 : vector<2x32xf32>
    %cst_121 = arith.constant 1.000000e+00 : f32
    %395 = vector.broadcast %cst_121 : f32 to vector<2x32xf32>
    %396 = arith.addf %395, %394 : vector<2x32xf32>
    %397 = arith.divf %395, %396 : vector<2x32xf32>
    %398 = arith.mulf %389, %361 : vector<2x32xf32>
    %399 = arith.mulf %383, %391 : vector<2x32xf32>
    %400 = arith.addf %398, %399 : vector<2x32xf32>
    %401 = math.tanh %400 : vector<2x32xf32>
    %402 = arith.mulf %397, %401 : vector<2x32xf32>
    %403 = vector.extract_strided_slice %402 {offsets = [0, 0], sizes = [1, 32], strides = [1, 1]} : vector<2x32xf32> to vector<1x32xf32>
    %c0_i32_122 = arith.constant 0 : i32
    %404 = arith.addi %c0_i32_122, %c2_i32_115 : i32
    %405 = arith.index_cast %404 : i32 to index
    %c0_123 = arith.constant 0 : index
    %406 = vector.load %arg16[%405, %c0_123] : memref<16x32xf32, #tpu.memory_space<vmem>>, vector<1x32xf32>
    tpu.vector_store %arg16[%405, %c0_123], %403 {strides = array<i32>} : memref<16x32xf32, #tpu.memory_space<vmem>>, vector<1x32xf32>,
    %407 = vector.extract_strided_slice %402 {offsets = [1, 0], sizes = [1, 32], strides = [1, 1]} : vector<2x32xf32> to vector<1x32xf32>
    %c8_i32_124 = arith.constant 8 : i32
    %408 = arith.addi %c8_i32_124, %c2_i32_115 : i32
    %409 = arith.index_cast %408 : i32 to index
    %c0_125 = arith.constant 0 : index
    %410 = vector.load %arg16[%409, %c0_125] : memref<16x32xf32, #tpu.memory_space<vmem>>, vector<1x32xf32>
    tpu.vector_store %arg16[%409, %c0_125], %407 {strides = array<i32>} : memref<16x32xf32, #tpu.memory_space<vmem>>, vector<1x32xf32>,
    %c3_i32_126 = arith.constant 3 : i32
    %c2_i32_127 = arith.constant 2 : i32
    %411 = arith.muli %c3_i32_126, %c2_i32_127 : i32
    %412 = tpu.assume_multiple %411, 2 : i32
    %413 = arith.index_cast %412 : i32 to index
    %c0_128 = arith.constant 0 : index
    %414 = vector.load %arg14[%413, %c0_128] : memref<16x128xf32, #tpu.memory_space<vmem>>, vector<2x128xf32>
    %cst_129 = arith.constant dense<0.000000e+00> : vector<2x128xf32>
    %415 = tpu.matmul %402, %289, %cst_129 {dimension_numbers = #tpu.dot_dimension_numbers<[1], [0], [0], [1], [0, 0, 1, 1], [], []>} : vector<2x32xf32>, vector<32x128xf32>, vector<2x128xf32> -> vector<2x128xf32>
    %416 = arith.addf %414, %415 : vector<2x128xf32>
    %417 = vector.extract_strided_slice %416 {offsets = [0, 0], sizes = [2, 32], strides = [1, 1]} : vector<2x128xf32> to vector<2x32xf32>
    %418 = arith.negf %417 : vector<2x32xf32>
    %419 = math.exp %418 : vector<2x32xf32>
    %cst_130 = arith.constant 1.000000e+00 : f32
    %420 = vector.broadcast %cst_130 : f32 to vector<2x32xf32>
    %421 = arith.addf %420, %419 : vector<2x32xf32>
    %422 = arith.divf %420, %421 : vector<2x32xf32>
    %423 = vector.extract_strided_slice %416 {offsets = [0, 32], sizes = [2, 32], strides = [1, 1]} : vector<2x128xf32> to vector<2x32xf32>
    %424 = arith.negf %423 : vector<2x32xf32>
    %425 = math.exp %424 : vector<2x32xf32>
    %cst_131 = arith.constant 1.000000e+00 : f32
    %426 = vector.broadcast %cst_131 : f32 to vector<2x32xf32>
    %427 = arith.addf %426, %425 : vector<2x32xf32>
    %428 = arith.divf %426, %427 : vector<2x32xf32>
    %429 = vector.extract_strided_slice %416 {offsets = [0, 64], sizes = [2, 32], strides = [1, 1]} : vector<2x128xf32> to vector<2x32xf32>
    %430 = math.tanh %429 : vector<2x32xf32>
    %431 = vector.extract_strided_slice %416 {offsets = [0, 96], sizes = [2, 32], strides = [1, 1]} : vector<2x128xf32> to vector<2x32xf32>
    %432 = arith.negf %431 : vector<2x32xf32>
    %433 = math.exp %432 : vector<2x32xf32>
    %cst_132 = arith.constant 1.000000e+00 : f32
    %434 = vector.broadcast %cst_132 : f32 to vector<2x32xf32>
    %435 = arith.addf %434, %433 : vector<2x32xf32>
    %436 = arith.divf %434, %435 : vector<2x32xf32>
    %437 = arith.mulf %428, %400 : vector<2x32xf32>
    %438 = arith.mulf %422, %430 : vector<2x32xf32>
    %439 = arith.addf %437, %438 : vector<2x32xf32>
    %440 = math.tanh %439 : vector<2x32xf32>
    %441 = arith.mulf %436, %440 : vector<2x32xf32>
    %442 = vector.extract_strided_slice %441 {offsets = [0, 0], sizes = [1, 32], strides = [1, 1]} : vector<2x32xf32> to vector<1x32xf32>
    %c0_i32_133 = arith.constant 0 : i32
    %443 = arith.addi %c0_i32_133, %c3_i32_126 : i32
    %444 = arith.index_cast %443 : i32 to index
    %c0_134 = arith.constant 0 : index
    %445 = vector.load %arg16[%444, %c0_134] : memref<16x32xf32, #tpu.memory_space<vmem>>, vector<1x32xf32>
    tpu.vector_store %arg16[%444, %c0_134], %442 {strides = array<i32>} : memref<16x32xf32, #tpu.memory_space<vmem>>, vector<1x32xf32>,
    %446 = vector.extract_strided_slice %441 {offsets = [1, 0], sizes = [1, 32], strides = [1, 1]} : vector<2x32xf32> to vector<1x32xf32>
    %c8_i32_135 = arith.constant 8 : i32
    %447 = arith.addi %c8_i32_135, %c3_i32_126 : i32
    %448 = arith.index_cast %447 : i32 to index
    %c0_136 = arith.constant 0 : index
    %449 = vector.load %arg16[%448, %c0_136] : memref<16x32xf32, #tpu.memory_space<vmem>>, vector<1x32xf32>
    tpu.vector_store %arg16[%448, %c0_136], %446 {strides = array<i32>} : memref<16x32xf32, #tpu.memory_space<vmem>>, vector<1x32xf32>,
    %c4_i32_137 = arith.constant 4 : i32
    %c2_i32_138 = arith.constant 2 : i32
    %450 = arith.muli %c4_i32_137, %c2_i32_138 : i32
    %451 = tpu.assume_multiple %450, 2 : i32
    %452 = arith.index_cast %451 : i32 to index
    %c0_139 = arith.constant 0 : index
    %453 = vector.load %arg14[%452, %c0_139] : memref<16x128xf32, #tpu.memory_space<vmem>>, vector<2x128xf32>
    %cst_140 = arith.constant dense<0.000000e+00> : vector<2x128xf32>
    %454 = tpu.matmul %441, %289, %cst_140 {dimension_numbers = #tpu.dot_dimension_numbers<[1], [0], [0], [1], [0, 0, 1, 1], [], []>} : vector<2x32xf32>, vector<32x128xf32>, vector<2x128xf32> -> vector<2x128xf32>
    %455 = arith.addf %453, %454 : vector<2x128xf32>
    %456 = vector.extract_strided_slice %455 {offsets = [0, 0], sizes = [2, 32], strides = [1, 1]} : vector<2x128xf32> to vector<2x32xf32>
    %457 = arith.negf %456 : vector<2x32xf32>
    %458 = math.exp %457 : vector<2x32xf32>
    %cst_141 = arith.constant 1.000000e+00 : f32
    %459 = vector.broadcast %cst_141 : f32 to vector<2x32xf32>
    %460 = arith.addf %459, %458 : vector<2x32xf32>
    %461 = arith.divf %459, %460 : vector<2x32xf32>
    %462 = vector.extract_strided_slice %455 {offsets = [0, 32], sizes = [2, 32], strides = [1, 1]} : vector<2x128xf32> to vector<2x32xf32>
    %463 = arith.negf %462 : vector<2x32xf32>
    %464 = math.exp %463 : vector<2x32xf32>
    %cst_142 = arith.constant 1.000000e+00 : f32
    %465 = vector.broadcast %cst_142 : f32 to vector<2x32xf32>
    %466 = arith.addf %465, %464 : vector<2x32xf32>
    %467 = arith.divf %465, %466 : vector<2x32xf32>
    %468 = vector.extract_strided_slice %455 {offsets = [0, 64], sizes = [2, 32], strides = [1, 1]} : vector<2x128xf32> to vector<2x32xf32>
    %469 = math.tanh %468 : vector<2x32xf32>
    %470 = vector.extract_strided_slice %455 {offsets = [0, 96], sizes = [2, 32], strides = [1, 1]} : vector<2x128xf32> to vector<2x32xf32>
    %471 = arith.negf %470 : vector<2x32xf32>
    %472 = math.exp %471 : vector<2x32xf32>
    %cst_143 = arith.constant 1.000000e+00 : f32
    %473 = vector.broadcast %cst_143 : f32 to vector<2x32xf32>
    %474 = arith.addf %473, %472 : vector<2x32xf32>
    %475 = arith.divf %473, %474 : vector<2x32xf32>
    %476 = arith.mulf %467, %439 : vector<2x32xf32>
    %477 = arith.mulf %461, %469 : vector<2x32xf32>
    %478 = arith.addf %476, %477 : vector<2x32xf32>
    %479 = math.tanh %478 : vector<2x32xf32>
    %480 = arith.mulf %475, %479 : vector<2x32xf32>
    %481 = vector.extract_strided_slice %480 {offsets = [0, 0], sizes = [1, 32], strides = [1, 1]} : vector<2x32xf32> to vector<1x32xf32>
    %c0_i32_144 = arith.constant 0 : i32
    %482 = arith.addi %c0_i32_144, %c4_i32_137 : i32
    %483 = arith.index_cast %482 : i32 to index
    %c0_145 = arith.constant 0 : index
    %484 = vector.load %arg16[%483, %c0_145] : memref<16x32xf32, #tpu.memory_space<vmem>>, vector<1x32xf32>
    tpu.vector_store %arg16[%483, %c0_145], %481 {strides = array<i32>} : memref<16x32xf32, #tpu.memory_space<vmem>>, vector<1x32xf32>,
    %485 = vector.extract_strided_slice %480 {offsets = [1, 0], sizes = [1, 32], strides = [1, 1]} : vector<2x32xf32> to vector<1x32xf32>
    %c8_i32_146 = arith.constant 8 : i32
    %486 = arith.addi %c8_i32_146, %c4_i32_137 : i32
    %487 = arith.index_cast %486 : i32 to index
    %c0_147 = arith.constant 0 : index
    %488 = vector.load %arg16[%487, %c0_147] : memref<16x32xf32, #tpu.memory_space<vmem>>, vector<1x32xf32>
    tpu.vector_store %arg16[%487, %c0_147], %485 {strides = array<i32>} : memref<16x32xf32, #tpu.memory_space<vmem>>, vector<1x32xf32>,
    %c5_i32_148 = arith.constant 5 : i32
    %c2_i32_149 = arith.constant 2 : i32
    %489 = arith.muli %c5_i32_148, %c2_i32_149 : i32
    %490 = tpu.assume_multiple %489, 2 : i32
    %491 = arith.index_cast %490 : i32 to index
    %c0_150 = arith.constant 0 : index
    %492 = vector.load %arg14[%491, %c0_150] : memref<16x128xf32, #tpu.memory_space<vmem>>, vector<2x128xf32>
    %cst_151 = arith.constant dense<0.000000e+00> : vector<2x128xf32>
    %493 = tpu.matmul %480, %289, %cst_151 {dimension_numbers = #tpu.dot_dimension_numbers<[1], [0], [0], [1], [0, 0, 1, 1], [], []>} : vector<2x32xf32>, vector<32x128xf32>, vector<2x128xf32> -> vector<2x128xf32>
    %494 = arith.addf %492, %493 : vector<2x128xf32>
    %495 = vector.extract_strided_slice %494 {offsets = [0, 0], sizes = [2, 32], strides = [1, 1]} : vector<2x128xf32> to vector<2x32xf32>
    %496 = arith.negf %495 : vector<2x32xf32>
    %497 = math.exp %496 : vector<2x32xf32>
    %cst_152 = arith.constant 1.000000e+00 : f32
    %498 = vector.broadcast %cst_152 : f32 to vector<2x32xf32>
    %499 = arith.addf %498, %497 : vector<2x32xf32>
    %500 = arith.divf %498, %499 : vector<2x32xf32>
    %501 = vector.extract_strided_slice %494 {offsets = [0, 32], sizes = [2, 32], strides = [1, 1]} : vector<2x128xf32> to vector<2x32xf32>
    %502 = arith.negf %501 : vector<2x32xf32>
    %503 = math.exp %502 : vector<2x32xf32>
    %cst_153 = arith.constant 1.000000e+00 : f32
    %504 = vector.broadcast %cst_153 : f32 to vector<2x32xf32>
    %505 = arith.addf %504, %503 : vector<2x32xf32>
    %506 = arith.divf %504, %505 : vector<2x32xf32>
    %507 = vector.extract_strided_slice %494 {offsets = [0, 64], sizes = [2, 32], strides = [1, 1]} : vector<2x128xf32> to vector<2x32xf32>
    %508 = math.tanh %507 : vector<2x32xf32>
    %509 = vector.extract_strided_slice %494 {offsets = [0, 96], sizes = [2, 32], strides = [1, 1]} : vector<2x128xf32> to vector<2x32xf32>
    %510 = arith.negf %509 : vector<2x32xf32>
    %511 = math.exp %510 : vector<2x32xf32>
    %cst_154 = arith.constant 1.000000e+00 : f32
    %512 = vector.broadcast %cst_154 : f32 to vector<2x32xf32>
    %513 = arith.addf %512, %511 : vector<2x32xf32>
    %514 = arith.divf %512, %513 : vector<2x32xf32>
    %515 = arith.mulf %506, %478 : vector<2x32xf32>
    %516 = arith.mulf %500, %508 : vector<2x32xf32>
    %517 = arith.addf %515, %516 : vector<2x32xf32>
    %518 = math.tanh %517 : vector<2x32xf32>
    %519 = arith.mulf %514, %518 : vector<2x32xf32>
    %520 = vector.extract_strided_slice %519 {offsets = [0, 0], sizes = [1, 32], strides = [1, 1]} : vector<2x32xf32> to vector<1x32xf32>
    %c0_i32_155 = arith.constant 0 : i32
    %521 = arith.addi %c0_i32_155, %c5_i32_148 : i32
    %522 = arith.index_cast %521 : i32 to index
    %c0_156 = arith.constant 0 : index
    %523 = vector.load %arg16[%522, %c0_156] : memref<16x32xf32, #tpu.memory_space<vmem>>, vector<1x32xf32>
    tpu.vector_store %arg16[%522, %c0_156], %520 {strides = array<i32>} : memref<16x32xf32, #tpu.memory_space<vmem>>, vector<1x32xf32>,
    %524 = vector.extract_strided_slice %519 {offsets = [1, 0], sizes = [1, 32], strides = [1, 1]} : vector<2x32xf32> to vector<1x32xf32>
    %c8_i32_157 = arith.constant 8 : i32
    %525 = arith.addi %c8_i32_157, %c5_i32_148 : i32
    %526 = arith.index_cast %525 : i32 to index
    %c0_158 = arith.constant 0 : index
    %527 = vector.load %arg16[%526, %c0_158] : memref<16x32xf32, #tpu.memory_space<vmem>>, vector<1x32xf32>
    tpu.vector_store %arg16[%526, %c0_158], %524 {strides = array<i32>} : memref<16x32xf32, #tpu.memory_space<vmem>>, vector<1x32xf32>,
    %c6_i32_159 = arith.constant 6 : i32
    %c2_i32_160 = arith.constant 2 : i32
    %528 = arith.muli %c6_i32_159, %c2_i32_160 : i32
    %529 = tpu.assume_multiple %528, 2 : i32
    %530 = arith.index_cast %529 : i32 to index
    %c0_161 = arith.constant 0 : index
    %531 = vector.load %arg14[%530, %c0_161] : memref<16x128xf32, #tpu.memory_space<vmem>>, vector<2x128xf32>
    %cst_162 = arith.constant dense<0.000000e+00> : vector<2x128xf32>
    %532 = tpu.matmul %519, %289, %cst_162 {dimension_numbers = #tpu.dot_dimension_numbers<[1], [0], [0], [1], [0, 0, 1, 1], [], []>} : vector<2x32xf32>, vector<32x128xf32>, vector<2x128xf32> -> vector<2x128xf32>
    %533 = arith.addf %531, %532 : vector<2x128xf32>
    %534 = vector.extract_strided_slice %533 {offsets = [0, 0], sizes = [2, 32], strides = [1, 1]} : vector<2x128xf32> to vector<2x32xf32>
    %535 = arith.negf %534 : vector<2x32xf32>
    %536 = math.exp %535 : vector<2x32xf32>
    %cst_163 = arith.constant 1.000000e+00 : f32
    %537 = vector.broadcast %cst_163 : f32 to vector<2x32xf32>
    %538 = arith.addf %537, %536 : vector<2x32xf32>
    %539 = arith.divf %537, %538 : vector<2x32xf32>
    %540 = vector.extract_strided_slice %533 {offsets = [0, 32], sizes = [2, 32], strides = [1, 1]} : vector<2x128xf32> to vector<2x32xf32>
    %541 = arith.negf %540 : vector<2x32xf32>
    %542 = math.exp %541 : vector<2x32xf32>
    %cst_164 = arith.constant 1.000000e+00 : f32
    %543 = vector.broadcast %cst_164 : f32 to vector<2x32xf32>
    %544 = arith.addf %543, %542 : vector<2x32xf32>
    %545 = arith.divf %543, %544 : vector<2x32xf32>
    %546 = vector.extract_strided_slice %533 {offsets = [0, 64], sizes = [2, 32], strides = [1, 1]} : vector<2x128xf32> to vector<2x32xf32>
    %547 = math.tanh %546 : vector<2x32xf32>
    %548 = vector.extract_strided_slice %533 {offsets = [0, 96], sizes = [2, 32], strides = [1, 1]} : vector<2x128xf32> to vector<2x32xf32>
    %549 = arith.negf %548 : vector<2x32xf32>
    %550 = math.exp %549 : vector<2x32xf32>
    %cst_165 = arith.constant 1.000000e+00 : f32
    %551 = vector.broadcast %cst_165 : f32 to vector<2x32xf32>
    %552 = arith.addf %551, %550 : vector<2x32xf32>
    %553 = arith.divf %551, %552 : vector<2x32xf32>
    %554 = arith.mulf %545, %517 : vector<2x32xf32>
    %555 = arith.mulf %539, %547 : vector<2x32xf32>
    %556 = arith.addf %554, %555 : vector<2x32xf32>
    %557 = math.tanh %556 : vector<2x32xf32>
    %558 = arith.mulf %553, %557 : vector<2x32xf32>
    %559 = vector.extract_strided_slice %558 {offsets = [0, 0], sizes = [1, 32], strides = [1, 1]} : vector<2x32xf32> to vector<1x32xf32>
    %c0_i32_166 = arith.constant 0 : i32
    %560 = arith.addi %c0_i32_166, %c6_i32_159 : i32
    %561 = arith.index_cast %560 : i32 to index
    %c0_167 = arith.constant 0 : index
    %562 = vector.load %arg16[%561, %c0_167] : memref<16x32xf32, #tpu.memory_space<vmem>>, vector<1x32xf32>
    tpu.vector_store %arg16[%561, %c0_167], %559 {strides = array<i32>} : memref<16x32xf32, #tpu.memory_space<vmem>>, vector<1x32xf32>,
    %563 = vector.extract_strided_slice %558 {offsets = [1, 0], sizes = [1, 32], strides = [1, 1]} : vector<2x32xf32> to vector<1x32xf32>
    %c8_i32_168 = arith.constant 8 : i32
    %564 = arith.addi %c8_i32_168, %c6_i32_159 : i32
    %565 = arith.index_cast %564 : i32 to index
    %c0_169 = arith.constant 0 : index
    %566 = vector.load %arg16[%565, %c0_169] : memref<16x32xf32, #tpu.memory_space<vmem>>, vector<1x32xf32>
    tpu.vector_store %arg16[%565, %c0_169], %563 {strides = array<i32>} : memref<16x32xf32, #tpu.memory_space<vmem>>, vector<1x32xf32>,
    %c7_i32_170 = arith.constant 7 : i32
    %c2_i32_171 = arith.constant 2 : i32
    %567 = arith.muli %c7_i32_170, %c2_i32_171 : i32
    %568 = tpu.assume_multiple %567, 2 : i32
    %569 = arith.index_cast %568 : i32 to index
    %c0_172 = arith.constant 0 : index
    %570 = vector.load %arg14[%569, %c0_172] : memref<16x128xf32, #tpu.memory_space<vmem>>, vector<2x128xf32>
    %cst_173 = arith.constant dense<0.000000e+00> : vector<2x128xf32>
    %571 = tpu.matmul %558, %289, %cst_173 {dimension_numbers = #tpu.dot_dimension_numbers<[1], [0], [0], [1], [0, 0, 1, 1], [], []>} : vector<2x32xf32>, vector<32x128xf32>, vector<2x128xf32> -> vector<2x128xf32>
    %572 = arith.addf %570, %571 : vector<2x128xf32>
    %573 = vector.extract_strided_slice %572 {offsets = [0, 0], sizes = [2, 32], strides = [1, 1]} : vector<2x128xf32> to vector<2x32xf32>
    %574 = arith.negf %573 : vector<2x32xf32>
    %575 = math.exp %574 : vector<2x32xf32>
    %cst_174 = arith.constant 1.000000e+00 : f32
    %576 = vector.broadcast %cst_174 : f32 to vector<2x32xf32>
    %577 = arith.addf %576, %575 : vector<2x32xf32>
    %578 = arith.divf %576, %577 : vector<2x32xf32>
    %579 = vector.extract_strided_slice %572 {offsets = [0, 32], sizes = [2, 32], strides = [1, 1]} : vector<2x128xf32> to vector<2x32xf32>
    %580 = arith.negf %579 : vector<2x32xf32>
    %581 = math.exp %580 : vector<2x32xf32>
    %cst_175 = arith.constant 1.000000e+00 : f32
    %582 = vector.broadcast %cst_175 : f32 to vector<2x32xf32>
    %583 = arith.addf %582, %581 : vector<2x32xf32>
    %584 = arith.divf %582, %583 : vector<2x32xf32>
    %585 = vector.extract_strided_slice %572 {offsets = [0, 64], sizes = [2, 32], strides = [1, 1]} : vector<2x128xf32> to vector<2x32xf32>
    %586 = math.tanh %585 : vector<2x32xf32>
    %587 = vector.extract_strided_slice %572 {offsets = [0, 96], sizes = [2, 32], strides = [1, 1]} : vector<2x128xf32> to vector<2x32xf32>
    %588 = arith.negf %587 : vector<2x32xf32>
    %589 = math.exp %588 : vector<2x32xf32>
    %cst_176 = arith.constant 1.000000e+00 : f32
    %590 = vector.broadcast %cst_176 : f32 to vector<2x32xf32>
    %591 = arith.addf %590, %589 : vector<2x32xf32>
    %592 = arith.divf %590, %591 : vector<2x32xf32>
    %593 = arith.mulf %584, %556 : vector<2x32xf32>
    %594 = arith.mulf %578, %586 : vector<2x32xf32>
    %595 = arith.addf %593, %594 : vector<2x32xf32>
    %596 = math.tanh %595 : vector<2x32xf32>
    %597 = arith.mulf %592, %596 : vector<2x32xf32>
    %598 = vector.extract_strided_slice %597 {offsets = [0, 0], sizes = [1, 32], strides = [1, 1]} : vector<2x32xf32> to vector<1x32xf32>
    %c0_i32_177 = arith.constant 0 : i32
    %599 = arith.addi %c0_i32_177, %c7_i32_170 : i32
    %600 = arith.index_cast %599 : i32 to index
    %c0_178 = arith.constant 0 : index
    %601 = vector.load %arg16[%600, %c0_178] : memref<16x32xf32, #tpu.memory_space<vmem>>, vector<1x32xf32>
    tpu.vector_store %arg16[%600, %c0_178], %598 {strides = array<i32>} : memref<16x32xf32, #tpu.memory_space<vmem>>, vector<1x32xf32>,
    %602 = vector.extract_strided_slice %597 {offsets = [1, 0], sizes = [1, 32], strides = [1, 1]} : vector<2x32xf32> to vector<1x32xf32>
    %c8_i32_179 = arith.constant 8 : i32
    %603 = arith.addi %c8_i32_179, %c7_i32_170 : i32
    %604 = arith.index_cast %603 : i32 to index
    %c0_180 = arith.constant 0 : index
    %605 = vector.load %arg16[%604, %c0_180] : memref<16x32xf32, #tpu.memory_space<vmem>>, vector<1x32xf32>
    tpu.vector_store %arg16[%604, %c0_180], %602 {strides = array<i32>} : memref<16x32xf32, #tpu.memory_space<vmem>>, vector<1x32xf32>,
    %c8_i32_181 = arith.constant 8 : i32
    %c1_182 = arith.constant 1 : index
    %c0_183 = arith.constant 0 : index
    %c0_184 = arith.constant 0 : index
    %606 = vector.load %arg12[%c1_182, %c0_183, %c0_184] : memref<2x2x32xf32, #tpu.memory_space<vmem>>, vector<1x2x32xf32>
    %607 = vector.shape_cast %606 : vector<1x2x32xf32> to vector<2x32xf32>
    %608 = vector.shape_cast %597 : vector<2x32xf32> to vector<1x2x32xf32>
    tpu.vector_store %arg12[%c1_182, %c0_183, %c0_184], %608 {strides = array<i32>} : memref<2x2x32xf32, #tpu.memory_space<vmem>>, vector<1x2x32xf32>,
    %c1_185 = arith.constant 1 : index
    %c0_186 = arith.constant 0 : index
    %c0_187 = arith.constant 0 : index
    %609 = vector.load %arg13[%c1_185, %c0_186, %c0_187] : memref<2x2x32xf32, #tpu.memory_space<vmem>>, vector<1x2x32xf32>
    %610 = vector.shape_cast %609 : vector<1x2x32xf32> to vector<2x32xf32>
    %611 = vector.shape_cast %595 : vector<2x32xf32> to vector<1x2x32xf32>
    tpu.vector_store %arg13[%c1_185, %c0_186, %c0_187], %611 {strides = array<i32>} : memref<2x2x32xf32, #tpu.memory_space<vmem>>, vector<1x2x32xf32>,
    %c0_188 = arith.constant 0 : index
    %c0_189 = arith.constant 0 : index
    %612 = vector.load %arg16[%c0_188, %c0_189] : memref<16x32xf32, #tpu.memory_space<vmem>>, vector<16x32xf32>
    %c0_190 = arith.constant 0 : index
    %c0_191 = arith.constant 0 : index
    %613 = vector.load %arg7[%c0_190, %c0_191] : memref<32x128xf32, #tpu.memory_space<vmem>>, vector<32x128xf32>
    %cst_192 = arith.constant dense<0.000000e+00> : vector<16x128xf32>
    %614 = tpu.matmul %612, %613, %cst_192 {dimension_numbers = #tpu.dot_dimension_numbers<[1], [0], [0], [1], [0, 0, 1, 1], [], []>} : vector<16x32xf32>, vector<32x128xf32>, vector<16x128xf32> -> vector<16x128xf32>
    %c0_193 = arith.constant 0 : index
    %c0_194 = arith.constant 0 : index
    %615 = vector.load %arg8[%c0_193, %c0_194] : memref<1x128xf32, #tpu.memory_space<vmem>>, vector<1x128xf32>
    %616 = vector.broadcast %615 : vector<1x128xf32> to vector<16x128xf32>
    %617 = arith.addf %614, %616 : vector<16x128xf32>
    %c0_195 = arith.constant 0 : index
    %c0_196 = arith.constant 0 : index
    %618 = vector.load %arg11[%c0_195, %c0_196] : memref<16x128xf32, #tpu.memory_space<vmem>>, vector<16x128xf32>
    tpu.vector_store %arg11[%c0_195, %c0_196], %617 {strides = array<i32>} : memref<16x128xf32, #tpu.memory_space<vmem>>, vector<16x128xf32>,
    return
  }
}

</mosaic_0001>

<llo_original>
// kernel: char_rnn_forward.1
$region0: #{char_rnn_forward.1}
  #allocation0 [shape = 'u32[]', space=smem, size = 0x4, offset = 0x4, fixed_abs, tag = 'smem constant byte address 0x4 - core index']
  #allocation1 [shape = 'u32[144,128]{1,0:T(1,128)}', space=vmem, size = 0x12000, scoped, tag = 'internal scratch']
  #allocation2 [shape = 'f32[16,128]{1,0:T(8,128)}', space=vmem, size = 0x2000, scoped, tag = 'scratch operand']
  #allocation3 [shape = 'f32[16,32]{1,0:T(8,128)}', space=vmem, size = 0x2000, scoped, tag = 'scratch operand']
  #allocation4 [shape = 'f32[16,32]{1,0:T(8,128)}', space=vmem, size = 0x2000, scoped, tag = 'scratch operand']
  %s0 = inlined_call_operand.vmem [shape: f32[16,16], index: 0, kind: input, shape index: {}]
  %s1 = inlined_call_operand.vmem [shape: f32[16,128], index: 1, kind: input, shape index: {}]
  %s2 = inlined_call_operand.vmem [shape: f32[32,128], index: 2, kind: input, shape index: {}]
  %s3 = inlined_call_operand.vmem [shape: f32[1,128], index: 3, kind: input, shape index: {}]
  %s4 = inlined_call_operand.vmem [shape: f32[32,128], index: 4, kind: input, shape index: {}]
  %s5 = inlined_call_operand.vmem [shape: f32[32,128], index: 5, kind: input, shape index: {}]
  %s6 = inlined_call_operand.vmem [shape: f32[1,128], index: 6, kind: input, shape index: {}]
  %s7 = inlined_call_operand.vmem [shape: f32[32,128], index: 7, kind: input, shape index: {}]
  %s8 = inlined_call_operand.vmem [shape: f32[1,128], index: 8, kind: input, shape index: {}]
  %s9 = inlined_call_operand.vmem [shape: f32[2,2,32], index: 9, kind: input, shape index: {}]
  %s10 = inlined_call_operand.vmem [shape: f32[2,2,32], index: 10, kind: input, shape index: {}]
  %s11 = inlined_call_operand.hbm [shape: f32[16,128], index: 11, kind: output, shape index: {0}]
  %s12 = inlined_call_operand.hbm [shape: f32[2,2,32], index: 12, kind: output, shape index: {1}]
  %s13 = inlined_call_operand.hbm [shape: f32[2,2,32], index: 13, kind: output, shape index: {2}]
  %14 = xla_tuple %s11, %s12, %s13
  %s15 = sld [smem:[#allocation0]]
  $region70: #{char_rnn_forward.1} parent=0
    _
  %s17 = ssub.s32 1, %s15
  %s18 = scalar_select 0, %s17, %s15
  $region1: #{char_rnn_forward.1} parent=0
    #allocation5 [shape = 'u8[8192]{0}', space=vmem, size = 0x2000, scoped, tag = 'output window, operand 0, single buffered']
    #allocation6 [shape = 's32[1]{0}', space=sflag, size = 0x4, scoped, tag = 'scoped memory for char_rnn_forward.1']
    #allocation7 [shape = 'u8[2048]{0}', space=vmem, size = 0x800, scoped, tag = 'output window, operand 1, single buffered']
    #allocation8 [shape = 's32[1]{0}', space=sflag, size = 0x4, scoped, tag = 'scoped memory for char_rnn_forward.1']
    #allocation9 [shape = 'u8[2048]{0}', space=vmem, size = 0x800, scoped, tag = 'output window, operand 2, single buffered']
    %19 = vsyncpa [#allocation6], 0
    %20 = vsyncpa [#allocation8], 0
    // Predicated region
    $region2: #{char_rnn_forward.1} parent=1 // pred_check
      _
    $region3: #{char_rnn_forward.1} parent=1 // pred_check_branch
      %22 = sbr.rel (0) target = $region5
    $region4: #{char_rnn_forward.1} parent=1 // pred_region
      _
    $region5: #{char_rnn_forward.1} parent=1 // pred_fallthru
      _
    // Predicated region
    $region6: #{char_rnn_forward.1} parent=1 // pred_check
      _
    $region7: #{char_rnn_forward.1} parent=1 // pred_check_branch
      %24 = sbr.rel (0) target = $region9
    $region8: #{char_rnn_forward.1} parent=1 // pred_region
      _
    $region9: #{char_rnn_forward.1} parent=1 // pred_fallthru
      _
    // Predicated region
    $region10: #{char_rnn_forward.1} parent=1 // pred_check
      _
    $region11: #{char_rnn_forward.1} parent=1 // pred_check_branch
      %26 = sbr.rel (0) target = $region13
    $region12: #{char_rnn_forward.1} parent=1 // pred_region
      _
    $region13: #{char_rnn_forward.1} parent=1 // pred_fallthru
      _
    // Predicated region
    $region14: #{char_rnn_forward.1} parent=1 // pred_check
      _
    $region15: #{char_rnn_forward.1} parent=1 // pred_check_branch
      %28 = sbr.rel (0) target = $region17
    $region16: #{char_rnn_forward.1} parent=1 // pred_region
      _
    $region17: #{char_rnn_forward.1} parent=1 // pred_fallthru
      _
    // Predicated region
    $region18: #{char_rnn_forward.1} parent=1 // pred_check
      _
    $region19: #{char_rnn_forward.1} parent=1 // pred_check_branch
      %30 = sbr.rel (0) target = $region21
    $region20: #{char_rnn_forward.1} parent=1 // pred_region
      _
    $region21: #{char_rnn_forward.1} parent=1 // pred_fallthru
      _
    // Predicated region
    $region22: #{char_rnn_forward.1} parent=1 // pred_check
      _
    $region23: #{char_rnn_forward.1} parent=1 // pred_check_branch
      %32 = sbr.rel (0) target = $region25
    $region24: #{char_rnn_forward.1} parent=1 // pred_region
      _
    $region25: #{char_rnn_forward.1} parent=1 // pred_fallthru
      _
    // Predicated region
    $region26: #{char_rnn_forward.1} parent=1 // pred_check
      _
    $region27: #{char_rnn_forward.1} parent=1 // pred_check_branch
      %34 = sbr.rel (0) target = $region29
    $region28: #{char_rnn_forward.1} parent=1 // pred_region
      _
    $region29: #{char_rnn_forward.1} parent=1 // pred_fallthru
      _
    // Predicated region
    $region30: #{char_rnn_forward.1} parent=1 // pred_check
      _
    $region31: #{char_rnn_forward.1} parent=1 // pred_check_branch
      %36 = sbr.rel (0) target = $region33
    $region32: #{char_rnn_forward.1} parent=1 // pred_region
      _
    $region33: #{char_rnn_forward.1} parent=1 // pred_fallthru
      _
    // Predicated region
    $region34: #{char_rnn_forward.1} parent=1 // pred_check
      _
    $region35: #{char_rnn_forward.1} parent=1 // pred_check_branch
      %38 = sbr.rel (0) target = $region37
    $region36: #{char_rnn_forward.1} parent=1 // pred_region
      _
    $region37: #{char_rnn_forward.1} parent=1 // pred_fallthru
      _
    // Predicated region
    $region38: #{char_rnn_forward.1} parent=1 // pred_check
      _
    $region39: #{char_rnn_forward.1} parent=1 // pred_check_branch
      %40 = sbr.rel (0) target = $region41
    $region40: #{char_rnn_forward.1} parent=1 // pred_region
      _
    $region41: #{char_rnn_forward.1} parent=1 // pred_fallthru
      _
    // Predicated region
    $region42: #{char_rnn_forward.1} parent=1 // pred_check
      _
    $region43: #{char_rnn_forward.1} parent=1 // pred_check_branch
      %42 = sbr.rel (0) target = $region45
    $region44: #{char_rnn_forward.1} parent=1 // pred_region
      _
    $region45: #{char_rnn_forward.1} parent=1 // pred_fallthru
      _
    %v43 = vld [vmem:[%s0] sm:$0xff]
    %v44 = vld [vmem:[%s0 + $0x8] sm:$0xff]
    %v45 = vld [vmem:[%s1] sm:$0xff]
    %v46 = vld [vmem:[%s1 + $0x8] sm:$0xff]
    %v47 = vld [vmem:[%s3] sm:$0x1]
    %v49 = vlaneseq
    %v50 = vshrl.u32 %v49, 7
    %v51 = vsub.s32 0, %v50
    %v52 = vrot.slane %v47, %v51
    %vm54 = vcmask 130048
    %v56 = vsel %vm54, %v43, 0
    %v59 = vsel %vm54, %v44, 0
    %61 = vmatprep.subr.mxu0 0.0
    %62 = vmatpush1.msra.mxu0 %v45
    %63 = vmatprep.subr.mxu0 0.0
    %64 = vmatpush1.msra.mxu0 %v46
    %65 = vmatprep.subr.mxu0 0.0
    %66 = vmatpush1.msra.mxu0 0.0
    %67 = vmatprep.subr.mxu0 0.0
    %68 = vmatpush1.msra.mxu0 0.0
    %69 = vmatprep.subr.mxu0 0.0
    %70 = vmatpush1.msra.mxu0 0.0
    %71 = vmatprep.subr.mxu0 0.0
    %72 = vmatpush1.msra.mxu0 0.0
    %73 = vmatprep.subr.mxu0 0.0
    %74 = vmatpush1.msra.mxu0 0.0
    %75 = vmatprep.subr.mxu0 0.0
    %76 = vmatpush1.msra.mxu0 0.0
    %77 = vmatprep.subr.mxu0 0.0
    %78 = vmatpush1.msra.mxu0 0.0
    %79 = vmatprep.subr.mxu0 0.0
    %80 = vmatpush1.msra.mxu0 0.0
    %81 = vmatprep.subr.mxu0 0.0
    %82 = vmatpush1.msra.mxu0 0.0
    %83 = vmatprep.subr.mxu0 0.0
    %84 = vmatpush1.msra.mxu0 0.0
    %85 = vmatprep.subr.mxu0 0.0
    %86 = vmatpush1.msra.mxu0 0.0
    %87 = vmatprep.subr.mxu0 0.0
    %88 = vmatpush1.msra.mxu0 0.0
    %89 = vmatprep.subr.mxu0 0.0
    %90 = vmatpush1.msra.mxu0 0.0
    %91 = vmatprep.subr.mxu0 0.0
    %92 = vmatpush1.msra.mxu0 0.0
    %93 = vmatprep.subr.mxu0 0.0
    %94 = vmatpush1.msra.mxu0 0.0
    %95 = vmatprep.subr.mxu0 0.0
    %96 = vmatpush1.msra.mxu0 0.0
    %97 = vmatprep.subr.mxu0 0.0
    %98 = vmatpush1.msra.mxu0 0.0
    %99 = vmatprep.subr.mxu0 0.0
    %100 = vmatpush1.msra.mxu0 0.0
    %101 = vmatprep.subr.mxu0 0.0
    %102 = vmatpush1.msra.mxu0 0.0
    %103 = vmatprep.subr.mxu0 0.0
    %104 = vmatpush1.msra.mxu0 0.0
    %105 = vmatprep.subr.mxu0 0.0
    %106 = vmatpush1.msra.mxu0 0.0
    %107 = vmatprep.subr.mxu0 0.0
    %108 = vmatpush1.msra.mxu0 0.0
    %109 = vmatprep.subr.mxu0 0.0
    %110 = vmatpush1.msra.mxu0 0.0
    %111 = vmatprep.subr.mxu0 0.0
    %112 = vmatpush1.msra.mxu0 0.0
    %113 = vmatprep.subr.mxu0 0.0
    %114 = vmatpush1.msra.mxu0 0.0
    %115 = vmatprep.subr.mxu0 0.0
    %116 = vmatpush1.msra.mxu0 0.0
    %117 = vmatprep.subr.mxu0 0.0
    %118 = vmatpush1.msra.mxu0 0.0
    %119 = vmatprep.subr.mxu0 0.0
    %120 = vmatpush1.msra.mxu0 0.0
    %121 = vmatprep.subr.mxu0 0.0
    %122 = vmatpush1.msra.mxu0 0.0
    %123 = vmatprep.subr.mxu0 0.0
    %124 = vmatpush1.msra.mxu0 0.0
    %125 = vmatprep.mubr.f32.mxu0 0.0
    %126 = vmatmul.mubr.f32.gmra.mrb[0].mxu0 %v56
    %v127 = vpop.f32.mrb[0].mxu0
    %v128 = vadd.f32 %v52, %v127
    %v129 = vpop.f32.mrb[0].mxu0
    %130 = vmatprep.mubr.f32.mxu0 0.0
    %131 = vmatmul.mubr.f32.gmra.mrb[0].mxu0 %v59
    %v132 = vpop.f32.mrb[0].mxu0
    %v133 = vadd.f32 %v52, %v132
    %v134 = vpop.f32.mrb[0].mxu0
    %135 = vdwg.mxu0
    %136 = vst [vmem:[#allocation2] sm:$0xff] %v128
    %137 = vst [vmem:[#allocation2 + $0x8] sm:$0xff] %v133
    %v138 = vld [vmem:[%s2] sm:$0xff]
    %v139 = vld [vmem:[%s2 + $0x8] sm:$0xff]
    %v140 = vld [vmem:[%s2 + $0x10] sm:$0xff]
    %v141 = vld [vmem:[%s2 + $0x18] sm:$0xff]
    %v142 = vld [vmem:[%s9] sm:$0x3]
    %v143 = vld [vmem:[%s10] sm:$0x3]
    %v144 = vld [vmem:[#allocation2] sm:$0x3]
    %vm145 = vcmask 261120
    %v147 = vsel %vm145, %v142, 0
    %149 = vmatprep.subr.mxu0 0.0
    %150 = vmatpush1.msra.mxu0 %v138
    %151 = vmatprep.subr.mxu0 0.0
    %152 = vmatpush1.msra.mxu0 %v139
    %153 = vmatprep.subr.mxu0 0.0
    %154 = vmatpush1.msra.mxu0 %v140
    %155 = vmatprep.subr.mxu0 0.0
    %156 = vmatpush1.msra.mxu0 %v141
    %157 = vmatprep.subr.mxu0 0.0
    %158 = vmatpush1.msra.mxu0 0.0
    %159 = vmatprep.subr.mxu0 0.0
    %160 = vmatpush1.msra.mxu0 0.0
    %161 = vmatprep.subr.mxu0 0.0
    %162 = vmatpush1.msra.mxu0 0.0
    %163 = vmatprep.subr.mxu0 0.0
    %164 = vmatpush1.msra.mxu0 0.0
    %165 = vmatprep.subr.mxu0 0.0
    %166 = vmatpush1.msra.mxu0 0.0
    %167 = vmatprep.subr.mxu0 0.0
    %168 = vmatpush1.msra.mxu0 0.0
    %169 = vmatprep.subr.mxu0 0.0
    %170 = vmatpush1.msra.mxu0 0.0
    %171 = vmatprep.subr.mxu0 0.0
    %172 = vmatpush1.msra.mxu0 0.0
    %173 = vmatprep.subr.mxu0 0.0
    %174 = vmatpush1.msra.mxu0 0.0
    %175 = vmatprep.subr.mxu0 0.0
    %176 = vmatpush1.msra.mxu0 0.0
    %177 = vmatprep.subr.mxu0 0.0
    %178 = vmatpush1.msra.mxu0 0.0
    %179 = vmatprep.subr.mxu0 0.0
    %180 = vmatpush1.msra.mxu0 0.0
    %181 = vmatprep.subr.mxu0 0.0
    %182 = vmatpush1.msra.mxu0 0.0
    %183 = vmatprep.subr.mxu0 0.0
    %184 = vmatpush1.msra.mxu0 0.0
    %185 = vmatprep.subr.mxu0 0.0
    %186 = vmatpush1.msra.mxu0 0.0
    %187 = vmatprep.subr.mxu0 0.0
    %188 = vmatpush1.msra.mxu0 0.0
    %189 = vmatprep.subr.mxu0 0.0
    %190 = vmatpush1.msra.mxu0 0.0
    %191 = vmatprep.subr.mxu0 0.0
    %192 = vmatpush1.msra.mxu0 0.0
    %193 = vmatprep.subr.mxu0 0.0
    %194 = vmatpush1.msra.mxu0 0.0
    %195 = vmatprep.subr.mxu0 0.0
    %196 = vmatpush1.msra.mxu0 0.0
    %197 = vmatprep.subr.mxu0 0.0
    %198 = vmatpush1.msra.mxu0 0.0
    %199 = vmatprep.subr.mxu0 0.0
    %200 = vmatpush1.msra.mxu0 0.0
    %201 = vmatprep.subr.mxu0 0.0
    %202 = vmatpush1.msra.mxu0 0.0
    %203 = vmatprep.subr.mxu0 0.0
    %204 = vmatpush1.msra.mxu0 0.0
    %205 = vmatprep.subr.mxu0 0.0
    %206 = vmatpush1.msra.mxu0 0.0
    %207 = vmatprep.subr.mxu0 0.0
    %208 = vmatpush1.msra.mxu0 0.0
    %209 = vmatprep.subr.mxu0 0.0
    %210 = vmatpush1.msra.mxu0 0.0
    %211 = vmatprep.subr.mxu0 0.0
    %212 = vmatpush1.msra.mxu0 0.0
    %213 = vmatprep.mubr.f32.mxu0 0.0
    %214 = vmatmul.mubr.f32.gmra.mrb[0].mxu0 %v147
    %v215 = vpop.f32.mrb[0].mxu0
    %v216 = vadd.f32 0.0, %v215
    %v217 = vpop.f32.mrb[0].mxu0
    %218 = vdwg.mxu0
    %v219 = vadd.f32 %v144, %v216
    %v220 = vxor.u32 %v219, 2147483648
    %v221 = vmul.f32 %v220, 1.442695
    %v222 = vpow.pop %v221
    %v223 = vadd.f32 %v222, 1.0
    %v224 = vrcp.pop %v223
    %v225 = vmul.f32 1.0, %v224
    %v226 = vtanh.pop %v219
    %228 = vrot.lane.b32.xlu0 %v143, 32
    %v229 = vpop.permute.xlu0 %228
    %v231 = vmul.f32 %v225, %v229
    %233 = vrot.lane.b32.xlu0 %v226, 64
    %v234 = vpop.permute.xlu0 %233
    %v236 = vmul.f32 %v225, %v234
    %238 = vrot.lane.b32.xlu0 %v236, 32
    %v239 = vpop.permute.xlu0 %238
    %v241 = vadd.f32 %v231, %v239
    %v242 = vtanh.pop %v241
    %244 = vrot.lane.b32.xlu0 %v242, 64
    %v245 = vpop.permute.xlu0 %244
    %v247 = vmul.f32 %v225, %v245
    %249 = vrot.lane.b32.xlu0 %v247, 32
    %v250 = vpop.permute.xlu0 %249
    %vm252 = vcmask 254976
    %253 = vst.msk [vmem:[#allocation3] sm:$0x3] %vm252, %v250
    %s254 = scalar_lea.vmem [#allocation2], 2
    %v255 = vld [vmem:[%s254] sm:$0x3]
    %v256 = vsel %vm145, %v250, 0
    %258 = vmatprep.subr.mxu0 0.0
    %259 = vmatpush1.msra.mxu0 %v138
    %260 = vmatprep.subr.mxu0 0.0
    %261 = vmatpush1.msra.mxu0 %v139
    %262 = vmatprep.subr.mxu0 0.0
    %263 = vmatpush1.msra.mxu0 %v140
    %264 = vmatprep.subr.mxu0 0.0
    %265 = vmatpush1.msra.mxu0 %v141
    %266 = vmatprep.subr.mxu0 0.0
    %267 = vmatpush1.msra.mxu0 0.0
    %268 = vmatprep.subr.mxu0 0.0
    %269 = vmatpush1.msra.mxu0 0.0
    %270 = vmatprep.subr.mxu0 0.0
    %271 = vmatpush1.msra.mxu0 0.0
    %272 = vmatprep.subr.mxu0 0.0
    %273 = vmatpush1.msra.mxu0 0.0
    %274 = vmatprep.subr.mxu0 0.0
    %275 = vmatpush1.msra.mxu0 0.0
    %276 = vmatprep.subr.mxu0 0.0
    %277 = vmatpush1.msra.mxu0 0.0
    %278 = vmatprep.subr.mxu0 0.0
    %279 = vmatpush1.msra.mxu0 0.0
    %280 = vmatprep.subr.mxu0 0.0
    %281 = vmatpush1.msra.mxu0 0.0
    %282 = vmatprep.subr.mxu0 0.0
    %283 = vmatpush1.msra.mxu0 0.0
    %284 = vmatprep.subr.mxu0 0.0
    %285 = vmatpush1.msra.mxu0 0.0
    %286 = vmatprep.subr.mxu0 0.0
    %287 = vmatpush1.msra.mxu0 0.0
    %288 = vmatprep.subr.mxu0 0.0
    %289 = vmatpush1.msra.mxu0 0.0
    %290 = vmatprep.subr.mxu0 0.0
    %291 = vmatpush1.msra.mxu0 0.0
    %292 = vmatprep.subr.mxu0 0.0
    %293 = vmatpush1.msra.mxu0 0.0
    %294 = vmatprep.subr.mxu0 0.0
    %295 = vmatpush1.msra.mxu0 0.0
    %296 = vmatprep.subr.mxu0 0.0
    %297 = vmatpush1.msra.mxu0 0.0
    %298 = vmatprep.subr.mxu0 0.0
    %299 = vmatpush1.msra.mxu0 0.0
    %300 = vmatprep.subr.mxu0 0.0
    %301 = vmatpush1.msra.mxu0 0.0
    %302 = vmatprep.subr.mxu0 0.0
    %303 = vmatpush1.msra.mxu0 0.0
    %304 = vmatprep.subr.mxu0 0.0
    %305 = vmatpush1.msra.mxu0 0.0
    %306 = vmatprep.subr.mxu0 0.0
    %307 = vmatpush1.msra.mxu0 0.0
    %308 = vmatprep.subr.mxu0 0.0
    %309 = vmatpush1.msra.mxu0 0.0
    %310 = vmatprep.subr.mxu0 0.0
    %311 = vmatpush1.msra.mxu0 0.0
    %312 = vmatprep.subr.mxu0 0.0
    %313 = vmatpush1.msra.mxu0 0.0
    %314 = vmatprep.subr.mxu0 0.0
    %315 = vmatpush1.msra.mxu0 0.0
    %316 = vmatprep.subr.mxu0 0.0
    %317 = vmatpush1.msra.mxu0 0.0
    %318 = vmatprep.subr.mxu0 0.0
    %319 = vmatpush1.msra.mxu0 0.0
    %320 = vmatprep.subr.mxu0 0.0
    %321 = vmatpush1.msra.mxu0 0.0
    %322 = vmatprep.mubr.f32.mxu0 0.0
    %323 = vmatmul.mubr.f32.gmra.mrb[0].mxu0 %v256
    %v324 = vpop.f32.mrb[0].mxu0
    %v325 = vadd.f32 0.0, %v324
    %v326 = vpop.f32.mrb[0].mxu0
    %327 = vdwg.mxu0
    %v328 = vadd.f32 %v255, %v325
    %v329 = vxor.u32 %v328, 2147483648
    %v330 = vmul.f32 %v329, 1.442695
    %v331 = vpow.pop %v330
    %v332 = vadd.f32 %v331, 1.0
    %v333 = vrcp.pop %v332
    %v334 = vmul.f32 1.0, %v333
    %v335 = vtanh.pop %v328
    %v336 = vmul.f32 %v334, %v241
    %338 = vrot.lane.b32.xlu0 %v335, 64
    %v339 = vpop.permute.xlu0 %338
    %v341 = vmul.f32 %v334, %v339
    %343 = vrot.lane.b32.xlu0 %v341, 32
    %v344 = vpop.permute.xlu0 %343
    %v346 = vadd.f32 %v336, %v344
    %v347 = vtanh.pop %v346
    %349 = vrot.lane.b32.xlu0 %v347, 64
    %v350 = vpop.permute.xlu0 %349
    %v352 = vmul.f32 %v334, %v350
    %354 = vrot.lane.b32.xlu0 %v352, 32
    %v355 = vpop.permute.xlu0 %354
    %s357 = scalar_lea.vmem [#allocation3], 2
    %358 = vst.msk [vmem:[%s357] sm:$0x3] %vm252, %v355
    %s359 = scalar_lea.vmem [#allocation2], 4
    %v360 = vld [vmem:[%s359] sm:$0x3]
    %v361 = vsel %vm145, %v355, 0
    %363 = vmatprep.subr.mxu0 0.0
    %364 = vmatpush1.msra.mxu0 %v138
    %365 = vmatprep.subr.mxu0 0.0
    %366 = vmatpush1.msra.mxu0 %v139
    %367 = vmatprep.subr.mxu0 0.0
    %368 = vmatpush1.msra.mxu0 %v140
    %369 = vmatprep.subr.mxu0 0.0
    %370 = vmatpush1.msra.mxu0 %v141
    %371 = vmatprep.subr.mxu0 0.0
    %372 = vmatpush1.msra.mxu0 0.0
    %373 = vmatprep.subr.mxu0 0.0
    %374 = vmatpush1.msra.mxu0 0.0
    %375 = vmatprep.subr.mxu0 0.0
    %376 = vmatpush1.msra.mxu0 0.0
    %377 = vmatprep.subr.mxu0 0.0
    %378 = vmatpush1.msra.mxu0 0.0
    %379 = vmatprep.subr.mxu0 0.0
    %380 = vmatpush1.msra.mxu0 0.0
    %381 = vmatprep.subr.mxu0 0.0
    %382 = vmatpush1.msra.mxu0 0.0
    %383 = vmatprep.subr.mxu0 0.0
    %384 = vmatpush1.msra.mxu0 0.0
    %385 = vmatprep.subr.mxu0 0.0
    %386 = vmatpush1.msra.mxu0 0.0
    %387 = vmatprep.subr.mxu0 0.0
    %388 = vmatpush1.msra.mxu0 0.0
    %389 = vmatprep.subr.mxu0 0.0
    %390 = vmatpush1.msra.mxu0 0.0
    %391 = vmatprep.subr.mxu0 0.0
    %392 = vmatpush1.msra.mxu0 0.0
    %393 = vmatprep.subr.mxu0 0.0
    %394 = vmatpush1.msra.mxu0 0.0
    %395 = vmatprep.subr.mxu0 0.0
    %396 = vmatpush1.msra.mxu0 0.0
    %397 = vmatprep.subr.mxu0 0.0
    %398 = vmatpush1.msra.mxu0 0.0
    %399 = vmatprep.subr.mxu0 0.0
    %400 = vmatpush1.msra.mxu0 0.0
    %401 = vmatprep.subr.mxu0 0.0
    %402 = vmatpush1.msra.mxu0 0.0
    %403 = vmatprep.subr.mxu0 0.0
    %404 = vmatpush1.msra.mxu0 0.0
    %405 = vmatprep.subr.mxu0 0.0
    %406 = vmatpush1.msra.mxu0 0.0
    %407 = vmatprep.subr.mxu0 0.0
    %408 = vmatpush1.msra.mxu0 0.0
    %409 = vmatprep.subr.mxu0 0.0
    %410 = vmatpush1.msra.mxu0 0.0
    %411 = vmatprep.subr.mxu0 0.0
    %412 = vmatpush1.msra.mxu0 0.0
    %413 = vmatprep.subr.mxu0 0.0
    %414 = vmatpush1.msra.mxu0 0.0
    %415 = vmatprep.subr.mxu0 0.0
    %416 = vmatpush1.msra.mxu0 0.0
    %417 = vmatprep.subr.mxu0 0.0
    %418 = vmatpush1.msra.mxu0 0.0
    %419 = vmatprep.subr.mxu0 0.0
    %420 = vmatpush1.msra.mxu0 0.0
    %421 = vmatprep.subr.mxu0 0.0
    %422 = vmatpush1.msra.mxu0 0.0
    %423 = vmatprep.subr.mxu0 0.0
    %424 = vmatpush1.msra.mxu0 0.0
    %425 = vmatprep.subr.mxu0 0.0
    %426 = vmatpush1.msra.mxu0 0.0
    %427 = vmatprep.mubr.f32.mxu0 0.0
    %428 = vmatmul.mubr.f32.gmra.mrb[0].mxu0 %v361
    %v429 = vpop.f32.mrb[0].mxu0
    %v430 = vadd.f32 0.0, %v429
    %v431 = vpop.f32.mrb[0].mxu0
    %432 = vdwg.mxu0
    %v433 = vadd.f32 %v360, %v430
    %v434 = vxor.u32 %v433, 2147483648
    %v435 = vmul.f32 %v434, 1.442695
    %v436 = vpow.pop %v435
    %v437 = vadd.f32 %v436, 1.0
    %v438 = vrcp.pop %v437
    %v439 = vmul.f32 1.0, %v438
    %v440 = vtanh.pop %v433
    %v441 = vmul.f32 %v439, %v346
    %443 = vrot.lane.b32.xlu0 %v440, 64
    %v444 = vpop.permute.xlu0 %443
    %v446 = vmul.f32 %v439, %v444
    %448 = vrot.lane.b32.xlu0 %v446, 32
    %v449 = vpop.permute.xlu0 %448
    %v451 = vadd.f32 %v441, %v449
    %v452 = vtanh.pop %v451
    %454 = vrot.lane.b32.xlu0 %v452, 64
    %v455 = vpop.permute.xlu0 %454
    %v457 = vmul.f32 %v439, %v455
    %459 = vrot.lane.b32.xlu0 %v457, 32
    %v460 = vpop.permute.xlu0 %459
    %s462 = scalar_lea.vmem [#allocation3], 4
    %463 = vst.msk [vmem:[%s462] sm:$0x3] %vm252, %v460
    %s464 = scalar_lea.vmem [#allocation2], 6
    %v465 = vld [vmem:[%s464] sm:$0x3]
    %v466 = vsel %vm145, %v460, 0
    %468 = vmatprep.subr.mxu0 0.0
    %469 = vmatpush1.msra.mxu0 %v138
    %470 = vmatprep.subr.mxu0 0.0
    %471 = vmatpush1.msra.mxu0 %v139
    %472 = vmatprep.subr.mxu0 0.0
    %473 = vmatpush1.msra.mxu0 %v140
    %474 = vmatprep.subr.mxu0 0.0
    %475 = vmatpush1.msra.mxu0 %v141
    %476 = vmatprep.subr.mxu0 0.0
    %477 = vmatpush1.msra.mxu0 0.0
    %478 = vmatprep.subr.mxu0 0.0
    %479 = vmatpush1.msra.mxu0 0.0
    %480 = vmatprep.subr.mxu0 0.0
    %481 = vmatpush1.msra.mxu0 0.0
    %482 = vmatprep.subr.mxu0 0.0
    %483 = vmatpush1.msra.mxu0 0.0
    %484 = vmatprep.subr.mxu0 0.0
    %485 = vmatpush1.msra.mxu0 0.0
    %486 = vmatprep.subr.mxu0 0.0
    %487 = vmatpush1.msra.mxu0 0.0
    %488 = vmatprep.subr.mxu0 0.0
    %489 = vmatpush1.msra.mxu0 0.0
    %490 = vmatprep.subr.mxu0 0.0
    %491 = vmatpush1.msra.mxu0 0.0
    %492 = vmatprep.subr.mxu0 0.0
    %493 = vmatpush1.msra.mxu0 0.0
    %494 = vmatprep.subr.mxu0 0.0
    %495 = vmatpush1.msra.mxu0 0.0
    %496 = vmatprep.subr.mxu0 0.0
    %497 = vmatpush1.msra.mxu0 0.0
    %498 = vmatprep.subr.mxu0 0.0
    %499 = vmatpush1.msra.mxu0 0.0
    %500 = vmatprep.subr.mxu0 0.0
    %501 = vmatpush1.msra.mxu0 0.0
    %502 = vmatprep.subr.mxu0 0.0
    %503 = vmatpush1.msra.mxu0 0.0
    %504 = vmatprep.subr.mxu0 0.0
    %505 = vmatpush1.msra.mxu0 0.0
    %506 = vmatprep.subr.mxu0 0.0
    %507 = vmatpush1.msra.mxu0 0.0
    %508 = vmatprep.subr.mxu0 0.0
    %509 = vmatpush1.msra.mxu0 0.0
    %510 = vmatprep.subr.mxu0 0.0
    %511 = vmatpush1.msra.mxu0 0.0
    %512 = vmatprep.subr.mxu0 0.0
    %513 = vmatpush1.msra.mxu0 0.0
    %514 = vmatprep.subr.mxu0 0.0
    %515 = vmatpush1.msra.mxu0 0.0
    %516 = vmatprep.subr.mxu0 0.0
    %517 = vmatpush1.msra.mxu0 0.0
    %518 = vmatprep.subr.mxu0 0.0
    %519 = vmatpush1.msra.mxu0 0.0
    %520 = vmatprep.subr.mxu0 0.0
    %521 = vmatpush1.msra.mxu0 0.0
    %522 = vmatprep.subr.mxu0 0.0
    %523 = vmatpush1.msra.mxu0 0.0
    %524 = vmatprep.subr.mxu0 0.0
    %525 = vmatpush1.msra.mxu0 0.0
    %526 = vmatprep.subr.mxu0 0.0
    %527 = vmatpush1.msra.mxu0 0.0
    %528 = vmatprep.subr.mxu0 0.0
    %529 = vmatpush1.msra.mxu0 0.0
    %530 = vmatprep.subr.mxu0 0.0
    %531 = vmatpush1.msra.mxu0 0.0
    %532 = vmatprep.mubr.f32.mxu0 0.0
    %533 = vmatmul.mubr.f32.gmra.mrb[0].mxu0 %v466
    %v534 = vpop.f32.mrb[0].mxu0
    %v535 = vadd.f32 0.0, %v534
    %v536 = vpop.f32.mrb[0].mxu0
    %537 = vdwg.mxu0
    %v538 = vadd.f32 %v465, %v535
    %v539 = vxor.u32 %v538, 2147483648
    %v540 = vmul.f32 %v539, 1.442695
    %v541 = vpow.pop %v540
    %v542 = vadd.f32 %v541, 1.0
    %v543 = vrcp.pop %v542
    %v544 = vmul.f32 1.0, %v543
    %v545 = vtanh.pop %v538
    %v546 = vmul.f32 %v544, %v451
    %548 = vrot.lane.b32.xlu0 %v545, 64
    %v549 = vpop.permute.xlu0 %548
    %v551 = vmul.f32 %v544, %v549
    %553 = vrot.lane.b32.xlu0 %v551, 32
    %v554 = vpop.permute.xlu0 %553
    %v556 = vadd.f32 %v546, %v554
    %v557 = vtanh.pop %v556
    %559 = vrot.lane.b32.xlu0 %v557, 64
    %v560 = vpop.permute.xlu0 %559
    %v562 = vmul.f32 %v544, %v560
    %564 = vrot.lane.b32.xlu0 %v562, 32
    %v565 = vpop.permute.xlu0 %564
    %s567 = scalar_lea.vmem [#allocation3], 6
    %568 = vst.msk [vmem:[%s567] sm:$0x3] %vm252, %v565
    %s569 = scalar_lea.vmem [#allocation2], 8
    %v570 = vld [vmem:[%s569] sm:$0x3]
    %v571 = vsel %vm145, %v565, 0
    %573 = vmatprep.subr.mxu0 0.0
    %574 = vmatpush1.msra.mxu0 %v138
    %575 = vmatprep.subr.mxu0 0.0
    %576 = vmatpush1.msra.mxu0 %v139
    %577 = vmatprep.subr.mxu0 0.0
    %578 = vmatpush1.msra.mxu0 %v140
    %579 = vmatprep.subr.mxu0 0.0
    %580 = vmatpush1.msra.mxu0 %v141
    %581 = vmatprep.subr.mxu0 0.0
    %582 = vmatpush1.msra.mxu0 0.0
    %583 = vmatprep.subr.mxu0 0.0
    %584 = vmatpush1.msra.mxu0 0.0
    %585 = vmatprep.subr.mxu0 0.0
    %586 = vmatpush1.msra.mxu0 0.0
    %587 = vmatprep.subr.mxu0 0.0
    %588 = vmatpush1.msra.mxu0 0.0
    %589 = vmatprep.subr.mxu0 0.0
    %590 = vmatpush1.msra.mxu0 0.0
    %591 = vmatprep.subr.mxu0 0.0
    %592 = vmatpush1.msra.mxu0 0.0
    %593 = vmatprep.subr.mxu0 0.0
    %594 = vmatpush1.msra.mxu0 0.0
    %595 = vmatprep.subr.mxu0 0.0
    %596 = vmatpush1.msra.mxu0 0.0
    %597 = vmatprep.subr.mxu0 0.0
    %598 = vmatpush1.msra.mxu0 0.0
    %599 = vmatprep.subr.mxu0 0.0
    %600 = vmatpush1.msra.mxu0 0.0
    %601 = vmatprep.subr.mxu0 0.0
    %602 = vmatpush1.msra.mxu0 0.0
    %603 = vmatprep.subr.mxu0 0.0
    %604 = vmatpush1.msra.mxu0 0.0
    %605 = vmatprep.subr.mxu0 0.0
    %606 = vmatpush1.msra.mxu0 0.0
    %607 = vmatprep.subr.mxu0 0.0
    %608 = vmatpush1.msra.mxu0 0.0
    %609 = vmatprep.subr.mxu0 0.0
    %610 = vmatpush1.msra.mxu0 0.0
    %611 = vmatprep.subr.mxu0 0.0
    %612 = vmatpush1.msra.mxu0 0.0
    %613 = vmatprep.subr.mxu0 0.0
    %614 = vmatpush1.msra.mxu0 0.0
    %615 = vmatprep.subr.mxu0 0.0
    %616 = vmatpush1.msra.mxu0 0.0
    %617 = vmatprep.subr.mxu0 0.0
    %618 = vmatpush1.msra.mxu0 0.0
    %619 = vmatprep.subr.mxu0 0.0
    %620 = vmatpush1.msra.mxu0 0.0
    %621 = vmatprep.subr.mxu0 0.0
    %622 = vmatpush1.msra.mxu0 0.0
    %623 = vmatprep.subr.mxu0 0.0
    %624 = vmatpush1.msra.mxu0 0.0
    %625 = vmatprep.subr.mxu0 0.0
    %626 = vmatpush1.msra.mxu0 0.0
    %627 = vmatprep.subr.mxu0 0.0
    %628 = vmatpush1.msra.mxu0 0.0
    %629 = vmatprep.subr.mxu0 0.0
    %630 = vmatpush1.msra.mxu0 0.0
    %631 = vmatprep.subr.mxu0 0.0
    %632 = vmatpush1.msra.mxu0 0.0
    %633 = vmatprep.subr.mxu0 0.0
    %634 = vmatpush1.msra.mxu0 0.0
    %635 = vmatprep.subr.mxu0 0.0
    %636 = vmatpush1.msra.mxu0 0.0
    %637 = vmatprep.mubr.f32.mxu0 0.0
    %638 = vmatmul.mubr.f32.gmra.mrb[0].mxu0 %v571
    %v639 = vpop.f32.mrb[0].mxu0
    %v640 = vadd.f32 0.0, %v639
    %v641 = vpop.f32.mrb[0].mxu0
    %642 = vdwg.mxu0
    %v643 = vadd.f32 %v570, %v640
    %v644 = vxor.u32 %v643, 2147483648
    %v645 = vmul.f32 %v644, 1.442695
    %v646 = vpow.pop %v645
    %v647 = vadd.f32 %v646, 1.0
    %v648 = vrcp.pop %v647
    %v649 = vmul.f32 1.0, %v648
    %v650 = vtanh.pop %v643
    %v651 = vmul.f32 %v649, %v556
    %653 = vrot.lane.b32.xlu0 %v650, 64
    %v654 = vpop.permute.xlu0 %653
    %v656 = vmul.f32 %v649, %v654
    %658 = vrot.lane.b32.xlu0 %v656, 32
    %v659 = vpop.permute.xlu0 %658
    %v661 = vadd.f32 %v651, %v659
    %v662 = vtanh.pop %v661
    %664 = vrot.lane.b32.xlu0 %v662, 64
    %v665 = vpop.permute.xlu0 %664
    %v667 = vmul.f32 %v649, %v665
    %669 = vrot.lane.b32.xlu0 %v667, 32
    %v670 = vpop.permute.xlu0 %669
    %s672 = scalar_lea.vmem [#allocation3], 8
    %673 = vst.msk [vmem:[%s672] sm:$0x3] %vm252, %v670
    %s674 = scalar_lea.vmem [#allocation2], 10
    %v675 = vld [vmem:[%s674] sm:$0x3]
    %v676 = vsel %vm145, %v670, 0
    %678 = vmatprep.subr.mxu0 0.0
    %679 = vmatpush1.msra.mxu0 %v138
    %680 = vmatprep.subr.mxu0 0.0
    %681 = vmatpush1.msra.mxu0 %v139
    %682 = vmatprep.subr.mxu0 0.0
    %683 = vmatpush1.msra.mxu0 %v140
    %684 = vmatprep.subr.mxu0 0.0
    %685 = vmatpush1.msra.mxu0 %v141
    %686 = vmatprep.subr.mxu0 0.0
    %687 = vmatpush1.msra.mxu0 0.0
    %688 = vmatprep.subr.mxu0 0.0
    %689 = vmatpush1.msra.mxu0 0.0
    %690 = vmatprep.subr.mxu0 0.0
    %691 = vmatpush1.msra.mxu0 0.0
    %692 = vmatprep.subr.mxu0 0.0
    %693 = vmatpush1.msra.mxu0 0.0
    %694 = vmatprep.subr.mxu0 0.0
    %695 = vmatpush1.msra.mxu0 0.0
    %696 = vmatprep.subr.mxu0 0.0
    %697 = vmatpush1.msra.mxu0 0.0
    %698 = vmatprep.subr.mxu0 0.0
    %699 = vmatpush1.msra.mxu0 0.0
    %700 = vmatprep.subr.mxu0 0.0
    %701 = vmatpush1.msra.mxu0 0.0
    %702 = vmatprep.subr.mxu0 0.0
    %703 = vmatpush1.msra.mxu0 0.0
    %704 = vmatprep.subr.mxu0 0.0
    %705 = vmatpush1.msra.mxu0 0.0
    %706 = vmatprep.subr.mxu0 0.0
    %707 = vmatpush1.msra.mxu0 0.0
    %708 = vmatprep.subr.mxu0 0.0
    %709 = vmatpush1.msra.mxu0 0.0
    %710 = vmatprep.subr.mxu0 0.0
    %711 = vmatpush1.msra.mxu0 0.0
    %712 = vmatprep.subr.mxu0 0.0
    %713 = vmatpush1.msra.mxu0 0.0
    %714 = vmatprep.subr.mxu0 0.0
    %715 = vmatpush1.msra.mxu0 0.0
    %716 = vmatprep.subr.mxu0 0.0
    %717 = vmatpush1.msra.mxu0 0.0
    %718 = vmatprep.subr.mxu0 0.0
    %719 = vmatpush1.msra.mxu0 0.0
    %720 = vmatprep.subr.mxu0 0.0
    %721 = vmatpush1.msra.mxu0 0.0
    %722 = vmatprep.subr.mxu0 0.0
    %723 = vmatpush1.msra.mxu0 0.0
    %724 = vmatprep.subr.mxu0 0.0
    %725 = vmatpush1.msra.mxu0 0.0
    %726 = vmatprep.subr.mxu0 0.0
    %727 = vmatpush1.msra.mxu0 0.0
    %728 = vmatprep.subr.mxu0 0.0
    %729 = vmatpush1.msra.mxu0 0.0
    %730 = vmatprep.subr.mxu0 0.0
    %731 = vmatpush1.msra.mxu0 0.0
    %732 = vmatprep.subr.mxu0 0.0
    %733 = vmatpush1.msra.mxu0 0.0
    %734 = vmatprep.subr.mxu0 0.0
    %735 = vmatpush1.msra.mxu0 0.0
    %736 = vmatprep.subr.mxu0 0.0
    %737 = vmatpush1.msra.mxu0 0.0
    %738 = vmatprep.subr.mxu0 0.0
    %739 = vmatpush1.msra.mxu0 0.0
    %740 = vmatprep.subr.mxu0 0.0
    %741 = vmatpush1.msra.mxu0 0.0
    %742 = vmatprep.mubr.f32.mxu0 0.0
    %743 = vmatmul.mubr.f32.gmra.mrb[0].mxu0 %v676
    %v744 = vpop.f32.mrb[0].mxu0
    %v745 = vadd.f32 0.0, %v744
    %v746 = vpop.f32.mrb[0].mxu0
    %747 = vdwg.mxu0
    %v748 = vadd.f32 %v675, %v745
    %v749 = vxor.u32 %v748, 2147483648
    %v750 = vmul.f32 %v749, 1.442695
    %v751 = vpow.pop %v750
    %v752 = vadd.f32 %v751, 1.0
    %v753 = vrcp.pop %v752
    %v754 = vmul.f32 1.0, %v753
    %v755 = vtanh.pop %v748
    %v756 = vmul.f32 %v754, %v661
    %758 = vrot.lane.b32.xlu0 %v755, 64
    %v759 = vpop.permute.xlu0 %758
    %v761 = vmul.f32 %v754, %v759
    %763 = vrot.lane.b32.xlu0 %v761, 32
    %v764 = vpop.permute.xlu0 %763
    %v766 = vadd.f32 %v756, %v764
    %v767 = vtanh.pop %v766
    %769 = vrot.lane.b32.xlu0 %v767, 64
    %v770 = vpop.permute.xlu0 %769
    %v772 = vmul.f32 %v754, %v770
    %774 = vrot.lane.b32.xlu0 %v772, 32
    %v775 = vpop.permute.xlu0 %774
    %s777 = scalar_lea.vmem [#allocation3], 10
    %778 = vst.msk [vmem:[%s777] sm:$0x3] %vm252, %v775
    %s779 = scalar_lea.vmem [#allocation2], 12
    %v780 = vld [vmem:[%s779] sm:$0x3]
    %v781 = vsel %vm145, %v775, 0
    %783 = vmatprep.subr.mxu0 0.0
    %784 = vmatpush1.msra.mxu0 %v138
    %785 = vmatprep.subr.mxu0 0.0
    %786 = vmatpush1.msra.mxu0 %v139
    %787 = vmatprep.subr.mxu0 0.0
    %788 = vmatpush1.msra.mxu0 %v140
    %789 = vmatprep.subr.mxu0 0.0
    %790 = vmatpush1.msra.mxu0 %v141
    %791 = vmatprep.subr.mxu0 0.0
    %792 = vmatpush1.msra.mxu0 0.0
    %793 = vmatprep.subr.mxu0 0.0
    %794 = vmatpush1.msra.mxu0 0.0
    %795 = vmatprep.subr.mxu0 0.0
    %796 = vmatpush1.msra.mxu0 0.0
    %797 = vmatprep.subr.mxu0 0.0
    %798 = vmatpush1.msra.mxu0 0.0
    %799 = vmatprep.subr.mxu0 0.0
    %800 = vmatpush1.msra.mxu0 0.0
    %801 = vmatprep.subr.mxu0 0.0
    %802 = vmatpush1.msra.mxu0 0.0
    %803 = vmatprep.subr.mxu0 0.0
    %804 = vmatpush1.msra.mxu0 0.0
    %805 = vmatprep.subr.mxu0 0.0
    %806 = vmatpush1.msra.mxu0 0.0
    %807 = vmatprep.subr.mxu0 0.0
    %808 = vmatpush1.msra.mxu0 0.0
    %809 = vmatprep.subr.mxu0 0.0
    %810 = vmatpush1.msra.mxu0 0.0
    %811 = vmatprep.subr.mxu0 0.0
    %812 = vmatpush1.msra.mxu0 0.0
    %813 = vmatprep.subr.mxu0 0.0
    %814 = vmatpush1.msra.mxu0 0.0
    %815 = vmatprep.subr.mxu0 0.0
    %816 = vmatpush1.msra.mxu0 0.0
    %817 = vmatprep.subr.mxu0 0.0
    %818 = vmatpush1.msra.mxu0 0.0
    %819 = vmatprep.subr.mxu0 0.0
    %820 = vmatpush1.msra.mxu0 0.0
    %821 = vmatprep.subr.mxu0 0.0
    %822 = vmatpush1.msra.mxu0 0.0
    %823 = vmatprep.subr.mxu0 0.0
    %824 = vmatpush1.msra.mxu0 0.0
    %825 = vmatprep.subr.mxu0 0.0
    %826 = vmatpush1.msra.mxu0 0.0
    %827 = vmatprep.subr.mxu0 0.0
    %828 = vmatpush1.msra.mxu0 0.0
    %829 = vmatprep.subr.mxu0 0.0
    %830 = vmatpush1.msra.mxu0 0.0
    %831 = vmatprep.subr.mxu0 0.0
    %832 = vmatpush1.msra.mxu0 0.0
    %833 = vmatprep.subr.mxu0 0.0
    %834 = vmatpush1.msra.mxu0 0.0
    %835 = vmatprep.subr.mxu0 0.0
    %836 = vmatpush1.msra.mxu0 0.0
    %837 = vmatprep.subr.mxu0 0.0
    %838 = vmatpush1.msra.mxu0 0.0
    %839 = vmatprep.subr.mxu0 0.0
    %840 = vmatpush1.msra.mxu0 0.0
    %841 = vmatprep.subr.mxu0 0.0
    %842 = vmatpush1.msra.mxu0 0.0
    %843 = vmatprep.subr.mxu0 0.0
    %844 = vmatpush1.msra.mxu0 0.0
    %845 = vmatprep.subr.mxu0 0.0
    %846 = vmatpush1.msra.mxu0 0.0
    %847 = vmatprep.mubr.f32.mxu0 0.0
    %848 = vmatmul.mubr.f32.gmra.mrb[0].mxu0 %v781
    %v849 = vpop.f32.mrb[0].mxu0
    %v850 = vadd.f32 0.0, %v849
    %v851 = vpop.f32.mrb[0].mxu0
    %852 = vdwg.mxu0
    %v853 = vadd.f32 %v780, %v850
    %v854 = vxor.u32 %v853, 2147483648
    %v855 = vmul.f32 %v854, 1.442695
    %v856 = vpow.pop %v855
    %v857 = vadd.f32 %v856, 1.0
    %v858 = vrcp.pop %v857
    %v859 = vmul.f32 1.0, %v858
    %v860 = vtanh.pop %v853
    %v861 = vmul.f32 %v859, %v766
    %863 = vrot.lane.b32.xlu0 %v860, 64
    %v864 = vpop.permute.xlu0 %863
    %v866 = vmul.f32 %v859, %v864
    %868 = vrot.lane.b32.xlu0 %v866, 32
    %v869 = vpop.permute.xlu0 %868
    %v871 = vadd.f32 %v861, %v869
    %v872 = vtanh.pop %v871
    %874 = vrot.lane.b32.xlu0 %v872, 64
    %v875 = vpop.permute.xlu0 %874
    %v877 = vmul.f32 %v859, %v875
    %879 = vrot.lane.b32.xlu0 %v877, 32
    %v880 = vpop.permute.xlu0 %879
    %s882 = scalar_lea.vmem [#allocation3], 12
    %883 = vst.msk [vmem:[%s882] sm:$0x3] %vm252, %v880
    %s884 = scalar_lea.vmem [#allocation2], 14
    %v885 = vld [vmem:[%s884] sm:$0x3]
    %v886 = vsel %vm145, %v880, 0
    %888 = vmatprep.subr.mxu0 0.0
    %889 = vmatpush1.msra.mxu0 %v138
    %890 = vmatprep.subr.mxu0 0.0
    %891 = vmatpush1.msra.mxu0 %v139
    %892 = vmatprep.subr.mxu0 0.0
    %893 = vmatpush1.msra.mxu0 %v140
    %894 = vmatprep.subr.mxu0 0.0
    %895 = vmatpush1.msra.mxu0 %v141
    %896 = vmatprep.subr.mxu0 0.0
    %897 = vmatpush1.msra.mxu0 0.0
    %898 = vmatprep.subr.mxu0 0.0
    %899 = vmatpush1.msra.mxu0 0.0
    %900 = vmatprep.subr.mxu0 0.0
    %901 = vmatpush1.msra.mxu0 0.0
    %902 = vmatprep.subr.mxu0 0.0
    %903 = vmatpush1.msra.mxu0 0.0
    %904 = vmatprep.subr.mxu0 0.0
    %905 = vmatpush1.msra.mxu0 0.0
    %906 = vmatprep.subr.mxu0 0.0
    %907 = vmatpush1.msra.mxu0 0.0
    %908 = vmatprep.subr.mxu0 0.0
    %909 = vmatpush1.msra.mxu0 0.0
    %910 = vmatprep.subr.mxu0 0.0
    %911 = vmatpush1.msra.mxu0 0.0
    %912 = vmatprep.subr.mxu0 0.0
    %913 = vmatpush1.msra.mxu0 0.0
    %914 = vmatprep.subr.mxu0 0.0
    %915 = vmatpush1.msra.mxu0 0.0
    %916 = vmatprep.subr.mxu0 0.0
    %917 = vmatpush1.msra.mxu0 0.0
    %918 = vmatprep.subr.mxu0 0.0
    %919 = vmatpush1.msra.mxu0 0.0
    %920 = vmatprep.subr.mxu0 0.0
    %921 = vmatpush1.msra.mxu0 0.0
    %922 = vmatprep.subr.mxu0 0.0
    %923 = vmatpush1.msra.mxu0 0.0
    %924 = vmatprep.subr.mxu0 0.0
    %925 = vmatpush1.msra.mxu0 0.0
    %926 = vmatprep.subr.mxu0 0.0
    %927 = vmatpush1.msra.mxu0 0.0
    %928 = vmatprep.subr.mxu0 0.0
    %929 = vmatpush1.msra.mxu0 0.0
    %930 = vmatprep.subr.mxu0 0.0
    %931 = vmatpush1.msra.mxu0 0.0
    %932 = vmatprep.subr.mxu0 0.0
    %933 = vmatpush1.msra.mxu0 0.0
    %934 = vmatprep.subr.mxu0 0.0
    %935 = vmatpush1.msra.mxu0 0.0
    %936 = vmatprep.subr.mxu0 0.0
    %937 = vmatpush1.msra.mxu0 0.0
    %938 = vmatprep.subr.mxu0 0.0
    %939 = vmatpush1.msra.mxu0 0.0
    %940 = vmatprep.subr.mxu0 0.0
    %941 = vmatpush1.msra.mxu0 0.0
    %942 = vmatprep.subr.mxu0 0.0
    %943 = vmatpush1.msra.mxu0 0.0
    %944 = vmatprep.subr.mxu0 0.0
    %945 = vmatpush1.msra.mxu0 0.0
    %946 = vmatprep.subr.mxu0 0.0
    %947 = vmatpush1.msra.mxu0 0.0
    %948 = vmatprep.subr.mxu0 0.0
    %949 = vmatpush1.msra.mxu0 0.0
    %950 = vmatprep.subr.mxu0 0.0
    %951 = vmatpush1.msra.mxu0 0.0
    %952 = vmatprep.mubr.f32.mxu0 0.0
    %953 = vmatmul.mubr.f32.gmra.mrb[0].mxu0 %v886
    %v954 = vpop.f32.mrb[0].mxu0
    %v955 = vadd.f32 0.0, %v954
    %v956 = vpop.f32.mrb[0].mxu0
    %957 = vdwg.mxu0
    %v958 = vadd.f32 %v885, %v955
    %v959 = vxor.u32 %v958, 2147483648
    %v960 = vmul.f32 %v959, 1.442695
    %v961 = vpow.pop %v960
    %v962 = vadd.f32 %v961, 1.0
    %v963 = vrcp.pop %v962
    %v964 = vmul.f32 1.0, %v963
    %v965 = vtanh.pop %v958
    %v966 = vmul.f32 %v964, %v871
    %968 = vrot.lane.b32.xlu0 %v965, 64
    %v969 = vpop.permute.xlu0 %968
    %v971 = vmul.f32 %v964, %v969
    %973 = vrot.lane.b32.xlu0 %v971, 32
    %v974 = vpop.permute.xlu0 %973
    %v976 = vadd.f32 %v966, %v974
    %v977 = vtanh.pop %v976
    %979 = vrot.lane.b32.xlu0 %v977, 64
    %v980 = vpop.permute.xlu0 %979
    %v982 = vmul.f32 %v964, %v980
    %984 = vrot.lane.b32.xlu0 %v982, 32
    %v985 = vpop.permute.xlu0 %984
    %s987 = scalar_lea.vmem [#allocation3], 14
    %988 = vst.msk [vmem:[%s987] sm:$0x3] %vm252, %v985
    %989 = vst.msk [vmem:[#allocation7] sm:$0x3] %vm252, %v985
    %991 = vrot.lane.b32.xlu0 %v976, 96
    %v992 = vpop.permute.xlu0 %991
    %994 = vst.msk [vmem:[#allocation9] sm:$0x3] %vm252, %v992
    %v995 = vld [vmem:[#allocation3] sm:$0xff]
    %v996 = vld [vmem:[#allocation3 + $0x8] sm:$0xff]
    %v997 = vld [vmem:[%s4] sm:$0xff]
    %v998 = vld [vmem:[%s4 + $0x8] sm:$0xff]
    %v999 = vld [vmem:[%s4 + $0x10] sm:$0xff]
    %v1000 = vld [vmem:[%s4 + $0x18] sm:$0xff]
    %v1001 = vld [vmem:[%s6] sm:$0x1]
    %v1003 = vlaneseq
    %v1004 = vshrl.u32 %v1003, 7
    %v1005 = vsub.s32 0, %v1004
    %v1006 = vrot.slane %v1001, %v1005
    %v1009 = vsel %vm145, %v995, 0
    %v1012 = vsel %vm145, %v996, 0
    %1014 = vmatprep.subr.mxu0 0.0
    %1015 = vmatpush1.msra.mxu0 %v997
    %1016 = vmatprep.subr.mxu0 0.0
    %1017 = vmatpush1.msra.mxu0 %v998
    %1018 = vmatprep.subr.mxu0 0.0
    %1019 = vmatpush1.msra.mxu0 %v999
    %1020 = vmatprep.subr.mxu0 0.0
    %1021 = vmatpush1.msra.mxu0 %v1000
    %1022 = vmatprep.subr.mxu0 0.0
    %1023 = vmatpush1.msra.mxu0 0.0
    %1024 = vmatprep.subr.mxu0 0.0
    %1025 = vmatpush1.msra.mxu0 0.0
    %1026 = vmatprep.subr.mxu0 0.0
    %1027 = vmatpush1.msra.mxu0 0.0
    %1028 = vmatprep.subr.mxu0 0.0
    %1029 = vmatpush1.msra.mxu0 0.0
    %1030 = vmatprep.subr.mxu0 0.0
    %1031 = vmatpush1.msra.mxu0 0.0
    %1032 = vmatprep.subr.mxu0 0.0
    %1033 = vmatpush1.msra.mxu0 0.0
    %1034 = vmatprep.subr.mxu0 0.0
    %1035 = vmatpush1.msra.mxu0 0.0
    %1036 = vmatprep.subr.mxu0 0.0
    %1037 = vmatpush1.msra.mxu0 0.0
    %1038 = vmatprep.subr.mxu0 0.0
    %1039 = vmatpush1.msra.mxu0 0.0
    %1040 = vmatprep.subr.mxu0 0.0
    %1041 = vmatpush1.msra.mxu0 0.0
    %1042 = vmatprep.subr.mxu0 0.0
    %1043 = vmatpush1.msra.mxu0 0.0
    %1044 = vmatprep.subr.mxu0 0.0
    %1045 = vmatpush1.msra.mxu0 0.0
    %1046 = vmatprep.subr.mxu0 0.0
    %1047 = vmatpush1.msra.mxu0 0.0
    %1048 = vmatprep.subr.mxu0 0.0
    %1049 = vmatpush1.msra.mxu0 0.0
    %1050 = vmatprep.subr.mxu0 0.0
    %1051 = vmatpush1.msra.mxu0 0.0
    %1052 = vmatprep.subr.mxu0 0.0
    %1053 = vmatpush1.msra.mxu0 0.0
    %1054 = vmatprep.subr.mxu0 0.0
    %1055 = vmatpush1.msra.mxu0 0.0
    %1056 = vmatprep.subr.mxu0 0.0
    %1057 = vmatpush1.msra.mxu0 0.0
    %1058 = vmatprep.subr.mxu0 0.0
    %1059 = vmatpush1.msra.mxu0 0.0
    %1060 = vmatprep.subr.mxu0 0.0
    %1061 = vmatpush1.msra.mxu0 0.0
    %1062 = vmatprep.subr.mxu0 0.0
    %1063 = vmatpush1.msra.mxu0 0.0
    %1064 = vmatprep.subr.mxu0 0.0
    %1065 = vmatpush1.msra.mxu0 0.0
    %1066 = vmatprep.subr.mxu0 0.0
    %1067 = vmatpush1.msra.mxu0 0.0
    %1068 = vmatprep.subr.mxu0 0.0
    %1069 = vmatpush1.msra.mxu0 0.0
    %1070 = vmatprep.subr.mxu0 0.0
    %1071 = vmatpush1.msra.mxu0 0.0
    %1072 = vmatprep.subr.mxu0 0.0
    %1073 = vmatpush1.msra.mxu0 0.0
    %1074 = vmatprep.subr.mxu0 0.0
    %1075 = vmatpush1.msra.mxu0 0.0
    %1076 = vmatprep.subr.mxu0 0.0
    %1077 = vmatpush1.msra.mxu0 0.0
    %1078 = vmatprep.mubr.f32.mxu0 0.0
    %1079 = vmatmul.mubr.f32.gmra.mrb[0].mxu0 %v1009
    %v1080 = vpop.f32.mrb[0].mxu0
    %v1081 = vadd.f32 %v1006, %v1080
    %v1082 = vpop.f32.mrb[0].mxu0
    %1083 = vmatprep.mubr.f32.mxu0 0.0
    %1084 = vmatmul.mubr.f32.gmra.mrb[0].mxu0 %v1012
    %v1085 = vpop.f32.mrb[0].mxu0
    %v1086 = vadd.f32 %v1006, %v1085
    %v1087 = vpop.f32.mrb[0].mxu0
    %1088 = vdwg.mxu0
    %1089 = vst [vmem:[#allocation2] sm:$0xff] %v1081
    %1090 = vst [vmem:[#allocation2 + $0x8] sm:$0xff] %v1086
    %v1091 = vld [vmem:[%s5] sm:$0xff]
    %v1092 = vld [vmem:[%s5 + $0x8] sm:$0xff]
    %v1093 = vld [vmem:[%s5 + $0x10] sm:$0xff]
    %v1094 = vld [vmem:[%s5 + $0x18] sm:$0xff]
    %s1095 = scalar_lea.vmem %s9, 2
    %v1096 = vld [vmem:[%s1095] sm:$0x3]
    %s1097 = scalar_lea.vmem %s10, 2
    %v1098 = vld [vmem:[%s1097] sm:$0x3]
    %v1099 = vld [vmem:[#allocation2] sm:$0x3]
    %v1101 = vsel %vm145, %v1096, 0
    %1103 = vmatprep.subr.mxu0 0.0
    %1104 = vmatpush1.msra.mxu0 %v1091
    %1105 = vmatprep.subr.mxu0 0.0
    %1106 = vmatpush1.msra.mxu0 %v1092
    %1107 = vmatprep.subr.mxu0 0.0
    %1108 = vmatpush1.msra.mxu0 %v1093
    %1109 = vmatprep.subr.mxu0 0.0
    %1110 = vmatpush1.msra.mxu0 %v1094
    %1111 = vmatprep.subr.mxu0 0.0
    %1112 = vmatpush1.msra.mxu0 0.0
    %1113 = vmatprep.subr.mxu0 0.0
    %1114 = vmatpush1.msra.mxu0 0.0
    %1115 = vmatprep.subr.mxu0 0.0
    %1116 = vmatpush1.msra.mxu0 0.0
    %1117 = vmatprep.subr.mxu0 0.0
    %1118 = vmatpush1.msra.mxu0 0.0
    %1119 = vmatprep.subr.mxu0 0.0
    %1120 = vmatpush1.msra.mxu0 0.0
    %1121 = vmatprep.subr.mxu0 0.0
    %1122 = vmatpush1.msra.mxu0 0.0
    %1123 = vmatprep.subr.mxu0 0.0
    %1124 = vmatpush1.msra.mxu0 0.0
    %1125 = vmatprep.subr.mxu0 0.0
    %1126 = vmatpush1.msra.mxu0 0.0
    %1127 = vmatprep.subr.mxu0 0.0
    %1128 = vmatpush1.msra.mxu0 0.0
    %1129 = vmatprep.subr.mxu0 0.0
    %1130 = vmatpush1.msra.mxu0 0.0
    %1131 = vmatprep.subr.mxu0 0.0
    %1132 = vmatpush1.msra.mxu0 0.0
    %1133 = vmatprep.subr.mxu0 0.0
    %1134 = vmatpush1.msra.mxu0 0.0
    %1135 = vmatprep.subr.mxu0 0.0
    %1136 = vmatpush1.msra.mxu0 0.0
    %1137 = vmatprep.subr.mxu0 0.0
    %1138 = vmatpush1.msra.mxu0 0.0
    %1139 = vmatprep.subr.mxu0 0.0
    %1140 = vmatpush1.msra.mxu0 0.0
    %1141 = vmatprep.subr.mxu0 0.0
    %1142 = vmatpush1.msra.mxu0 0.0
    %1143 = vmatprep.subr.mxu0 0.0
    %1144 = vmatpush1.msra.mxu0 0.0
    %1145 = vmatprep.subr.mxu0 0.0
    %1146 = vmatpush1.msra.mxu0 0.0
    %1147 = vmatprep.subr.mxu0 0.0
    %1148 = vmatpush1.msra.mxu0 0.0
    %1149 = vmatprep.subr.mxu0 0.0
    %1150 = vmatpush1.msra.mxu0 0.0
    %1151 = vmatprep.subr.mxu0 0.0
    %1152 = vmatpush1.msra.mxu0 0.0
    %1153 = vmatprep.subr.mxu0 0.0
    %1154 = vmatpush1.msra.mxu0 0.0
    %1155 = vmatprep.subr.mxu0 0.0
    %1156 = vmatpush1.msra.mxu0 0.0
    %1157 = vmatprep.subr.mxu0 0.0
    %1158 = vmatpush1.msra.mxu0 0.0
    %1159 = vmatprep.subr.mxu0 0.0
    %1160 = vmatpush1.msra.mxu0 0.0
    %1161 = vmatprep.subr.mxu0 0.0
    %1162 = vmatpush1.msra.mxu0 0.0
    %1163 = vmatprep.subr.mxu0 0.0
    %1164 = vmatpush1.msra.mxu0 0.0
    %1165 = vmatprep.subr.mxu0 0.0
    %1166 = vmatpush1.msra.mxu0 0.0
    %1167 = vmatprep.mubr.f32.mxu0 0.0
    %1168 = vmatmul.mubr.f32.gmra.mrb[0].mxu0 %v1101
    %v1169 = vpop.f32.mrb[0].mxu0
    %v1170 = vadd.f32 0.0, %v1169
    %v1171 = vpop.f32.mrb[0].mxu0
    %1172 = vdwg.mxu0
    %v1173 = vadd.f32 %v1099, %v1170
    %v1174 = vxor.u32 %v1173, 2147483648
    %v1175 = vmul.f32 %v1174, 1.442695
    %v1176 = vpow.pop %v1175
    %v1177 = vadd.f32 %v1176, 1.0
    %v1178 = vrcp.pop %v1177
    %v1179 = vmul.f32 1.0, %v1178
    %v1180 = vtanh.pop %v1173
    %1182 = vrot.lane.b32.xlu0 %v1098, 32
    %v1183 = vpop.permute.xlu0 %1182
    %v1185 = vmul.f32 %v1179, %v1183
    %1187 = vrot.lane.b32.xlu0 %v1180, 64
    %v1188 = vpop.permute.xlu0 %1187
    %v1190 = vmul.f32 %v1179, %v1188
    %1192 = vrot.lane.b32.xlu0 %v1190, 32
    %v1193 = vpop.permute.xlu0 %1192
    %v1195 = vadd.f32 %v1185, %v1193
    %v1196 = vtanh.pop %v1195
    %1198 = vrot.lane.b32.xlu0 %v1196, 64
    %v1199 = vpop.permute.xlu0 %1198
    %v1201 = vmul.f32 %v1179, %v1199
    %1203 = vrot.lane.b32.xlu0 %v1201, 32
    %v1204 = vpop.permute.xlu0 %1203
    %vm1206 = vcmask 253952
    %1207 = vst.msk [vmem:[#allocation4] sm:$0x1] %vm1206, %v1204
    %vm1208 = vcmask 254977
    %1209 = vst.msk [vmem:[#allocation4 + $0x7] sm:$0x2] %vm1208, %v1204
    %v1210 = vld [vmem:[%s254] sm:$0x3]
    %v1211 = vsel %vm145, %v1204, 0
    %1213 = vmatprep.subr.mxu0 0.0
    %1214 = vmatpush1.msra.mxu0 %v1091
    %1215 = vmatprep.subr.mxu0 0.0
    %1216 = vmatpush1.msra.mxu0 %v1092
    %1217 = vmatprep.subr.mxu0 0.0
    %1218 = vmatpush1.msra.mxu0 %v1093
    %1219 = vmatprep.subr.mxu0 0.0
    %1220 = vmatpush1.msra.mxu0 %v1094
    %1221 = vmatprep.subr.mxu0 0.0
    %1222 = vmatpush1.msra.mxu0 0.0
    %1223 = vmatprep.subr.mxu0 0.0
    %1224 = vmatpush1.msra.mxu0 0.0
    %1225 = vmatprep.subr.mxu0 0.0
    %1226 = vmatpush1.msra.mxu0 0.0
    %1227 = vmatprep.subr.mxu0 0.0
    %1228 = vmatpush1.msra.mxu0 0.0
    %1229 = vmatprep.subr.mxu0 0.0
    %1230 = vmatpush1.msra.mxu0 0.0
    %1231 = vmatprep.subr.mxu0 0.0
    %1232 = vmatpush1.msra.mxu0 0.0
    %1233 = vmatprep.subr.mxu0 0.0
    %1234 = vmatpush1.msra.mxu0 0.0
    %1235 = vmatprep.subr.mxu0 0.0
    %1236 = vmatpush1.msra.mxu0 0.0
    %1237 = vmatprep.subr.mxu0 0.0
    %1238 = vmatpush1.msra.mxu0 0.0
    %1239 = vmatprep.subr.mxu0 0.0
    %1240 = vmatpush1.msra.mxu0 0.0
    %1241 = vmatprep.subr.mxu0 0.0
    %1242 = vmatpush1.msra.mxu0 0.0
    %1243 = vmatprep.subr.mxu0 0.0
    %1244 = vmatpush1.msra.mxu0 0.0
    %1245 = vmatprep.subr.mxu0 0.0
    %1246 = vmatpush1.msra.mxu0 0.0
    %1247 = vmatprep.subr.mxu0 0.0
    %1248 = vmatpush1.msra.mxu0 0.0
    %1249 = vmatprep.subr.mxu0 0.0
    %1250 = vmatpush1.msra.mxu0 0.0
    %1251 = vmatprep.subr.mxu0 0.0
    %1252 = vmatpush1.msra.mxu0 0.0
    %1253 = vmatprep.subr.mxu0 0.0
    %1254 = vmatpush1.msra.mxu0 0.0
    %1255 = vmatprep.subr.mxu0 0.0
    %1256 = vmatpush1.msra.mxu0 0.0
    %1257 = vmatprep.subr.mxu0 0.0
    %1258 = vmatpush1.msra.mxu0 0.0
    %1259 = vmatprep.subr.mxu0 0.0
    %1260 = vmatpush1.msra.mxu0 0.0
    %1261 = vmatprep.subr.mxu0 0.0
    %1262 = vmatpush1.msra.mxu0 0.0
    %1263 = vmatprep.subr.mxu0 0.0
    %1264 = vmatpush1.msra.mxu0 0.0
    %1265 = vmatprep.subr.mxu0 0.0
    %1266 = vmatpush1.msra.mxu0 0.0
    %1267 = vmatprep.subr.mxu0 0.0
    %1268 = vmatpush1.msra.mxu0 0.0
    %1269 = vmatprep.subr.mxu0 0.0
    %1270 = vmatpush1.msra.mxu0 0.0
    %1271 = vmatprep.subr.mxu0 0.0
    %1272 = vmatpush1.msra.mxu0 0.0
    %1273 = vmatprep.subr.mxu0 0.0
    %1274 = vmatpush1.msra.mxu0 0.0
    %1275 = vmatprep.subr.mxu0 0.0
    %1276 = vmatpush1.msra.mxu0 0.0
    %1277 = vmatprep.mubr.f32.mxu0 0.0
    %1278 = vmatmul.mubr.f32.gmra.mrb[0].mxu0 %v1211
    %v1279 = vpop.f32.mrb[0].mxu0
    %v1280 = vadd.f32 0.0, %v1279
    %v1281 = vpop.f32.mrb[0].mxu0
    %1282 = vdwg.mxu0
    %v1283 = vadd.f32 %v1210, %v1280
    %v1284 = vxor.u32 %v1283, 2147483648
    %v1285 = vmul.f32 %v1284, 1.442695
    %v1286 = vpow.pop %v1285
    %v1287 = vadd.f32 %v1286, 1.0
    %v1288 = vrcp.pop %v1287
    %v1289 = vmul.f32 1.0, %v1288
    %v1290 = vtanh.pop %v1283
    %v1291 = vmul.f32 %v1289, %v1195
    %1293 = vrot.lane.b32.xlu0 %v1290, 64
    %v1294 = vpop.permute.xlu0 %1293
    %v1296 = vmul.f32 %v1289, %v1294
    %1298 = vrot.lane.b32.xlu0 %v1296, 32
    %v1299 = vpop.permute.xlu0 %1298
    %v1301 = vadd.f32 %v1291, %v1299
    %v1302 = vtanh.pop %v1301
    %1304 = vrot.lane.b32.xlu0 %v1302, 64
    %v1305 = vpop.permute.xlu0 %1304
    %v1307 = vmul.f32 %v1289, %v1305
    %1309 = vrot.lane.b32.xlu0 %v1307, 32
    %v1310 = vpop.permute.xlu0 %1309
    %1312 = vst.msk [vmem:[#allocation4 + $0x1] sm:$0x1] %vm1206, %v1310
    %1313 = vst.msk [vmem:[#allocation4 + $0x8] sm:$0x2] %vm1208, %v1310
    %v1314 = vld [vmem:[%s359] sm:$0x3]
    %v1315 = vsel %vm145, %v1310, 0
    %1317 = vmatprep.subr.mxu0 0.0
    %1318 = vmatpush1.msra.mxu0 %v1091
    %1319 = vmatprep.subr.mxu0 0.0
    %1320 = vmatpush1.msra.mxu0 %v1092
    %1321 = vmatprep.subr.mxu0 0.0
    %1322 = vmatpush1.msra.mxu0 %v1093
    %1323 = vmatprep.subr.mxu0 0.0
    %1324 = vmatpush1.msra.mxu0 %v1094
    %1325 = vmatprep.subr.mxu0 0.0
    %1326 = vmatpush1.msra.mxu0 0.0
    %1327 = vmatprep.subr.mxu0 0.0
    %1328 = vmatpush1.msra.mxu0 0.0
    %1329 = vmatprep.subr.mxu0 0.0
    %1330 = vmatpush1.msra.mxu0 0.0
    %1331 = vmatprep.subr.mxu0 0.0
    %1332 = vmatpush1.msra.mxu0 0.0
    %1333 = vmatprep.subr.mxu0 0.0
    %1334 = vmatpush1.msra.mxu0 0.0
    %1335 = vmatprep.subr.mxu0 0.0
    %1336 = vmatpush1.msra.mxu0 0.0
    %1337 = vmatprep.subr.mxu0 0.0
    %1338 = vmatpush1.msra.mxu0 0.0
    %1339 = vmatprep.subr.mxu0 0.0
    %1340 = vmatpush1.msra.mxu0 0.0
    %1341 = vmatprep.subr.mxu0 0.0
    %1342 = vmatpush1.msra.mxu0 0.0
    %1343 = vmatprep.subr.mxu0 0.0
    %1344 = vmatpush1.msra.mxu0 0.0
    %1345 = vmatprep.subr.mxu0 0.0
    %1346 = vmatpush1.msra.mxu0 0.0
    %1347 = vmatprep.subr.mxu0 0.0
    %1348 = vmatpush1.msra.mxu0 0.0
    %1349 = vmatprep.subr.mxu0 0.0
    %1350 = vmatpush1.msra.mxu0 0.0
    %1351 = vmatprep.subr.mxu0 0.0
    %1352 = vmatpush1.msra.mxu0 0.0
    %1353 = vmatprep.subr.mxu0 0.0
    %1354 = vmatpush1.msra.mxu0 0.0
    %1355 = vmatprep.subr.mxu0 0.0
    %1356 = vmatpush1.msra.mxu0 0.0
    %1357 = vmatprep.subr.mxu0 0.0
    %1358 = vmatpush1.msra.mxu0 0.0
    %1359 = vmatprep.subr.mxu0 0.0
    %1360 = vmatpush1.msra.mxu0 0.0
    %1361 = vmatprep.subr.mxu0 0.0
    %1362 = vmatpush1.msra.mxu0 0.0
    %1363 = vmatprep.subr.mxu0 0.0
    %1364 = vmatpush1.msra.mxu0 0.0
    %1365 = vmatprep.subr.mxu0 0.0
    %1366 = vmatpush1.msra.mxu0 0.0
    %1367 = vmatprep.subr.mxu0 0.0
    %1368 = vmatpush1.msra.mxu0 0.0
    %1369 = vmatprep.subr.mxu0 0.0
    %1370 = vmatpush1.msra.mxu0 0.0
    %1371 = vmatprep.subr.mxu0 0.0
    %1372 = vmatpush1.msra.mxu0 0.0
    %1373 = vmatprep.subr.mxu0 0.0
    %1374 = vmatpush1.msra.mxu0 0.0
    %1375 = vmatprep.subr.mxu0 0.0
    %1376 = vmatpush1.msra.mxu0 0.0
    %1377 = vmatprep.subr.mxu0 0.0
    %1378 = vmatpush1.msra.mxu0 0.0
    %1379 = vmatprep.subr.mxu0 0.0
    %1380 = vmatpush1.msra.mxu0 0.0
    %1381 = vmatprep.mubr.f32.mxu0 0.0
    %1382 = vmatmul.mubr.f32.gmra.mrb[0].mxu0 %v1315
    %v1383 = vpop.f32.mrb[0].mxu0
    %v1384 = vadd.f32 0.0, %v1383
    %v1385 = vpop.f32.mrb[0].mxu0
    %1386 = vdwg.mxu0
    %v1387 = vadd.f32 %v1314, %v1384
    %v1388 = vxor.u32 %v1387, 2147483648
    %v1389 = vmul.f32 %v1388, 1.442695
    %v1390 = vpow.pop %v1389
    %v1391 = vadd.f32 %v1390, 1.0
    %v1392 = vrcp.pop %v1391
    %v1393 = vmul.f32 1.0, %v1392
    %v1394 = vtanh.pop %v1387
    %v1395 = vmul.f32 %v1393, %v1301
    %1397 = vrot.lane.b32.xlu0 %v1394, 64
    %v1398 = vpop.permute.xlu0 %1397
    %v1400 = vmul.f32 %v1393, %v1398
    %1402 = vrot.lane.b32.xlu0 %v1400, 32
    %v1403 = vpop.permute.xlu0 %1402
    %v1405 = vadd.f32 %v1395, %v1403
    %v1406 = vtanh.pop %v1405
    %1408 = vrot.lane.b32.xlu0 %v1406, 64
    %v1409 = vpop.permute.xlu0 %1408
    %v1411 = vmul.f32 %v1393, %v1409
    %1413 = vrot.lane.b32.xlu0 %v1411, 32
    %v1414 = vpop.permute.xlu0 %1413
    %1416 = vst.msk [vmem:[#allocation4 + $0x2] sm:$0x1] %vm1206, %v1414
    %1417 = vst.msk [vmem:[#allocation4 + $0x9] sm:$0x2] %vm1208, %v1414
    %v1418 = vld [vmem:[%s464] sm:$0x3]
    %v1419 = vsel %vm145, %v1414, 0
    %1421 = vmatprep.subr.mxu0 0.0
    %1422 = vmatpush1.msra.mxu0 %v1091
    %1423 = vmatprep.subr.mxu0 0.0
    %1424 = vmatpush1.msra.mxu0 %v1092
    %1425 = vmatprep.subr.mxu0 0.0
    %1426 = vmatpush1.msra.mxu0 %v1093
    %1427 = vmatprep.subr.mxu0 0.0
    %1428 = vmatpush1.msra.mxu0 %v1094
    %1429 = vmatprep.subr.mxu0 0.0
    %1430 = vmatpush1.msra.mxu0 0.0
    %1431 = vmatprep.subr.mxu0 0.0
    %1432 = vmatpush1.msra.mxu0 0.0
    %1433 = vmatprep.subr.mxu0 0.0
    %1434 = vmatpush1.msra.mxu0 0.0
    %1435 = vmatprep.subr.mxu0 0.0
    %1436 = vmatpush1.msra.mxu0 0.0
    %1437 = vmatprep.subr.mxu0 0.0
    %1438 = vmatpush1.msra.mxu0 0.0
    %1439 = vmatprep.subr.mxu0 0.0
    %1440 = vmatpush1.msra.mxu0 0.0
    %1441 = vmatprep.subr.mxu0 0.0
    %1442 = vmatpush1.msra.mxu0 0.0
    %1443 = vmatprep.subr.mxu0 0.0
    %1444 = vmatpush1.msra.mxu0 0.0
    %1445 = vmatprep.subr.mxu0 0.0
    %1446 = vmatpush1.msra.mxu0 0.0
    %1447 = vmatprep.subr.mxu0 0.0
    %1448 = vmatpush1.msra.mxu0 0.0
    %1449 = vmatprep.subr.mxu0 0.0
    %1450 = vmatpush1.msra.mxu0 0.0
    %1451 = vmatprep.subr.mxu0 0.0
    %1452 = vmatpush1.msra.mxu0 0.0
    %1453 = vmatprep.subr.mxu0 0.0
    %1454 = vmatpush1.msra.mxu0 0.0
    %1455 = vmatprep.subr.mxu0 0.0
    %1456 = vmatpush1.msra.mxu0 0.0
    %1457 = vmatprep.subr.mxu0 0.0
    %1458 = vmatpush1.msra.mxu0 0.0
    %1459 = vmatprep.subr.mxu0 0.0
    %1460 = vmatpush1.msra.mxu0 0.0
    %1461 = vmatprep.subr.mxu0 0.0
    %1462 = vmatpush1.msra.mxu0 0.0
    %1463 = vmatprep.subr.mxu0 0.0
    %1464 = vmatpush1.msra.mxu0 0.0
    %1465 = vmatprep.subr.mxu0 0.0
    %1466 = vmatpush1.msra.mxu0 0.0
    %1467 = vmatprep.subr.mxu0 0.0
    %1468 = vmatpush1.msra.mxu0 0.0
    %1469 = vmatprep.subr.mxu0 0.0
    %1470 = vmatpush1.msra.mxu0 0.0
    %1471 = vmatprep.subr.mxu0 0.0
    %1472 = vmatpush1.msra.mxu0 0.0
    %1473 = vmatprep.subr.mxu0 0.0
    %1474 = vmatpush1.msra.mxu0 0.0
    %1475 = vmatprep.subr.mxu0 0.0
    %1476 = vmatpush1.msra.mxu0 0.0
    %1477 = vmatprep.subr.mxu0 0.0
    %1478 = vmatpush1.msra.mxu0 0.0
    %1479 = vmatprep.subr.mxu0 0.0
    %1480 = vmatpush1.msra.mxu0 0.0
    %1481 = vmatprep.subr.mxu0 0.0
    %1482 = vmatpush1.msra.mxu0 0.0
    %1483 = vmatprep.subr.mxu0 0.0
    %1484 = vmatpush1.msra.mxu0 0.0
    %1485 = vmatprep.mubr.f32.mxu0 0.0
    %1486 = vmatmul.mubr.f32.gmra.mrb[0].mxu0 %v1419
    %v1487 = vpop.f32.mrb[0].mxu0
    %v1488 = vadd.f32 0.0, %v1487
    %v1489 = vpop.f32.mrb[0].mxu0
    %1490 = vdwg.mxu0
    %v1491 = vadd.f32 %v1418, %v1488
    %v1492 = vxor.u32 %v1491, 2147483648
    %v1493 = vmul.f32 %v1492, 1.442695
    %v1494 = vpow.pop %v1493
    %v1495 = vadd.f32 %v1494, 1.0
    %v1496 = vrcp.pop %v1495
    %v1497 = vmul.f32 1.0, %v1496
    %v1498 = vtanh.pop %v1491
    %v1499 = vmul.f32 %v1497, %v1405
    %1501 = vrot.lane.b32.xlu0 %v1498, 64
    %v1502 = vpop.permute.xlu0 %1501
    %v1504 = vmul.f32 %v1497, %v1502
    %1506 = vrot.lane.b32.xlu0 %v1504, 32
    %v1507 = vpop.permute.xlu0 %1506
    %v1509 = vadd.f32 %v1499, %v1507
    %v1510 = vtanh.pop %v1509
    %1512 = vrot.lane.b32.xlu0 %v1510, 64
    %v1513 = vpop.permute.xlu0 %1512
    %v1515 = vmul.f32 %v1497, %v1513
    %1517 = vrot.lane.b32.xlu0 %v1515, 32
    %v1518 = vpop.permute.xlu0 %1517
    %1520 = vst.msk [vmem:[#allocation4 + $0x3] sm:$0x1] %vm1206, %v1518
    %1521 = vst.msk [vmem:[#allocation4 + $0xa] sm:$0x2] %vm1208, %v1518
    %v1522 = vld [vmem:[%s569] sm:$0x3]
    %v1523 = vsel %vm145, %v1518, 0
    %1525 = vmatprep.subr.mxu0 0.0
    %1526 = vmatpush1.msra.mxu0 %v1091
    %1527 = vmatprep.subr.mxu0 0.0
    %1528 = vmatpush1.msra.mxu0 %v1092
    %1529 = vmatprep.subr.mxu0 0.0
    %1530 = vmatpush1.msra.mxu0 %v1093
    %1531 = vmatprep.subr.mxu0 0.0
    %1532 = vmatpush1.msra.mxu0 %v1094
    %1533 = vmatprep.subr.mxu0 0.0
    %1534 = vmatpush1.msra.mxu0 0.0
    %1535 = vmatprep.subr.mxu0 0.0
    %1536 = vmatpush1.msra.mxu0 0.0
    %1537 = vmatprep.subr.mxu0 0.0
    %1538 = vmatpush1.msra.mxu0 0.0
    %1539 = vmatprep.subr.mxu0 0.0
    %1540 = vmatpush1.msra.mxu0 0.0
    %1541 = vmatprep.subr.mxu0 0.0
    %1542 = vmatpush1.msra.mxu0 0.0
    %1543 = vmatprep.subr.mxu0 0.0
    %1544 = vmatpush1.msra.mxu0 0.0
    %1545 = vmatprep.subr.mxu0 0.0
    %1546 = vmatpush1.msra.mxu0 0.0
    %1547 = vmatprep.subr.mxu0 0.0
    %1548 = vmatpush1.msra.mxu0 0.0
    %1549 = vmatprep.subr.mxu0 0.0
    %1550 = vmatpush1.msra.mxu0 0.0
    %1551 = vmatprep.subr.mxu0 0.0
    %1552 = vmatpush1.msra.mxu0 0.0
    %1553 = vmatprep.subr.mxu0 0.0
    %1554 = vmatpush1.msra.mxu0 0.0
    %1555 = vmatprep.subr.mxu0 0.0
    %1556 = vmatpush1.msra.mxu0 0.0
    %1557 = vmatprep.subr.mxu0 0.0
    %1558 = vmatpush1.msra.mxu0 0.0
    %1559 = vmatprep.subr.mxu0 0.0
    %1560 = vmatpush1.msra.mxu0 0.0
    %1561 = vmatprep.subr.mxu0 0.0
    %1562 = vmatpush1.msra.mxu0 0.0
    %1563 = vmatprep.subr.mxu0 0.0
    %1564 = vmatpush1.msra.mxu0 0.0
    %1565 = vmatprep.subr.mxu0 0.0
    %1566 = vmatpush1.msra.mxu0 0.0
    %1567 = vmatprep.subr.mxu0 0.0
    %1568 = vmatpush1.msra.mxu0 0.0
    %1569 = vmatprep.subr.mxu0 0.0
    %1570 = vmatpush1.msra.mxu0 0.0
    %1571 = vmatprep.subr.mxu0 0.0
    %1572 = vmatpush1.msra.mxu0 0.0
    %1573 = vmatprep.subr.mxu0 0.0
    %1574 = vmatpush1.msra.mxu0 0.0
    %1575 = vmatprep.subr.mxu0 0.0
    %1576 = vmatpush1.msra.mxu0 0.0
    %1577 = vmatprep.subr.mxu0 0.0
    %1578 = vmatpush1.msra.mxu0 0.0
    %1579 = vmatprep.subr.mxu0 0.0
    %1580 = vmatpush1.msra.mxu0 0.0
    %1581 = vmatprep.subr.mxu0 0.0
    %1582 = vmatpush1.msra.mxu0 0.0
    %1583 = vmatprep.subr.mxu0 0.0
    %1584 = vmatpush1.msra.mxu0 0.0
    %1585 = vmatprep.subr.mxu0 0.0
    %1586 = vmatpush1.msra.mxu0 0.0
    %1587 = vmatprep.subr.mxu0 0.0
    %1588 = vmatpush1.msra.mxu0 0.0
    %1589 = vmatprep.mubr.f32.mxu0 0.0
    %1590 = vmatmul.mubr.f32.gmra.mrb[0].mxu0 %v1523
    %v1591 = vpop.f32.mrb[0].mxu0
    %v1592 = vadd.f32 0.0, %v1591
    %v1593 = vpop.f32.mrb[0].mxu0
    %1594 = vdwg.mxu0
    %v1595 = vadd.f32 %v1522, %v1592
    %v1596 = vxor.u32 %v1595, 2147483648
    %v1597 = vmul.f32 %v1596, 1.442695
    %v1598 = vpow.pop %v1597
    %v1599 = vadd.f32 %v1598, 1.0
    %v1600 = vrcp.pop %v1599
    %v1601 = vmul.f32 1.0, %v1600
    %v1602 = vtanh.pop %v1595
    %v1603 = vmul.f32 %v1601, %v1509
    %1605 = vrot.lane.b32.xlu0 %v1602, 64
    %v1606 = vpop.permute.xlu0 %1605
    %v1608 = vmul.f32 %v1601, %v1606
    %1610 = vrot.lane.b32.xlu0 %v1608, 32
    %v1611 = vpop.permute.xlu0 %1610
    %v1613 = vadd.f32 %v1603, %v1611
    %v1614 = vtanh.pop %v1613
    %1616 = vrot.lane.b32.xlu0 %v1614, 64
    %v1617 = vpop.permute.xlu0 %1616
    %v1619 = vmul.f32 %v1601, %v1617
    %1621 = vrot.lane.b32.xlu0 %v1619, 32
    %v1622 = vpop.permute.xlu0 %1621
    %1624 = vst.msk [vmem:[#allocation4 + $0x4] sm:$0x1] %vm1206, %v1622
    %1625 = vst.msk [vmem:[#allocation4 + $0xb] sm:$0x2] %vm1208, %v1622
    %v1626 = vld [vmem:[%s674] sm:$0x3]
    %v1627 = vsel %vm145, %v1622, 0
    %1629 = vmatprep.subr.mxu0 0.0
    %1630 = vmatpush1.msra.mxu0 %v1091
    %1631 = vmatprep.subr.mxu0 0.0
    %1632 = vmatpush1.msra.mxu0 %v1092
    %1633 = vmatprep.subr.mxu0 0.0
    %1634 = vmatpush1.msra.mxu0 %v1093
    %1635 = vmatprep.subr.mxu0 0.0
    %1636 = vmatpush1.msra.mxu0 %v1094
    %1637 = vmatprep.subr.mxu0 0.0
    %1638 = vmatpush1.msra.mxu0 0.0
    %1639 = vmatprep.subr.mxu0 0.0
    %1640 = vmatpush1.msra.mxu0 0.0
    %1641 = vmatprep.subr.mxu0 0.0
    %1642 = vmatpush1.msra.mxu0 0.0
    %1643 = vmatprep.subr.mxu0 0.0
    %1644 = vmatpush1.msra.mxu0 0.0
    %1645 = vmatprep.subr.mxu0 0.0
    %1646 = vmatpush1.msra.mxu0 0.0
    %1647 = vmatprep.subr.mxu0 0.0
    %1648 = vmatpush1.msra.mxu0 0.0
    %1649 = vmatprep.subr.mxu0 0.0
    %1650 = vmatpush1.msra.mxu0 0.0
    %1651 = vmatprep.subr.mxu0 0.0
    %1652 = vmatpush1.msra.mxu0 0.0
    %1653 = vmatprep.subr.mxu0 0.0
    %1654 = vmatpush1.msra.mxu0 0.0
    %1655 = vmatprep.subr.mxu0 0.0
    %1656 = vmatpush1.msra.mxu0 0.0
    %1657 = vmatprep.subr.mxu0 0.0
    %1658 = vmatpush1.msra.mxu0 0.0
    %1659 = vmatprep.subr.mxu0 0.0
    %1660 = vmatpush1.msra.mxu0 0.0
    %1661 = vmatprep.subr.mxu0 0.0
    %1662 = vmatpush1.msra.mxu0 0.0
    %1663 = vmatprep.subr.mxu0 0.0
    %1664 = vmatpush1.msra.mxu0 0.0
    %1665 = vmatprep.subr.mxu0 0.0
    %1666 = vmatpush1.msra.mxu0 0.0
    %1667 = vmatprep.subr.mxu0 0.0
    %1668 = vmatpush1.msra.mxu0 0.0
    %1669 = vmatprep.subr.mxu0 0.0
    %1670 = vmatpush1.msra.mxu0 0.0
    %1671 = vmatprep.subr.mxu0 0.0
    %1672 = vmatpush1.msra.mxu0 0.0
    %1673 = vmatprep.subr.mxu0 0.0
    %1674 = vmatpush1.msra.mxu0 0.0
    %1675 = vmatprep.subr.mxu0 0.0
    %1676 = vmatpush1.msra.mxu0 0.0
    %1677 = vmatprep.subr.mxu0 0.0
    %1678 = vmatpush1.msra.mxu0 0.0
    %1679 = vmatprep.subr.mxu0 0.0
    %1680 = vmatpush1.msra.mxu0 0.0
    %1681 = vmatprep.subr.mxu0 0.0
    %1682 = vmatpush1.msra.mxu0 0.0
    %1683 = vmatprep.subr.mxu0 0.0
    %1684 = vmatpush1.msra.mxu0 0.0
    %1685 = vmatprep.subr.mxu0 0.0
    %1686 = vmatpush1.msra.mxu0 0.0
    %1687 = vmatprep.subr.mxu0 0.0
    %1688 = vmatpush1.msra.mxu0 0.0
    %1689 = vmatprep.subr.mxu0 0.0
    %1690 = vmatpush1.msra.mxu0 0.0
    %1691 = vmatprep.subr.mxu0 0.0
    %1692 = vmatpush1.msra.mxu0 0.0
    %1693 = vmatprep.mubr.f32.mxu0 0.0
    %1694 = vmatmul.mubr.f32.gmra.mrb[0].mxu0 %v1627
    %v1695 = vpop.f32.mrb[0].mxu0
    %v1696 = vadd.f32 0.0, %v1695
    %v1697 = vpop.f32.mrb[0].mxu0
    %1698 = vdwg.mxu0
    %v1699 = vadd.f32 %v1626, %v1696
    %v1700 = vxor.u32 %v1699, 2147483648
    %v1701 = vmul.f32 %v1700, 1.442695
    %v1702 = vpow.pop %v1701
    %v1703 = vadd.f32 %v1702, 1.0
    %v1704 = vrcp.pop %v1703
    %v1705 = vmul.f32 1.0, %v1704
    %v1706 = vtanh.pop %v1699
    %v1707 = vmul.f32 %v1705, %v1613
    %1709 = vrot.lane.b32.xlu0 %v1706, 64
    %v1710 = vpop.permute.xlu0 %1709
    %v1712 = vmul.f32 %v1705, %v1710
    %1714 = vrot.lane.b32.xlu0 %v1712, 32
    %v1715 = vpop.permute.xlu0 %1714
    %v1717 = vadd.f32 %v1707, %v1715
    %v1718 = vtanh.pop %v1717
    %1720 = vrot.lane.b32.xlu0 %v1718, 64
    %v1721 = vpop.permute.xlu0 %1720
    %v1723 = vmul.f32 %v1705, %v1721
    %1725 = vrot.lane.b32.xlu0 %v1723, 32
    %v1726 = vpop.permute.xlu0 %1725
    %1728 = vst.msk [vmem:[#allocation4 + $0x5] sm:$0x1] %vm1206, %v1726
    %1729 = vst.msk [vmem:[#allocation4 + $0xc] sm:$0x2] %vm1208, %v1726
    %v1730 = vld [vmem:[%s779] sm:$0x3]
    %v1731 = vsel %vm145, %v1726, 0
    %1733 = vmatprep.subr.mxu0 0.0
    %1734 = vmatpush1.msra.mxu0 %v1091
    %1735 = vmatprep.subr.mxu0 0.0
    %1736 = vmatpush1.msra.mxu0 %v1092
    %1737 = vmatprep.subr.mxu0 0.0
    %1738 = vmatpush1.msra.mxu0 %v1093
    %1739 = vmatprep.subr.mxu0 0.0
    %1740 = vmatpush1.msra.mxu0 %v1094
    %1741 = vmatprep.subr.mxu0 0.0
    %1742 = vmatpush1.msra.mxu0 0.0
    %1743 = vmatprep.subr.mxu0 0.0
    %1744 = vmatpush1.msra.mxu0 0.0
    %1745 = vmatprep.subr.mxu0 0.0
    %1746 = vmatpush1.msra.mxu0 0.0
    %1747 = vmatprep.subr.mxu0 0.0
    %1748 = vmatpush1.msra.mxu0 0.0
    %1749 = vmatprep.subr.mxu0 0.0
    %1750 = vmatpush1.msra.mxu0 0.0
    %1751 = vmatprep.subr.mxu0 0.0
    %1752 = vmatpush1.msra.mxu0 0.0
    %1753 = vmatprep.subr.mxu0 0.0
    %1754 = vmatpush1.msra.mxu0 0.0
    %1755 = vmatprep.subr.mxu0 0.0
    %1756 = vmatpush1.msra.mxu0 0.0
    %1757 = vmatprep.subr.mxu0 0.0
    %1758 = vmatpush1.msra.mxu0 0.0
    %1759 = vmatprep.subr.mxu0 0.0
    %1760 = vmatpush1.msra.mxu0 0.0
    %1761 = vmatprep.subr.mxu0 0.0
    %1762 = vmatpush1.msra.mxu0 0.0
    %1763 = vmatprep.subr.mxu0 0.0
    %1764 = vmatpush1.msra.mxu0 0.0
    %1765 = vmatprep.subr.mxu0 0.0
    %1766 = vmatpush1.msra.mxu0 0.0
    %1767 = vmatprep.subr.mxu0 0.0
    %1768 = vmatpush1.msra.mxu0 0.0
    %1769 = vmatprep.subr.mxu0 0.0
    %1770 = vmatpush1.msra.mxu0 0.0
    %1771 = vmatprep.subr.mxu0 0.0
    %1772 = vmatpush1.msra.mxu0 0.0
    %1773 = vmatprep.subr.mxu0 0.0
    %1774 = vmatpush1.msra.mxu0 0.0
    %1775 = vmatprep.subr.mxu0 0.0
    %1776 = vmatpush1.msra.mxu0 0.0
    %1777 = vmatprep.subr.mxu0 0.0
    %1778 = vmatpush1.msra.mxu0 0.0
    %1779 = vmatprep.subr.mxu0 0.0
    %1780 = vmatpush1.msra.mxu0 0.0
    %1781 = vmatprep.subr.mxu0 0.0
    %1782 = vmatpush1.msra.mxu0 0.0
    %1783 = vmatprep.subr.mxu0 0.0
    %1784 = vmatpush1.msra.mxu0 0.0
    %1785 = vmatprep.subr.mxu0 0.0
    %1786 = vmatpush1.msra.mxu0 0.0
    %1787 = vmatprep.subr.mxu0 0.0
    %1788 = vmatpush1.msra.mxu0 0.0
    %1789 = vmatprep.subr.mxu0 0.0
    %1790 = vmatpush1.msra.mxu0 0.0
    %1791 = vmatprep.subr.mxu0 0.0
    %1792 = vmatpush1.msra.mxu0 0.0
    %1793 = vmatprep.subr.mxu0 0.0
    %1794 = vmatpush1.msra.mxu0 0.0
    %1795 = vmatprep.subr.mxu0 0.0
    %1796 = vmatpush1.msra.mxu0 0.0
    %1797 = vmatprep.mubr.f32.mxu0 0.0
    %1798 = vmatmul.mubr.f32.gmra.mrb[0].mxu0 %v1731
    %v1799 = vpop.f32.mrb[0].mxu0
    %v1800 = vadd.f32 0.0, %v1799
    %v1801 = vpop.f32.mrb[0].mxu0
    %1802 = vdwg.mxu0
    %v1803 = vadd.f32 %v1730, %v1800
    %v1804 = vxor.u32 %v1803, 2147483648
    %v1805 = vmul.f32 %v1804, 1.442695
    %v1806 = vpow.pop %v1805
    %v1807 = vadd.f32 %v1806, 1.0
    %v1808 = vrcp.pop %v1807
    %v1809 = vmul.f32 1.0, %v1808
    %v1810 = vtanh.pop %v1803
    %v1811 = vmul.f32 %v1809, %v1717
    %1813 = vrot.lane.b32.xlu0 %v1810, 64
    %v1814 = vpop.permute.xlu0 %1813
    %v1816 = vmul.f32 %v1809, %v1814
    %1818 = vrot.lane.b32.xlu0 %v1816, 32
    %v1819 = vpop.permute.xlu0 %1818
    %v1821 = vadd.f32 %v1811, %v1819
    %v1822 = vtanh.pop %v1821
    %1824 = vrot.lane.b32.xlu0 %v1822, 64
    %v1825 = vpop.permute.xlu0 %1824
    %v1827 = vmul.f32 %v1809, %v1825
    %1829 = vrot.lane.b32.xlu0 %v1827, 32
    %v1830 = vpop.permute.xlu0 %1829
    %1832 = vst.msk [vmem:[#allocation4 + $0x6] sm:$0x1] %vm1206, %v1830
    %1833 = vst.msk [vmem:[#allocation4 + $0xd] sm:$0x2] %vm1208, %v1830
    %v1834 = vld [vmem:[%s884] sm:$0x3]
    %v1835 = vsel %vm145, %v1830, 0
    %1837 = vmatprep.subr.mxu0 0.0
    %1838 = vmatpush1.msra.mxu0 %v1091
    %1839 = vmatprep.subr.mxu0 0.0
    %1840 = vmatpush1.msra.mxu0 %v1092
    %1841 = vmatprep.subr.mxu0 0.0
    %1842 = vmatpush1.msra.mxu0 %v1093
    %1843 = vmatprep.subr.mxu0 0.0
    %1844 = vmatpush1.msra.mxu0 %v1094
    %1845 = vmatprep.subr.mxu0 0.0
    %1846 = vmatpush1.msra.mxu0 0.0
    %1847 = vmatprep.subr.mxu0 0.0
    %1848 = vmatpush1.msra.mxu0 0.0
    %1849 = vmatprep.subr.mxu0 0.0
    %1850 = vmatpush1.msra.mxu0 0.0
    %1851 = vmatprep.subr.mxu0 0.0
    %1852 = vmatpush1.msra.mxu0 0.0
    %1853 = vmatprep.subr.mxu0 0.0
    %1854 = vmatpush1.msra.mxu0 0.0
    %1855 = vmatprep.subr.mxu0 0.0
    %1856 = vmatpush1.msra.mxu0 0.0
    %1857 = vmatprep.subr.mxu0 0.0
    %1858 = vmatpush1.msra.mxu0 0.0
    %1859 = vmatprep.subr.mxu0 0.0
    %1860 = vmatpush1.msra.mxu0 0.0
    %1861 = vmatprep.subr.mxu0 0.0
    %1862 = vmatpush1.msra.mxu0 0.0
    %1863 = vmatprep.subr.mxu0 0.0
    %1864 = vmatpush1.msra.mxu0 0.0
    %1865 = vmatprep.subr.mxu0 0.0
    %1866 = vmatpush1.msra.mxu0 0.0
    %1867 = vmatprep.subr.mxu0 0.0
    %1868 = vmatpush1.msra.mxu0 0.0
    %1869 = vmatprep.subr.mxu0 0.0
    %1870 = vmatpush1.msra.mxu0 0.0
    %1871 = vmatprep.subr.mxu0 0.0
    %1872 = vmatpush1.msra.mxu0 0.0
    %1873 = vmatprep.subr.mxu0 0.0
    %1874 = vmatpush1.msra.mxu0 0.0
    %1875 = vmatprep.subr.mxu0 0.0
    %1876 = vmatpush1.msra.mxu0 0.0
    %1877 = vmatprep.subr.mxu0 0.0
    %1878 = vmatpush1.msra.mxu0 0.0
    %1879 = vmatprep.subr.mxu0 0.0
    %1880 = vmatpush1.msra.mxu0 0.0
    %1881 = vmatprep.subr.mxu0 0.0
    %1882 = vmatpush1.msra.mxu0 0.0
    %1883 = vmatprep.subr.mxu0 0.0
    %1884 = vmatpush1.msra.mxu0 0.0
    %1885 = vmatprep.subr.mxu0 0.0
    %1886 = vmatpush1.msra.mxu0 0.0
    %1887 = vmatprep.subr.mxu0 0.0
    %1888 = vmatpush1.msra.mxu0 0.0
    %1889 = vmatprep.subr.mxu0 0.0
    %1890 = vmatpush1.msra.mxu0 0.0
    %1891 = vmatprep.subr.mxu0 0.0
    %1892 = vmatpush1.msra.mxu0 0.0
    %1893 = vmatprep.subr.mxu0 0.0
    %1894 = vmatpush1.msra.mxu0 0.0
    %1895 = vmatprep.subr.mxu0 0.0
    %1896 = vmatpush1.msra.mxu0 0.0
    %1897 = vmatprep.subr.mxu0 0.0
    %1898 = vmatpush1.msra.mxu0 0.0
    %1899 = vmatprep.subr.mxu0 0.0
    %1900 = vmatpush1.msra.mxu0 0.0
    %1901 = vmatprep.mubr.f32.mxu0 0.0
    %1902 = vmatmul.mubr.f32.gmra.mrb[0].mxu0 %v1835
    %v1903 = vpop.f32.mrb[0].mxu0
    %v1904 = vadd.f32 0.0, %v1903
    %v1905 = vpop.f32.mrb[0].mxu0
    %1906 = vdwg.mxu0
    %v1907 = vadd.f32 %v1834, %v1904
    %v1908 = vxor.u32 %v1907, 2147483648
    %v1909 = vmul.f32 %v1908, 1.442695
    %v1910 = vpow.pop %v1909
    %v1911 = vadd.f32 %v1910, 1.0
    %v1912 = vrcp.pop %v1911
    %v1913 = vmul.f32 1.0, %v1912
    %v1914 = vtanh.pop %v1907
    %v1915 = vmul.f32 %v1913, %v1821
    %1917 = vrot.lane.b32.xlu0 %v1914, 64
    %v1918 = vpop.permute.xlu0 %1917
    %v1920 = vmul.f32 %v1913, %v1918
    %1922 = vrot.lane.b32.xlu0 %v1920, 32
    %v1923 = vpop.permute.xlu0 %1922
    %v1925 = vadd.f32 %v1915, %v1923
    %v1926 = vtanh.pop %v1925
    %1928 = vrot.lane.b32.xlu0 %v1926, 64
    %v1929 = vpop.permute.xlu0 %1928
    %v1931 = vmul.f32 %v1913, %v1929
    %1933 = vrot.lane.b32.xlu0 %v1931, 32
    %v1934 = vpop.permute.xlu0 %1933
    %1936 = vst.msk [vmem:[#allocation4 + $0x7] sm:$0x1] %vm1206, %v1934
    %1937 = vst.msk [vmem:[#allocation4 + $0xe] sm:$0x2] %vm1208, %v1934
    %s1938 = scalar_lea.vmem [#allocation7], 2
    %1939 = vst.msk [vmem:[%s1938] sm:$0x3] %vm252, %v1934
    %1941 = vrot.lane.b32.xlu0 %v1925, 96
    %v1942 = vpop.permute.xlu0 %1941
    %s1944 = scalar_lea.vmem [#allocation9], 2
    %1945 = vst.msk [vmem:[%s1944] sm:$0x3] %vm252, %v1942
    %v1946 = vld [vmem:[#allocation4] sm:$0xff]
    %v1947 = vld [vmem:[#allocation4 + $0x8] sm:$0xff]
    %v1948 = vld [vmem:[%s7] sm:$0xff]
    %v1949 = vld [vmem:[%s7 + $0x8] sm:$0xff]
    %v1950 = vld [vmem:[%s7 + $0x10] sm:$0xff]
    %v1951 = vld [vmem:[%s7 + $0x18] sm:$0xff]
    %v1952 = vld [vmem:[%s8] sm:$0x1]
    %v1954 = vlaneseq
    %v1955 = vshrl.u32 %v1954, 7
    %v1956 = vsub.s32 0, %v1955
    %v1957 = vrot.slane %v1952, %v1956
    %v1960 = vsel %vm145, %v1946, 0
    %v1963 = vsel %vm145, %v1947, 0
    %1965 = vmatprep.subr.mxu0 0.0
    %1966 = vmatpush1.msra.mxu0 %v1948
    %1967 = vmatprep.subr.mxu0 0.0
    %1968 = vmatpush1.msra.mxu0 %v1949
    %1969 = vmatprep.subr.mxu0 0.0
    %1970 = vmatpush1.msra.mxu0 %v1950
    %1971 = vmatprep.subr.mxu0 0.0
    %1972 = vmatpush1.msra.mxu0 %v1951
    %1973 = vmatprep.subr.mxu0 0.0
    %1974 = vmatpush1.msra.mxu0 0.0
    %1975 = vmatprep.subr.mxu0 0.0
    %1976 = vmatpush1.msra.mxu0 0.0
    %1977 = vmatprep.subr.mxu0 0.0
    %1978 = vmatpush1.msra.mxu0 0.0
    %1979 = vmatprep.subr.mxu0 0.0
    %1980 = vmatpush1.msra.mxu0 0.0
    %1981 = vmatprep.subr.mxu0 0.0
    %1982 = vmatpush1.msra.mxu0 0.0
    %1983 = vmatprep.subr.mxu0 0.0
    %1984 = vmatpush1.msra.mxu0 0.0
    %1985 = vmatprep.subr.mxu0 0.0
    %1986 = vmatpush1.msra.mxu0 0.0
    %1987 = vmatprep.subr.mxu0 0.0
    %1988 = vmatpush1.msra.mxu0 0.0
    %1989 = vmatprep.subr.mxu0 0.0
    %1990 = vmatpush1.msra.mxu0 0.0
    %1991 = vmatprep.subr.mxu0 0.0
    %1992 = vmatpush1.msra.mxu0 0.0
    %1993 = vmatprep.subr.mxu0 0.0
    %1994 = vmatpush1.msra.mxu0 0.0
    %1995 = vmatprep.subr.mxu0 0.0
    %1996 = vmatpush1.msra.mxu0 0.0
    %1997 = vmatprep.subr.mxu0 0.0
    %1998 = vmatpush1.msra.mxu0 0.0
    %1999 = vmatprep.subr.mxu0 0.0
    %2000 = vmatpush1.msra.mxu0 0.0
    %2001 = vmatprep.subr.mxu0 0.0
    %2002 = vmatpush1.msra.mxu0 0.0
    %2003 = vmatprep.subr.mxu0 0.0
    %2004 = vmatpush1.msra.mxu0 0.0
    %2005 = vmatprep.subr.mxu0 0.0
    %2006 = vmatpush1.msra.mxu0 0.0
    %2007 = vmatprep.subr.mxu0 0.0
    %2008 = vmatpush1.msra.mxu0 0.0
    %2009 = vmatprep.subr.mxu0 0.0
    %2010 = vmatpush1.msra.mxu0 0.0
    %2011 = vmatprep.subr.mxu0 0.0
    %2012 = vmatpush1.msra.mxu0 0.0
    %2013 = vmatprep.subr.mxu0 0.0
    %2014 = vmatpush1.msra.mxu0 0.0
    %2015 = vmatprep.subr.mxu0 0.0
    %2016 = vmatpush1.msra.mxu0 0.0
    %2017 = vmatprep.subr.mxu0 0.0
    %2018 = vmatpush1.msra.mxu0 0.0
    %2019 = vmatprep.subr.mxu0 0.0
    %2020 = vmatpush1.msra.mxu0 0.0
    %2021 = vmatprep.subr.mxu0 0.0
    %2022 = vmatpush1.msra.mxu0 0.0
    %2023 = vmatprep.subr.mxu0 0.0
    %2024 = vmatpush1.msra.mxu0 0.0
    %2025 = vmatprep.subr.mxu0 0.0
    %2026 = vmatpush1.msra.mxu0 0.0
    %2027 = vmatprep.subr.mxu0 0.0
    %2028 = vmatpush1.msra.mxu0 0.0
    %2029 = vmatprep.mubr.f32.mxu0 0.0
    %2030 = vmatmul.mubr.f32.gmra.mrb[0].mxu0 %v1960
    %v2031 = vpop.f32.mrb[0].mxu0
    %v2032 = vadd.f32 %v1957, %v2031
    %v2033 = vpop.f32.mrb[0].mxu0
    %2034 = vmatprep.mubr.f32.mxu0 0.0
    %2035 = vmatmul.mubr.f32.gmra.mrb[0].mxu0 %v1963
    %v2036 = vpop.f32.mrb[0].mxu0
    %v2037 = vadd.f32 %v1957, %v2036
    %v2038 = vpop.f32.mrb[0].mxu0
    %2039 = vdwg.mxu0
    %2040 = vst [vmem:[#allocation5] sm:$0xff] %v2032
    %2041 = vst [vmem:[#allocation5 + $0x8] sm:$0xff] %v2037
    // Predicated region
    $region46: #{char_rnn_forward.1} parent=1 // pred_check
      _
    $region47: #{char_rnn_forward.1} parent=1 // pred_check_branch
      %2043 = sbr.rel (0) target = $region49
    $region48: #{char_rnn_forward.1} parent=1 // pred_region
      %s2045 = ssub.s32 256, 256
      %2046 = vsyncadd [#allocation6], %s2045
      %s2047 = sshll.u32 [#allocation5], 4
      %s2048 = int_to_ptr.vmem [resolvable:$true] %s2047
      %2053 = dma.vmem_to_hbm [thread:$0]  %s2048, 256, %s11, [#allocation6], 128, 128, 8
    $region49: #{char_rnn_forward.1} parent=1 // pred_fallthru
      _
    // Predicated region
    $region50: #{char_rnn_forward.1} parent=1 // pred_check
      _
    $region51: #{char_rnn_forward.1} parent=1 // pred_check_branch
      %2055 = sbr.rel (0) target = $region53
    $region52: #{char_rnn_forward.1} parent=1 // pred_region
      %s2057 = ssub.s32 64, 64
      %2058 = vsyncadd [#allocation8], %s2057
      %s2059 = sshll.u32 [#allocation7], 4
      %s2060 = int_to_ptr.vmem [resolvable:$true] %s2059
      %2065 = dma.vmem_to_hbm [thread:$0]  %s2060, 64, %s12, [#allocation8], 32, 32, 2
    $region53: #{char_rnn_forward.1} parent=1 // pred_fallthru
      _
    // Predicated region
    $region54: #{char_rnn_forward.1} parent=1 // pred_check
      _
    $region55: #{char_rnn_forward.1} parent=1 // pred_check_branch
      %2067 = sbr.rel (0) target = $region57
    $region56: #{char_rnn_forward.1} parent=1 // pred_region
      %s2069 = ssub.s32 64, 64
      %2070 = vsyncadd [#allocation8], %s2069
      %s2071 = sshll.u32 [#allocation9], 4
      %s2072 = int_to_ptr.vmem [resolvable:$true] %s2071
      %2077 = dma.vmem_to_hbm [thread:$0]  %s2072, 64, %s13, [#allocation8], 32, 32, 2
    $region57: #{char_rnn_forward.1} parent=1 // pred_fallthru
      _
    // Predicated region
    $region58: #{char_rnn_forward.1} parent=1 // pred_check
      _
    $region59: #{char_rnn_forward.1} parent=1 // pred_check_branch
      %2079 = sbr.rel (0) target = $region61
    $region60: #{char_rnn_forward.1} parent=1 // pred_region
      %2080 = dma.done [#allocation6], 256
    $region61: #{char_rnn_forward.1} parent=1 // pred_fallthru
      _
    // Predicated region
    $region62: #{char_rnn_forward.1} parent=1 // pred_check
      _
    $region63: #{char_rnn_forward.1} parent=1 // pred_check_branch
      %2082 = sbr.rel (0) target = $region65
    $region64: #{char_rnn_forward.1} parent=1 // pred_region
      %2083 = dma.done [#allocation8], 64
    $region65: #{char_rnn_forward.1} parent=1 // pred_fallthru
      _
    // Predicated region
    $region66: #{char_rnn_forward.1} parent=1 // pred_check
      _
    $region67: #{char_rnn_forward.1} parent=1 // pred_check_branch
      %2085 = sbr.rel (0) target = $region69
    $region68: #{char_rnn_forward.1} parent=1 // pred_region
      %2086 = dma.done [#allocation8], 64
    $region69: #{char_rnn_forward.1} parent=1 // pred_fallthru
      _
    %2087 = vsyncpa [#allocation6], 1
    %2088 = vsyncpa [#allocation8], 1

</llo_original>
